<compile_context>
chip_gen: v6e
topology: v6e:2x2x1
jax: 0.10.0
libtpu: 0.0.40
codegen_flags: <defaults>
</compile_context>

<pallas_src>
import functools

import jax
import jax.numpy as jnp
from jax.experimental import pallas as pl
from jax.experimental.pallas import tpu as pltpu


_N_PAD = 128      # pad the Cout / N axis of every matmul to a full lane tile
_TM_MAX = 512     # max rows per grid step (double-buffered tile ~1 MiB VMEM)
_BN_EPS = 1e-5

# conv shapes (OIHW) and whether the block has a BatchNorm
_CONV_SHAPES = [
    (8, 1, 3, 3),    # convblock1
    (8, 8, 3, 3),    # convblock2 (+ pool1)
    (16, 8, 3, 3),   # convblock3 (pad=1)
    (8, 16, 3, 3),   # convblock4 (+ pool2)
    (16, 8, 3, 3),   # convblock5 (pad=1)
    (8, 16, 3, 3),   # convblock6
    (10, 8, 3, 3),   # convblock7 (no BN, no ReLU)
]
_HAS_BN = [True, True, True, True, True, True, False]
_COUT = [s[0] for s in _CONV_SHAPES]


def _round_up(x, m):
    return (x + m - 1) // m * m


def _row_tiling(m):
    """Pick an M tile (multiple of 8, <= _TM_MAX) and the padded row count."""
    tm = _TM_MAX if m >= _TM_MAX else _round_up(m, 8)
    return tm, _round_up(m, tm)


def _compiler_params(grid_rank):
    return pltpu.CompilerParams(
        dimension_semantics=("parallel",) * grid_rank,
        vmem_limit_bytes=32 * 1024 * 1024,
    )


# --------------------------------------------------------------------------
# Pallas kernels
# --------------------------------------------------------------------------
def _conv_relu_kernel(p_ref, w_ref, b_ref, o_ref):
    # [tm, K] @ [K, 128] on the MXU (default precision = single bf16 pass),
    # folded-BN bias add + ReLU on the VPU, lane-dense [tm, 128] store.
    y = jnp.dot(p_ref[...], w_ref[...], preferred_element_type=jnp.float32)
    o_ref[...] = jnp.maximum(y + b_ref[...], 0.0)


def _conv_relu_pool_kernel(p_ref, w_ref, b_ref, o_ref):
    # Fused conv + BN + ReLU + 2x2 max-pool: p_ref holds the 4 pool positions
    # as contiguous row blocks, so the pool is an elementwise max of 4
    # lane-dense [tm, 128] matmul results.
    w = w_ref[...]
    b = b_ref[...]
    out = None
    for q in range(4):
        y = jnp.dot(p_ref[q], w, preferred_element_type=jnp.float32)
        y = jnp.maximum(y + b, 0.0)
        out = y if out is None else jnp.maximum(out, y)
    o_ref[...] = out


def _conv_logsoftmax_kernel(p_ref, w_ref, o_ref, *, valid_n):
    # Final 1x1-spatial conv producing the logits, fused with log_softmax.
    # Columns >= valid_n are zero-padded weight lanes -> masked out.
    y = jnp.dot(p_ref[...], w_ref[...], preferred_element_type=jnp.float32)
    lane = jax.lax.broadcasted_iota(jnp.int32, y.shape, 1)
    y = jnp.where(lane < valid_n, y, -1e30)
    m = jnp.max(y, axis=-1, keepdims=True)
    s = y - m
    lse = jnp.log(jnp.sum(jnp.exp(s), axis=-1, keepdims=True))
    o_ref[...] = s - lse


# --------------------------------------------------------------------------
# pallas_call wrappers (gridded over M, weights held resident)
# --------------------------------------------------------------------------
def _conv_relu(p, wk, b):
    m, k = p.shape
    n = wk.shape[1]
    tm, mp = _row_tiling(m)
    if mp != m:
        p = jnp.pad(p, ((0, mp - m), (0, 0)))
    out = pl.pallas_call(
        _conv_relu_kernel,
        out_shape=jax.ShapeDtypeStruct((mp, n), jnp.float32),
        grid_spec=pltpu.PrefetchScalarGridSpec(
            num_scalar_prefetch=0,
            grid=(mp // tm,),
            in_specs=[
                pl.BlockSpec((tm, k), lambda i: (i, 0)),
                pl.BlockSpec((k, n), lambda i: (0, 0)),
                pl.BlockSpec((1, n), lambda i: (0, 0)),
            ],
            out_specs=pl.BlockSpec((tm, n), lambda i: (i, 0)),
        ),
        compiler_params=_compiler_params(1),
    )(p, wk, b)
    return out[:m] if mp != m else out


def _conv_relu_pool(p4, wk, b):
    _, m, k = p4.shape
    n = wk.shape[1]
    tm, mp = _row_tiling(m)
    if mp != m:
        p4 = jnp.pad(p4, ((0, 0), (0, mp - m), (0, 0)))
    out = pl.pallas_call(
        _conv_relu_pool_kernel,
        out_shape=jax.ShapeDtypeStruct((mp, n), jnp.float32),
        grid_spec=pltpu.PrefetchScalarGridSpec(
            num_scalar_prefetch=0,
            grid=(mp // tm,),
            in_specs=[
                pl.BlockSpec((4, tm, k), lambda i: (0, i, 0)),
                pl.BlockSpec((k, n), lambda i: (0, 0)),
                pl.BlockSpec((1, n), lambda i: (0, 0)),
            ],
            out_specs=pl.BlockSpec((tm, n), lambda i: (i, 0)),
        ),
        compiler_params=_compiler_params(1),
    )(p4, wk, b)
    return out[:m] if mp != m else out


def _conv_logsoftmax(p, wk, valid_n):
    m, _ = p.shape
    n = wk.shape[1]
    vmem = pl.BlockSpec(memory_space=pltpu.MemorySpace.VMEM)
    out = pl.pallas_call(
        functools.partial(_conv_logsoftmax_kernel, valid_n=valid_n),
        out_shape=jax.ShapeDtypeStruct((m, n), jnp.float32),
        in_specs=[vmem, vmem],
        out_specs=vmem,
        compiler_params=pltpu.CompilerParams(vmem_limit_bytes=32 * 1024 * 1024),
    )(p, wk)
    return out[:, :valid_n]


# --------------------------------------------------------------------------
# NHWC im2col glue (shifted slices + channel concat, no transposes)
# --------------------------------------------------------------------------
def _extract_patches(x, pad):
    """x: [B, H, W, C] -> [B, Ho, Wo, 9*C], K order = (kh, kw, cin)."""
    if pad:
        x = jnp.pad(x, ((0, 0), (pad, pad), (pad, pad), (0, 0)))
    B, H, W, C = x.shape
    Ho, Wo = H - 2, W - 2
    cols = [x[:, i:i + Ho, j:j + Wo, :] for i in range(3) for j in range(3)]
    return jnp.concatenate(cols, axis=-1)


# --------------------------------------------------------------------------
# Parameters: init, BN folding, [K, 128] weight layout (done once, off path)
# --------------------------------------------------------------------------
def init_params(key):
    params = []
    keys = jax.random.split(key, len(_CONV_SHAPES))
    for k, shape, has_bn in zip(keys, _CONV_SHAPES, _HAS_BN):
        kw_, kg, kb, km, kv = jax.random.split(k, 5)
        fan_in = shape[1] * shape[2] * shape[3]
        w = jax.random.normal(kw_, shape, jnp.float32) / jnp.sqrt(fan_in)
        if has_bn:
            c = shape[0]
            bn = (
                1.0 + 0.1 * jax.random.normal(kg, (c,), jnp.float32),   # gamma
                0.1 * jax.random.normal(kb, (c,), jnp.float32),         # beta
                0.1 * jax.random.normal(km, (c,), jnp.float32),         # running mean
                jax.random.uniform(kv, (c,), jnp.float32, 0.5, 1.5),    # running var
            )
        else:
            bn = None
        params.append((w, bn))
    return params


def prepare_params(params):
    """Fold eval-mode BN into each conv, lay weights out as [K, 128] once."""
    prep = []
    for w, bn in params:
        cout, cin, kh, kw = w.shape
        if bn is not None:
            gamma, beta, mean, var = bn
            scale = gamma / jnp.sqrt(var + _BN_EPS)
            w = w * scale[:, None, None, None]
            bias = beta - mean * scale
        else:
            bias = jnp.zeros((cout,), jnp.float32)
        wk = w.transpose(2, 3, 1, 0).reshape(kh * kw * cin, cout)   # [K, Cout]
        wk = jnp.pad(wk, ((0, 0), (0, _N_PAD - cout)))              # lane-dense N
        b = jnp.pad(bias, (0, _N_PAD - cout)).reshape(1, _N_PAD)
        prep.append((wk, b))
    return prep


# --------------------------------------------------------------------------
# Net5 forward (Pallas path)
# --------------------------------------------------------------------------
def net5_forward(x_nchw, prep):
    x = x_nchw.transpose(0, 2, 3, 1)        # NHWC once, at the boundary
    B = x.shape[0]

    def conv(x, layer, pad):
        wk, b = prep[layer]
        p = _extract_patches(x, pad)                        # [B, Ho, Wo, K]
        _, Ho, Wo, K = p.shape
        y = _conv_relu(p.reshape(B * Ho * Wo, K), wk, b)    # [M, 128]
        c = _COUT[layer]
        return y[:, :c].reshape(B, Ho, Wo, c)

    def conv_pool(x, layer, pad):
        wk, b = prep[layer]
        p = _extract_patches(x, pad)                        # [B, Ho, Wo, K]
        _, Ho, Wo, K = p.shape
        Hp, Wp = Ho // 2, Wo // 2
        # q-major row blocks: pool = max over 4 contiguous blocks in-kernel.
        q = jnp.stack(
            [p[:, di::2, dj::2, :].reshape(B * Hp * Wp, K)
             for di in (0, 1) for dj in (0, 1)],
            axis=0,
        )                                                   # [4, Mp, K]
        y = _conv_relu_pool(q, wk, b)                       # [Mp, 128]
        c = _COUT[layer]
        return y[:, :c].reshape(B, Hp, Wp, c)

    x = conv(x, 0, pad=0)        # [B, 26, 26, 8]
    x = conv_pool(x, 1, pad=0)   # [B, 12, 12, 8]   (conv2 + pool1 fused)
    x = conv(x, 2, pad=1)        # [B, 12, 12, 16]
    x = conv_pool(x, 3, pad=0)   # [B, 5, 5, 8]     (conv4 + pool2 fused)
    x = conv(x, 4, pad=1)        # [B, 5, 5, 16]
    x = conv(x, 5, pad=0)        # [B, 3, 3, 8]
    # conv7 (1x1 spatial output) + log_softmax fused in one kernel.
    p = _extract_patches(x, 0).reshape(B, -1)               # [B, 72]
    return _conv_logsoftmax(p, prep[6][0], valid_n=10)      # [B, 10]


# --------------------------------------------------------------------------
# Pure-JAX reference (numerical sanity check)
# --------------------------------------------------------------------------
def net5_reference(x, params):
    def conv_bn_relu(x, w, bn, pad, relu):
        y = jax.lax.conv_general_dilated(
            x, w, (1, 1), [(pad, pad), (pad, pad)],
            dimension_numbers=("NCHW", "OIHW", "NCHW"),
            precision=jax.lax.Precision.HIGHEST)
        if bn is not None:
            gamma, beta, mean, var = bn
            scale = gamma / jnp.sqrt(var + _BN_EPS)
            y = y * scale[None, :, None, None] \
                + (beta - mean * scale)[None, :, None, None]
        if relu:
            y = jnp.maximum(y, 0.0)
        return y

    def pool(x):
        B, C, H, W = x.shape
        return jnp.max(x.reshape(B, C, H // 2, 2, W // 2, 2), axis=(3, 5))

    pads = [0, 0, 1, 0, 1, 0, 0]
    relus = [True, True, True, True, True, True, False]
    pool_after = [False, True, False, True, False, False, False]
    for (w, bn), pad, relu, do_pool in zip(params, pads, relus, pool_after):
        x = conv_bn_relu(x, w, bn, pad, relu)
        if do_pool:
            x = pool(x)
    x = x.reshape(-1, 10)
    return jax.nn.log_softmax(x, axis=-1)


if __name__ == "__main__":
    key = jax.random.PRNGKey(0)
    k_x, k_p = jax.random.split(key)
    # The trailing .view(-1, 10) requires a 1x1 spatial output at conv7,
    # i.e. 28x28 single-channel (MNIST-like) input.
    x = jax.random.normal(k_x, (2, 1, 28, 28), jnp.float32)
    params = init_params(k_p)

    # One-time weight folding / [K, 128] layout, hoisted off the forward path.
    prep = jax.tree_util.tree_map(lambda a: a, prepare_params(params))

    fwd = jax.jit(net5_forward)
    out = jax.block_until_ready(fwd(x, prep))
    ref = jax.block_until_ready(net5_reference(x, params))

    assert out.shape == (2, 10)
    assert bool(jnp.all(jnp.isfinite(out)))
    # Default (bf16 single-pass) MXU precision across 7 layers -> loose tol.
    assert jnp.allclose(out, ref, atol=5e-2, rtol=5e-2)
    print("KERNEL_OK")
</pallas_src>

<mosaic_0001>
module attributes {stable_mosaic.version = 11 : i64} {
  func.func @_conv_relu_kernel(%arg0: i32, %arg1: memref<512x9xf32, #tpu.memory_space<vmem>>, %arg2: memref<9x128xf32, #tpu.memory_space<vmem>>, %arg3: memref<1x128xf32, #tpu.memory_space<vmem>>, %arg4: memref<512x128xf32, #tpu.memory_space<vmem>>) attributes {dimension_semantics = [#tpu.dimension_semantics<parallel>], iteration_bounds = array<i64: 3>, scalar_prefetch = 0 : i64, scratch_operands = 0 : i64, tpu.core_type = #tpu.core_type<tc>, window_params = [{transform_indices = @transform_0, window_bounds = array<i64: 512, 9>}, {pipeline_mode = #tpu.pipeline_mode<synchronous>, transform_indices = @transform_1, window_bounds = array<i64: 9, 128>}, {pipeline_mode = #tpu.pipeline_mode<synchronous>, transform_indices = @transform_2, window_bounds = array<i64: 1, 128>}, {transform_indices = @transform_3, window_bounds = array<i64: 512, 128>}]} {
    %c0 = arith.constant 0 : index
    %c0_0 = arith.constant 0 : index
    %0 = vector.load %arg1[%c0, %c0_0] : memref<512x9xf32, #tpu.memory_space<vmem>>, vector<512x9xf32>
    %c0_1 = arith.constant 0 : index
    %c0_2 = arith.constant 0 : index
    %1 = vector.load %arg2[%c0_1, %c0_2] : memref<9x128xf32, #tpu.memory_space<vmem>>, vector<9x128xf32>
    %cst = arith.constant dense<0.000000e+00> : vector<512x128xf32>
    %2 = tpu.matmul %0, %1, %cst {dimension_numbers = #tpu.dot_dimension_numbers<[1], [0], [0], [1], [0, 0, 1, 1], [], []>} : vector<512x9xf32>, vector<9x128xf32>, vector<512x128xf32> -> vector<512x128xf32>
    %c0_3 = arith.constant 0 : index
    %c0_4 = arith.constant 0 : index
    %3 = vector.load %arg3[%c0_3, %c0_4] : memref<1x128xf32, #tpu.memory_space<vmem>>, vector<1x128xf32>
    %4 = vector.broadcast %3 : vector<1x128xf32> to vector<512x128xf32>
    %5 = arith.addf %2, %4 : vector<512x128xf32>
    %cst_5 = arith.constant 0.000000e+00 : f32
    %6 = vector.broadcast %cst_5 : f32 to vector<512x128xf32>
    %7 = arith.maximumf %5, %6 : vector<512x128xf32>
    %c0_6 = arith.constant 0 : index
    %c0_7 = arith.constant 0 : index
    %8 = vector.load %arg4[%c0_6, %c0_7] : memref<512x128xf32, #tpu.memory_space<vmem>>, vector<512x128xf32>
    tpu.vector_store %arg4[%c0_6, %c0_7], %7 {strides = array<i32>} : memref<512x128xf32, #tpu.memory_space<vmem>>, vector<512x128xf32>,
    return
  }
  func.func @transform_0(%arg0: i32) -> (i32, i32) {
    %c0_i32 = arith.constant 0 : i32
    %c0_i32_0 = arith.constant 0 : i32
    return %arg0, %c0_i32 : i32, i32
  }
  func.func @transform_1(%arg0: i32) -> (i32, i32) {
    %c0_i32 = arith.constant 0 : i32
    %c0_i32_0 = arith.constant 0 : i32
    %c0_i32_1 = arith.constant 0 : i32
    return %c0_i32, %c0_i32_0 : i32, i32
  }
  func.func @transform_2(%arg0: i32) -> (i32, i32) {
    %c0_i32 = arith.constant 0 : i32
    %c0_i32_0 = arith.constant 0 : i32
    %c0_i32_1 = arith.constant 0 : i32
    return %c0_i32, %c0_i32_0 : i32, i32
  }
  func.func @transform_3(%arg0: i32) -> (i32, i32) {
    %c0_i32 = arith.constant 0 : i32
    %c0_i32_0 = arith.constant 0 : i32
    return %arg0, %c0_i32 : i32, i32
  }
}

module attributes {stable_mosaic.version = 11 : i64} {
  func.func @_conv_relu_pool_kernel(%arg0: i32, %arg1: memref<4x288x72xf32, #tpu.memory_space<vmem>>, %arg2: memref<72x128xf32, #tpu.memory_space<vmem>>, %arg3: memref<1x128xf32, #tpu.memory_space<vmem>>, %arg4: memref<288x128xf32, #tpu.memory_space<vmem>>) attributes {dimension_semantics = [#tpu.dimension_semantics<parallel>], iteration_bounds = array<i64: 1>, scalar_prefetch = 0 : i64, scratch_operands = 0 : i64, tpu.core_type = #tpu.core_type<tc>, window_params = [{transform_indices = @transform_0, window_bounds = array<i64: 4, 288, 72>}, {pipeline_mode = #tpu.pipeline_mode<synchronous>, transform_indices = @transform_1, window_bounds = array<i64: 72, 128>}, {pipeline_mode = #tpu.pipeline_mode<synchronous>, transform_indices = @transform_2, window_bounds = array<i64: 1, 128>}, {transform_indices = @transform_3, window_bounds = array<i64: 288, 128>}]} {
    %c0 = arith.constant 0 : index
    %c0_0 = arith.constant 0 : index
    %0 = vector.load %arg2[%c0, %c0_0] : memref<72x128xf32, #tpu.memory_space<vmem>>, vector<72x128xf32>
    %c0_1 = arith.constant 0 : index
    %c0_2 = arith.constant 0 : index
    %1 = vector.load %arg3[%c0_1, %c0_2] : memref<1x128xf32, #tpu.memory_space<vmem>>, vector<1x128xf32>
    %c0_3 = arith.constant 0 : index
    %c0_4 = arith.constant 0 : index
    %c0_5 = arith.constant 0 : index
    %2 = vector.load %arg1[%c0_3, %c0_4, %c0_5] : memref<4x288x72xf32, #tpu.memory_space<vmem>>, vector<1x288x72xf32>
    %3 = vector.shape_cast %2 : vector<1x288x72xf32> to vector<288x72xf32>
    %cst = arith.constant dense<0.000000e+00> : vector<288x128xf32>
    %4 = tpu.matmul %3, %0, %cst {dimension_numbers = #tpu.dot_dimension_numbers<[1], [0], [0], [1], [0, 0, 1, 1], [], []>} : vector<288x72xf32>, vector<72x128xf32>, vector<288x128xf32> -> vector<288x128xf32>
    %5 = vector.broadcast %1 : vector<1x128xf32> to vector<288x128xf32>
    %6 = arith.addf %4, %5 : vector<288x128xf32>
    %cst_6 = arith.constant 0.000000e+00 : f32
    %7 = vector.broadcast %cst_6 : f32 to vector<288x128xf32>
    %8 = arith.maximumf %6, %7 : vector<288x128xf32>
    %c1 = arith.constant 1 : index
    %c0_7 = arith.constant 0 : index
    %c0_8 = arith.constant 0 : index
    %9 = vector.load %arg1[%c1, %c0_7, %c0_8] : memref<4x288x72xf32, #tpu.memory_space<vmem>>, vector<1x288x72xf32>
    %10 = vector.shape_cast %9 : vector<1x288x72xf32> to vector<288x72xf32>
    %cst_9 = arith.constant dense<0.000000e+00> : vector<288x128xf32>
    %11 = tpu.matmul %10, %0, %cst_9 {dimension_numbers = #tpu.dot_dimension_numbers<[1], [0], [0], [1], [0, 0, 1, 1], [], []>} : vector<288x72xf32>, vector<72x128xf32>, vector<288x128xf32> -> vector<288x128xf32>
    %12 = vector.broadcast %1 : vector<1x128xf32> to vector<288x128xf32>
    %13 = arith.addf %11, %12 : vector<288x128xf32>
    %cst_10 = arith.constant 0.000000e+00 : f32
    %14 = vector.broadcast %cst_10 : f32 to vector<288x128xf32>
    %15 = arith.maximumf %13, %14 : vector<288x128xf32>
    %16 = arith.maximumf %8, %15 : vector<288x128xf32>
    %c2 = arith.constant 2 : index
    %c0_11 = arith.constant 0 : index
    %c0_12 = arith.constant 0 : index
    %17 = vector.load %arg1[%c2, %c0_11, %c0_12] : memref<4x288x72xf32, #tpu.memory_space<vmem>>, vector<1x288x72xf32>
    %18 = vector.shape_cast %17 : vector<1x288x72xf32> to vector<288x72xf32>
    %cst_13 = arith.constant dense<0.000000e+00> : vector<288x128xf32>
    %19 = tpu.matmul %18, %0, %cst_13 {dimension_numbers = #tpu.dot_dimension_numbers<[1], [0], [0], [1], [0, 0, 1, 1], [], []>} : vector<288x72xf32>, vector<72x128xf32>, vector<288x128xf32> -> vector<288x128xf32>
    %20 = vector.broadcast %1 : vector<1x128xf32> to vector<288x128xf32>
    %21 = arith.addf %19, %20 : vector<288x128xf32>
    %cst_14 = arith.constant 0.000000e+00 : f32
    %22 = vector.broadcast %cst_14 : f32 to vector<288x128xf32>
    %23 = arith.maximumf %21, %22 : vector<288x128xf32>
    %24 = arith.maximumf %16, %23 : vector<288x128xf32>
    %c3 = arith.constant 3 : index
    %c0_15 = arith.constant 0 : index
    %c0_16 = arith.constant 0 : index
    %25 = vector.load %arg1[%c3, %c0_15, %c0_16] : memref<4x288x72xf32, #tpu.memory_space<vmem>>, vector<1x288x72xf32>
    %26 = vector.shape_cast %25 : vector<1x288x72xf32> to vector<288x72xf32>
    %cst_17 = arith.constant dense<0.000000e+00> : vector<288x128xf32>
    %27 = tpu.matmul %26, %0, %cst_17 {dimension_numbers = #tpu.dot_dimension_numbers<[1], [0], [0], [1], [0, 0, 1, 1], [], []>} : vector<288x72xf32>, vector<72x128xf32>, vector<288x128xf32> -> vector<288x128xf32>
    %28 = vector.broadcast %1 : vector<1x128xf32> to vector<288x128xf32>
    %29 = arith.addf %27, %28 : vector<288x128xf32>
    %cst_18 = arith.constant 0.000000e+00 : f32
    %30 = vector.broadcast %cst_18 : f32 to vector<288x128xf32>
    %31 = arith.maximumf %29, %30 : vector<288x128xf32>
    %32 = arith.maximumf %24, %31 : vector<288x128xf32>
    %c0_19 = arith.constant 0 : index
    %c0_20 = arith.constant 0 : index
    %33 = vector.load %arg4[%c0_19, %c0_20] : memref<288x128xf32, #tpu.memory_space<vmem>>, vector<288x128xf32>
    tpu.vector_store %arg4[%c0_19, %c0_20], %32 {strides = array<i32>} : memref<288x128xf32, #tpu.memory_space<vmem>>, vector<288x128xf32>,
    return
  }
  func.func @transform_0(%arg0: i32) -> (i32, i32, i32) {
    %c0_i32 = arith.constant 0 : i32
    %c0_i32_0 = arith.constant 0 : i32
    %c0_i32_1 = arith.constant 0 : i32
    return %c0_i32, %arg0, %c0_i32_0 : i32, i32, i32
  }
  func.func @transform_1(%arg0: i32) -> (i32, i32) {
    %c0_i32 = arith.constant 0 : i32
    %c0_i32_0 = arith.constant 0 : i32
    %c0_i32_1 = arith.constant 0 : i32
    return %c0_i32, %c0_i32_0 : i32, i32
  }
  func.func @transform_2(%arg0: i32) -> (i32, i32) {
    %c0_i32 = arith.constant 0 : i32
    %c0_i32_0 = arith.constant 0 : i32
    %c0_i32_1 = arith.constant 0 : i32
    return %c0_i32, %c0_i32_0 : i32, i32
  }
  func.func @transform_3(%arg0: i32) -> (i32, i32) {
    %c0_i32 = arith.constant 0 : i32
    %c0_i32_0 = arith.constant 0 : i32
    return %arg0, %c0_i32 : i32, i32
  }
}

module attributes {stable_mosaic.version = 11 : i64} {
  func.func @_conv_relu_kernel(%arg0: i32, %arg1: memref<288x72xf32, #tpu.memory_space<vmem>>, %arg2: memref<72x128xf32, #tpu.memory_space<vmem>>, %arg3: memref<1x128xf32, #tpu.memory_space<vmem>>, %arg4: memref<288x128xf32, #tpu.memory_space<vmem>>) attributes {dimension_semantics = [#tpu.dimension_semantics<parallel>], iteration_bounds = array<i64: 1>, scalar_prefetch = 0 : i64, scratch_operands = 0 : i64, tpu.core_type = #tpu.core_type<tc>, window_params = [{transform_indices = @transform_0, window_bounds = array<i64: 288, 72>}, {pipeline_mode = #tpu.pipeline_mode<synchronous>, transform_indices = @transform_1, window_bounds = array<i64: 72, 128>}, {pipeline_mode = #tpu.pipeline_mode<synchronous>, transform_indices = @transform_2, window_bounds = array<i64: 1, 128>}, {transform_indices = @transform_3, window_bounds = array<i64: 288, 128>}]} {
    %c0 = arith.constant 0 : index
    %c0_0 = arith.constant 0 : index
    %0 = vector.load %arg1[%c0, %c0_0] : memref<288x72xf32, #tpu.memory_space<vmem>>, vector<288x72xf32>
    %c0_1 = arith.constant 0 : index
    %c0_2 = arith.constant 0 : index
    %1 = vector.load %arg2[%c0_1, %c0_2] : memref<72x128xf32, #tpu.memory_space<vmem>>, vector<72x128xf32>
    %cst = arith.constant dense<0.000000e+00> : vector<288x128xf32>
    %2 = tpu.matmul %0, %1, %cst {dimension_numbers = #tpu.dot_dimension_numbers<[1], [0], [0], [1], [0, 0, 1, 1], [], []>} : vector<288x72xf32>, vector<72x128xf32>, vector<288x128xf32> -> vector<288x128xf32>
    %c0_3 = arith.constant 0 : index
    %c0_4 = arith.constant 0 : index
    %3 = vector.load %arg3[%c0_3, %c0_4] : memref<1x128xf32, #tpu.memory_space<vmem>>, vector<1x128xf32>
    %4 = vector.broadcast %3 : vector<1x128xf32> to vector<288x128xf32>
    %5 = arith.addf %2, %4 : vector<288x128xf32>
    %cst_5 = arith.constant 0.000000e+00 : f32
    %6 = vector.broadcast %cst_5 : f32 to vector<288x128xf32>
    %7 = arith.maximumf %5, %6 : vector<288x128xf32>
    %c0_6 = arith.constant 0 : index
    %c0_7 = arith.constant 0 : index
    %8 = vector.load %arg4[%c0_6, %c0_7] : memref<288x128xf32, #tpu.memory_space<vmem>>, vector<288x128xf32>
    tpu.vector_store %arg4[%c0_6, %c0_7], %7 {strides = array<i32>} : memref<288x128xf32, #tpu.memory_space<vmem>>, vector<288x128xf32>,
    return
  }
  func.func @transform_0(%arg0: i32) -> (i32, i32) {
    %c0_i32 = arith.constant 0 : i32
    %c0_i32_0 = arith.constant 0 : i32
    return %arg0, %c0_i32 : i32, i32
  }
  func.func @transform_1(%arg0: i32) -> (i32, i32) {
    %c0_i32 = arith.constant 0 : i32
    %c0_i32_0 = arith.constant 0 : i32
    %c0_i32_1 = arith.constant 0 : i32
    return %c0_i32, %c0_i32_0 : i32, i32
  }
  func.func @transform_2(%arg0: i32) -> (i32, i32) {
    %c0_i32 = arith.constant 0 : i32
    %c0_i32_0 = arith.constant 0 : i32
    %c0_i32_1 = arith.constant 0 : i32
    return %c0_i32, %c0_i32_0 : i32, i32
  }
  func.func @transform_3(%arg0: i32) -> (i32, i32) {
    %c0_i32 = arith.constant 0 : i32
    %c0_i32_0 = arith.constant 0 : i32
    return %arg0, %c0_i32 : i32, i32
  }
}

module attributes {stable_mosaic.version = 11 : i64} {
  func.func @_conv_relu_pool_kernel(%arg0: i32, %arg1: memref<4x56x144xf32, #tpu.memory_space<vmem>>, %arg2: memref<144x128xf32, #tpu.memory_space<vmem>>, %arg3: memref<1x128xf32, #tpu.memory_space<vmem>>, %arg4: memref<56x128xf32, #tpu.memory_space<vmem>>) attributes {dimension_semantics = [#tpu.dimension_semantics<parallel>], iteration_bounds = array<i64: 1>, scalar_prefetch = 0 : i64, scratch_operands = 0 : i64, tpu.core_type = #tpu.core_type<tc>, window_params = [{transform_indices = @transform_0, window_bounds = array<i64: 4, 56, 144>}, {pipeline_mode = #tpu.pipeline_mode<synchronous>, transform_indices = @transform_1, window_bounds = array<i64: 144, 128>}, {pipeline_mode = #tpu.pipeline_mode<synchronous>, transform_indices = @transform_2, window_bounds = array<i64: 1, 128>}, {transform_indices = @transform_3, window_bounds = array<i64: 56, 128>}]} {
    %c0 = arith.constant 0 : index
    %c0_0 = arith.constant 0 : index
    %0 = vector.load %arg2[%c0, %c0_0] : memref<144x128xf32, #tpu.memory_space<vmem>>, vector<144x128xf32>
    %c0_1 = arith.constant 0 : index
    %c0_2 = arith.constant 0 : index
    %1 = vector.load %arg3[%c0_1, %c0_2] : memref<1x128xf32, #tpu.memory_space<vmem>>, vector<1x128xf32>
    %c0_3 = arith.constant 0 : index
    %c0_4 = arith.constant 0 : index
    %c0_5 = arith.constant 0 : index
    %2 = vector.load %arg1[%c0_3, %c0_4, %c0_5] : memref<4x56x144xf32, #tpu.memory_space<vmem>>, vector<1x56x144xf32>
    %3 = vector.shape_cast %2 : vector<1x56x144xf32> to vector<56x144xf32>
    %cst = arith.constant dense<0.000000e+00> : vector<56x128xf32>
    %4 = tpu.matmul %3, %0, %cst {dimension_numbers = #tpu.dot_dimension_numbers<[1], [0], [0], [1], [0, 0, 1, 1], [], []>} : vector<56x144xf32>, vector<144x128xf32>, vector<56x128xf32> -> vector<56x128xf32>
    %5 = vector.broadcast %1 : vector<1x128xf32> to vector<56x128xf32>
    %6 = arith.addf %4, %5 : vector<56x128xf32>
    %cst_6 = arith.constant 0.000000e+00 : f32
    %7 = vector.broadcast %cst_6 : f32 to vector<56x128xf32>
    %8 = arith.maximumf %6, %7 : vector<56x128xf32>
    %c1 = arith.constant 1 : index
    %c0_7 = arith.constant 0 : index
    %c0_8 = arith.constant 0 : index
    %9 = vector.load %arg1[%c1, %c0_7, %c0_8] : memref<4x56x144xf32, #tpu.memory_space<vmem>>, vector<1x56x144xf32>
    %10 = vector.shape_cast %9 : vector<1x56x144xf32> to vector<56x144xf32>
    %cst_9 = arith.constant dense<0.000000e+00> : vector<56x128xf32>
    %11 = tpu.matmul %10, %0, %cst_9 {dimension_numbers = #tpu.dot_dimension_numbers<[1], [0], [0], [1], [0, 0, 1, 1], [], []>} : vector<56x144xf32>, vector<144x128xf32>, vector<56x128xf32> -> vector<56x128xf32>
    %12 = vector.broadcast %1 : vector<1x128xf32> to vector<56x128xf32>
    %13 = arith.addf %11, %12 : vector<56x128xf32>
    %cst_10 = arith.constant 0.000000e+00 : f32
    %14 = vector.broadcast %cst_10 : f32 to vector<56x128xf32>
    %15 = arith.maximumf %13, %14 : vector<56x128xf32>
    %16 = arith.maximumf %8, %15 : vector<56x128xf32>
    %c2 = arith.constant 2 : index
    %c0_11 = arith.constant 0 : index
    %c0_12 = arith.constant 0 : index
    %17 = vector.load %arg1[%c2, %c0_11, %c0_12] : memref<4x56x144xf32, #tpu.memory_space<vmem>>, vector<1x56x144xf32>
    %18 = vector.shape_cast %17 : vector<1x56x144xf32> to vector<56x144xf32>
    %cst_13 = arith.constant dense<0.000000e+00> : vector<56x128xf32>
    %19 = tpu.matmul %18, %0, %cst_13 {dimension_numbers = #tpu.dot_dimension_numbers<[1], [0], [0], [1], [0, 0, 1, 1], [], []>} : vector<56x144xf32>, vector<144x128xf32>, vector<56x128xf32> -> vector<56x128xf32>
    %20 = vector.broadcast %1 : vector<1x128xf32> to vector<56x128xf32>
    %21 = arith.addf %19, %20 : vector<56x128xf32>
    %cst_14 = arith.constant 0.000000e+00 : f32
    %22 = vector.broadcast %cst_14 : f32 to vector<56x128xf32>
    %23 = arith.maximumf %21, %22 : vector<56x128xf32>
    %24 = arith.maximumf %16, %23 : vector<56x128xf32>
    %c3 = arith.constant 3 : index
    %c0_15 = arith.constant 0 : index
    %c0_16 = arith.constant 0 : index
    %25 = vector.load %arg1[%c3, %c0_15, %c0_16] : memref<4x56x144xf32, #tpu.memory_space<vmem>>, vector<1x56x144xf32>
    %26 = vector.shape_cast %25 : vector<1x56x144xf32> to vector<56x144xf32>
    %cst_17 = arith.constant dense<0.000000e+00> : vector<56x128xf32>
    %27 = tpu.matmul %26, %0, %cst_17 {dimension_numbers = #tpu.dot_dimension_numbers<[1], [0], [0], [1], [0, 0, 1, 1], [], []>} : vector<56x144xf32>, vector<144x128xf32>, vector<56x128xf32> -> vector<56x128xf32>
    %28 = vector.broadcast %1 : vector<1x128xf32> to vector<56x128xf32>
    %29 = arith.addf %27, %28 : vector<56x128xf32>
    %cst_18 = arith.constant 0.000000e+00 : f32
    %30 = vector.broadcast %cst_18 : f32 to vector<56x128xf32>
    %31 = arith.maximumf %29, %30 : vector<56x128xf32>
    %32 = arith.maximumf %24, %31 : vector<56x128xf32>
    %c0_19 = arith.constant 0 : index
    %c0_20 = arith.constant 0 : index
    %33 = vector.load %arg4[%c0_19, %c0_20] : memref<56x128xf32, #tpu.memory_space<vmem>>, vector<56x128xf32>
    tpu.vector_store %arg4[%c0_19, %c0_20], %32 {strides = array<i32>} : memref<56x128xf32, #tpu.memory_space<vmem>>, vector<56x128xf32>,
    return
  }
  func.func @transform_0(%arg0: i32) -> (i32, i32, i32) {
    %c0_i32 = arith.constant 0 : i32
    %c0_i32_0 = arith.constant 0 : i32
    %c0_i32_1 = arith.constant 0 : i32
    return %c0_i32, %arg0, %c0_i32_0 : i32, i32, i32
  }
  func.func @transform_1(%arg0: i32) -> (i32, i32) {
    %c0_i32 = arith.constant 0 : i32
    %c0_i32_0 = arith.constant 0 : i32
    %c0_i32_1 = arith.constant 0 : i32
    return %c0_i32, %c0_i32_0 : i32, i32
  }
  func.func @transform_2(%arg0: i32) -> (i32, i32) {
    %c0_i32 = arith.constant 0 : i32
    %c0_i32_0 = arith.constant 0 : i32
    %c0_i32_1 = arith.constant 0 : i32
    return %c0_i32, %c0_i32_0 : i32, i32
  }
  func.func @transform_3(%arg0: i32) -> (i32, i32) {
    %c0_i32 = arith.constant 0 : i32
    %c0_i32_0 = arith.constant 0 : i32
    return %arg0, %c0_i32 : i32, i32
  }
}

module attributes {stable_mosaic.version = 11 : i64} {
  func.func @_conv_relu_kernel(%arg0: i32, %arg1: memref<56x72xf32, #tpu.memory_space<vmem>>, %arg2: memref<72x128xf32, #tpu.memory_space<vmem>>, %arg3: memref<1x128xf32, #tpu.memory_space<vmem>>, %arg4: memref<56x128xf32, #tpu.memory_space<vmem>>) attributes {dimension_semantics = [#tpu.dimension_semantics<parallel>], iteration_bounds = array<i64: 1>, scalar_prefetch = 0 : i64, scratch_operands = 0 : i64, tpu.core_type = #tpu.core_type<tc>, window_params = [{transform_indices = @transform_0, window_bounds = array<i64: 56, 72>}, {pipeline_mode = #tpu.pipeline_mode<synchronous>, transform_indices = @transform_1, window_bounds = array<i64: 72, 128>}, {pipeline_mode = #tpu.pipeline_mode<synchronous>, transform_indices = @transform_2, window_bounds = array<i64: 1, 128>}, {transform_indices = @transform_3, window_bounds = array<i64: 56, 128>}]} {
    %c0 = arith.constant 0 : index
    %c0_0 = arith.constant 0 : index
    %0 = vector.load %arg1[%c0, %c0_0] : memref<56x72xf32, #tpu.memory_space<vmem>>, vector<56x72xf32>
    %c0_1 = arith.constant 0 : index
    %c0_2 = arith.constant 0 : index
    %1 = vector.load %arg2[%c0_1, %c0_2] : memref<72x128xf32, #tpu.memory_space<vmem>>, vector<72x128xf32>
    %cst = arith.constant dense<0.000000e+00> : vector<56x128xf32>
    %2 = tpu.matmul %0, %1, %cst {dimension_numbers = #tpu.dot_dimension_numbers<[1], [0], [0], [1], [0, 0, 1, 1], [], []>} : vector<56x72xf32>, vector<72x128xf32>, vector<56x128xf32> -> vector<56x128xf32>
    %c0_3 = arith.constant 0 : index
    %c0_4 = arith.constant 0 : index
    %3 = vector.load %arg3[%c0_3, %c0_4] : memref<1x128xf32, #tpu.memory_space<vmem>>, vector<1x128xf32>
    %4 = vector.broadcast %3 : vector<1x128xf32> to vector<56x128xf32>
    %5 = arith.addf %2, %4 : vector<56x128xf32>
    %cst_5 = arith.constant 0.000000e+00 : f32
    %6 = vector.broadcast %cst_5 : f32 to vector<56x128xf32>
    %7 = arith.maximumf %5, %6 : vector<56x128xf32>
    %c0_6 = arith.constant 0 : index
    %c0_7 = arith.constant 0 : index
    %8 = vector.load %arg4[%c0_6, %c0_7] : memref<56x128xf32, #tpu.memory_space<vmem>>, vector<56x128xf32>
    tpu.vector_store %arg4[%c0_6, %c0_7], %7 {strides = array<i32>} : memref<56x128xf32, #tpu.memory_space<vmem>>, vector<56x128xf32>,
    return
  }
  func.func @transform_0(%arg0: i32) -> (i32, i32) {
    %c0_i32 = arith.constant 0 : i32
    %c0_i32_0 = arith.constant 0 : i32
    return %arg0, %c0_i32 : i32, i32
  }
  func.func @transform_1(%arg0: i32) -> (i32, i32) {
    %c0_i32 = arith.constant 0 : i32
    %c0_i32_0 = arith.constant 0 : i32
    %c0_i32_1 = arith.constant 0 : i32
    return %c0_i32, %c0_i32_0 : i32, i32
  }
  func.func @transform_2(%arg0: i32) -> (i32, i32) {
    %c0_i32 = arith.constant 0 : i32
    %c0_i32_0 = arith.constant 0 : i32
    %c0_i32_1 = arith.constant 0 : i32
    return %c0_i32, %c0_i32_0 : i32, i32
  }
  func.func @transform_3(%arg0: i32) -> (i32, i32) {
    %c0_i32 = arith.constant 0 : i32
    %c0_i32_0 = arith.constant 0 : i32
    return %arg0, %c0_i32 : i32, i32
  }
}

module attributes {stable_mosaic.version = 11 : i64} {
  func.func @_conv_logsoftmax_kernel(%arg0: memref<2x72xf32, #tpu.memory_space<vmem>>, %arg1: memref<72x128xf32, #tpu.memory_space<vmem>>, %arg2: memref<2x128xf32, #tpu.memory_space<vmem>>) attributes {dimension_semantics = [], scalar_prefetch = 0 : i64, scratch_operands = 0 : i64, tpu.core_type = #tpu.core_type<tc>} {
    %c0 = arith.constant 0 : index
    %c0_0 = arith.constant 0 : index
    %0 = vector.load %arg0[%c0, %c0_0] : memref<2x72xf32, #tpu.memory_space<vmem>>, vector<2x72xf32>
    %c0_1 = arith.constant 0 : index
    %c0_2 = arith.constant 0 : index
    %1 = vector.load %arg1[%c0_1, %c0_2] : memref<72x128xf32, #tpu.memory_space<vmem>>, vector<72x128xf32>
    %cst = arith.constant dense<0.000000e+00> : vector<2x128xf32>
    %2 = tpu.matmul %0, %1, %cst {dimension_numbers = #tpu.dot_dimension_numbers<[1], [0], [0], [1], [0, 0, 1, 1], [], []>} : vector<2x72xf32>, vector<72x128xf32>, vector<2x128xf32> -> vector<2x128xf32>
    %3 = tpu.iota {dimensions = array<i32: 1>} : vector<2x128xi32>
    %c10_i32 = arith.constant 10 : i32
    %4 = vector.broadcast %c10_i32 : i32 to vector<2x128xi32>
    %5 = arith.cmpi slt, %3, %4 : vector<2x128xi32>
    %cst_3 = arith.constant -1.000000e+30 : f32
    %6 = vector.broadcast %cst_3 : f32 to vector<2x128xf32>
    %7 = arith.select %5, %2, %6 : vector<2x128xi1>, vector<2x128xf32>
    %cst_4 = arith.constant dense<0xFF800000> : vector<2xf32>
    %8 = vector.multi_reduction <maximumf>, %7, %cst_4 [1] : vector<2x128xf32> to vector<2xf32>
    %9 = vector.shape_cast %8 : vector<2xf32> to vector<2x1xf32>
    %10 = vector.broadcast %9 : vector<2x1xf32> to vector<2x128xf32>
    %11 = arith.subf %7, %10 : vector<2x128xf32>
    %12 = math.exp %11 : vector<2x128xf32>
    %cst_5 = arith.constant dense<0.000000e+00> : vector<2xf32>
    %13 = vector.multi_reduction <add>, %12, %cst_5 [1] : vector<2x128xf32> to vector<2xf32>
    %14 = vector.shape_cast %13 : vector<2xf32> to vector<2x1xf32>
    %15 = math.log %14 : vector<2x1xf32>
    %16 = vector.broadcast %15 : vector<2x1xf32> to vector<2x128xf32>
    %17 = arith.subf %11, %16 : vector<2x128xf32>
    %c0_6 = arith.constant 0 : index
    %c0_7 = arith.constant 0 : index
    %18 = vector.load %arg2[%c0_6, %c0_7] : memref<2x128xf32, #tpu.memory_space<vmem>>, vector<2x128xf32>
    tpu.vector_store %arg2[%c0_6, %c0_7], %17 {strides = array<i32>} : memref<2x128xf32, #tpu.memory_space<vmem>>, vector<2x128xf32>,
    return
  }
}

module attributes {stable_mosaic.version = 11 : i64} {
  func.func @_conv_relu_kernel(%arg0: i32, %arg1: memref<24x144xf32, #tpu.memory_space<vmem>>, %arg2: memref<144x128xf32, #tpu.memory_space<vmem>>, %arg3: memref<1x128xf32, #tpu.memory_space<vmem>>, %arg4: memref<24x128xf32, #tpu.memory_space<vmem>>) attributes {dimension_semantics = [#tpu.dimension_semantics<parallel>], iteration_bounds = array<i64: 1>, scalar_prefetch = 0 : i64, scratch_operands = 0 : i64, tpu.core_type = #tpu.core_type<tc>, window_params = [{transform_indices = @transform_0, window_bounds = array<i64: 24, 144>}, {pipeline_mode = #tpu.pipeline_mode<synchronous>, transform_indices = @transform_1, window_bounds = array<i64: 144, 128>}, {pipeline_mode = #tpu.pipeline_mode<synchronous>, transform_indices = @transform_2, window_bounds = array<i64: 1, 128>}, {transform_indices = @transform_3, window_bounds = array<i64: 24, 128>}]} {
    %c0 = arith.constant 0 : index
    %c0_0 = arith.constant 0 : index
    %0 = vector.load %arg1[%c0, %c0_0] : memref<24x144xf32, #tpu.memory_space<vmem>>, vector<24x144xf32>
    %c0_1 = arith.constant 0 : index
    %c0_2 = arith.constant 0 : index
    %1 = vector.load %arg2[%c0_1, %c0_2] : memref<144x128xf32, #tpu.memory_space<vmem>>, vector<144x128xf32>
    %cst = arith.constant dense<0.000000e+00> : vector<24x128xf32>
    %2 = tpu.matmul %0, %1, %cst {dimension_numbers = #tpu.dot_dimension_numbers<[1], [0], [0], [1], [0, 0, 1, 1], [], []>} : vector<24x144xf32>, vector<144x128xf32>, vector<24x128xf32> -> vector<24x128xf32>
    %c0_3 = arith.constant 0 : index
    %c0_4 = arith.constant 0 : index
    %3 = vector.load %arg3[%c0_3, %c0_4] : memref<1x128xf32, #tpu.memory_space<vmem>>, vector<1x128xf32>
    %4 = vector.broadcast %3 : vector<1x128xf32> to vector<24x128xf32>
    %5 = arith.addf %2, %4 : vector<24x128xf32>
    %cst_5 = arith.constant 0.000000e+00 : f32
    %6 = vector.broadcast %cst_5 : f32 to vector<24x128xf32>
    %7 = arith.maximumf %5, %6 : vector<24x128xf32>
    %c0_6 = arith.constant 0 : index
    %c0_7 = arith.constant 0 : index
    %8 = vector.load %arg4[%c0_6, %c0_7] : memref<24x128xf32, #tpu.memory_space<vmem>>, vector<24x128xf32>
    tpu.vector_store %arg4[%c0_6, %c0_7], %7 {strides = array<i32>} : memref<24x128xf32, #tpu.memory_space<vmem>>, vector<24x128xf32>,
    return
  }
  func.func @transform_0(%arg0: i32) -> (i32, i32) {
    %c0_i32 = arith.constant 0 : i32
    %c0_i32_0 = arith.constant 0 : i32
    return %arg0, %c0_i32 : i32, i32
  }
  func.func @transform_1(%arg0: i32) -> (i32, i32) {
    %c0_i32 = arith.constant 0 : i32
    %c0_i32_0 = arith.constant 0 : i32
    %c0_i32_1 = arith.constant 0 : i32
    return %c0_i32, %c0_i32_0 : i32, i32
  }
  func.func @transform_2(%arg0: i32) -> (i32, i32) {
    %c0_i32 = arith.constant 0 : i32
    %c0_i32_0 = arith.constant 0 : i32
    %c0_i32_1 = arith.constant 0 : i32
    return %c0_i32, %c0_i32_0 : i32, i32
  }
  func.func @transform_3(%arg0: i32) -> (i32, i32) {
    %c0_i32 = arith.constant 0 : i32
    %c0_i32_0 = arith.constant 0 : i32
    return %arg0, %c0_i32 : i32, i32
  }
}

</mosaic_0001>

<llo_original>
// kernel: net5_forward.7
$region0: #{net5_forward.7}
  #allocation0 [shape = 'u32[]', space=smem, size = 0x4, offset = 0x4, fixed_abs, tag = 'smem constant byte address 0x4 - core index']
  #allocation1 [shape = 'u32[144,128]{1,0:T(1,128)}', space=vmem, size = 0x12000, scoped, tag = 'internal scratch']
  %s0 = inlined_call_operand.vmem [shape: f32[1536,9], index: 0, kind: input, shape index: {}]
  %s1 = inlined_call_operand.vmem [shape: f32[9,128], index: 1, kind: input, shape index: {}]
  %s2 = inlined_call_operand.vmem [shape: f32[1,128], index: 2, kind: input, shape index: {}]
  %s3 = inlined_call_operand.vmem [shape: f32[1536,128], index: 3, kind: output, shape index: {}]
  %s4 = sld [smem:[#allocation0]]
  $region45: #{net5_forward.7} parent=0
    _
  %s6 = ssub.s32 1, %s4
  %s7 = scalar_select 0, %s6, %s4
  loop: start=0, step=1, limit=5
  $region2: #{net5_forward.7} parent=0 // loop_pre_header
    _
  $region3: #{net5_forward.7} parent=0 // loop_header
    %s9 = sphi 0, %s13
    %p10 = scmp.ge.s32.totalorder %s9, 5
    %s19 = sphi 0, %s21
    %s22 = sphi 0, %s19
    %s23 = sphi 0, %s22
    %s39 = sphi 0, %s23
    %s43 = sphi 0, %s43
    %s45 = sphi 0, %s43
    %s46 = sphi 0, %s45
    %s60 = sphi 0, %s46
    %s64 = sphi 0, %s64
    %s66 = sphi 0, %s64
    %s67 = sphi 0, %s66
    %s81 = sphi 0, %s67
    %s87 = sphi 0, %s89
    %s90 = sphi 0, %s87
    %s91 = sphi 0, %s90
    %s107 = sphi 0, %s91
  $region4: #{net5_forward.7} parent=0 // loop_header_branch
    %12 = sbr.rel (%p10) target = $region8
  $region5: #{net5_forward.7} parent=0 // loop_body
    %s14 = ssub.s32 %s9, 1
    %s15 = ssub.s32 %s9, 2
    %s16 = sadd.s32 %s9, 1
    %s17 = ssub.s32 %s9, %s16
    %p18 = scmp.eq.s32.totalorder %s17, 0
    %s20 = sadd.s32 %s19, 1
    %s21 = scalar_select %p18, %s19, %s20
    %p24 = pneg %p18
    %p25 = scmp.eq.s32.totalorder %s9, 2
    %p26 = por %p24, %p25
    %p27 = scmp.ne.s32.totalorder %s19, %s22
    %p28 = scmp.eq.s32.totalorder %s9, 0
    %p29 = por %p27, %p28
    %p30 = scmp.ne.s32.totalorder %s19, %s22
    %p31 = scmp.eq.s32.totalorder %s14, 2
    %p32 = por %p30, %p31
    %p33 = scmp.ne.s32.totalorder %s22, %s23
    %p34 = scmp.eq.s32.totalorder %s14, 0
    %p35 = por %p33, %p34
    %p36 = scmp.ne.s32.totalorder %s22, %s23
    %p37 = scmp.eq.s32.totalorder %s15, 2
    %p38 = por %p36, %p37
    %p40 = scmp.ne.s32.totalorder %s23, %s39
    %p41 = scmp.eq.s32.totalorder %s15, 0
    %p42 = por %p40, %p41
    %s44 = sadd.s32 %s43, 1
    %p47 = scmp.eq.s32.totalorder %s9, 2
    %p48 = scmp.ne.s32.totalorder %s43, %s45
    %p49 = scmp.eq.s32.totalorder %s9, 0
    %p50 = por %p48, %p49
    %p51 = scmp.ne.s32.totalorder %s43, %s45
    %p52 = scmp.eq.s32.totalorder %s14, 2
    %p53 = por %p51, %p52
    %p54 = scmp.ne.s32.totalorder %s45, %s46
    %p55 = scmp.eq.s32.totalorder %s14, 0
    %p56 = por %p54, %p55
    %p57 = scmp.ne.s32.totalorder %s45, %s46
    %p58 = scmp.eq.s32.totalorder %s15, 2
    %p59 = por %p57, %p58
    %p61 = scmp.ne.s32.totalorder %s46, %s60
    %p62 = scmp.eq.s32.totalorder %s15, 0
    %p63 = por %p61, %p62
    %s65 = sadd.s32 %s64, 1
    %p68 = scmp.eq.s32.totalorder %s9, 2
    %p69 = scmp.ne.s32.totalorder %s64, %s66
    %p70 = scmp.eq.s32.totalorder %s9, 0
    %p71 = por %p69, %p70
    %p72 = scmp.ne.s32.totalorder %s64, %s66
    %p73 = scmp.eq.s32.totalorder %s14, 2
    %p74 = por %p72, %p73
    %p75 = scmp.ne.s32.totalorder %s66, %s67
    %p76 = scmp.eq.s32.totalorder %s14, 0
    %p77 = por %p75, %p76
    %p78 = scmp.ne.s32.totalorder %s66, %s67
    %p79 = scmp.eq.s32.totalorder %s15, 2
    %p80 = por %p78, %p79
    %p82 = scmp.ne.s32.totalorder %s67, %s81
    %p83 = scmp.eq.s32.totalorder %s15, 0
    %p84 = por %p82, %p83
    %s85 = ssub.s32 %s9, %s16
    %p86 = scmp.eq.s32.totalorder %s85, 0
    %s88 = sadd.s32 %s87, 1
    %s89 = scalar_select %p86, %s87, %s88
    %p92 = pneg %p86
    %p93 = scmp.eq.s32.totalorder %s9, 2
    %p94 = por %p92, %p93
    %p95 = scmp.ne.s32.totalorder %s87, %s90
    %p96 = scmp.eq.s32.totalorder %s9, 0
    %p97 = por %p95, %p96
    %p98 = scmp.ne.s32.totalorder %s87, %s90
    %p99 = scmp.eq.s32.totalorder %s14, 2
    %p100 = por %p98, %p99
    %p101 = scmp.ne.s32.totalorder %s90, %s91
    %p102 = scmp.eq.s32.totalorder %s14, 0
    %p103 = por %p101, %p102
    %p104 = scmp.ne.s32.totalorder %s90, %s91
    %p105 = scmp.eq.s32.totalorder %s15, 2
    %p106 = por %p104, %p105
    %p108 = scmp.ne.s32.totalorder %s91, %s107
    %p109 = scmp.eq.s32.totalorder %s15, 0
    %p110 = por %p108, %p109
    %p111 = scmp.le.s32.totalorder 1, %s9
    %p112 = scmp.lt.s32.totalorder %s9, 4
    %p113 = pnand %p111, %p112
    %p114 = pneg %p113
    // Predicated region
    $region9: #{net5_forward.7} parent=5 // pred_check
      _
    $region10: #{net5_forward.7} parent=5 // pred_check_branch
      %116 = sbr.rel (%p113) target = $region12
    $region11: #{net5_forward.7} parent=5 // pred_region
      %s117 = ssub.s32 %s9, 1
      // Predicated region
      $region13: #{net5_forward.7} parent=11 // pred_check
        %p118 = pneg %p56
      $region14: #{net5_forward.7} parent=11 // pred_check_branch
        %120 = sbr.rel (%p118) target = $region16
      $region15: #{net5_forward.7} parent=11 // pred_region
        _
      $region16: #{net5_forward.7} parent=11 // pred_fallthru
        _
      // Predicated region
      $region17: #{net5_forward.7} parent=11 // pred_check
        %p121 = pneg %p77
      $region18: #{net5_forward.7} parent=11 // pred_check_branch
        %123 = sbr.rel (%p121) target = $region20
      $region19: #{net5_forward.7} parent=11 // pred_region
        _
      $region20: #{net5_forward.7} parent=11 // pred_fallthru
        _
    $region12: #{net5_forward.7} parent=5 // pred_fallthru
      _
    %p124 = scmp.lt.s32.totalorder %s9, 3
    // Predicated region
    $region21: #{net5_forward.7} parent=5 // pred_check
      %p125 = pneg %p124
    $region22: #{net5_forward.7} parent=5 // pred_check_branch
      %127 = sbr.rel (%p125) target = $region24
    $region23: #{net5_forward.7} parent=5 // pred_region
      // Predicated region
      $region25: #{net5_forward.7} parent=23 // pred_check
        %p128 = pneg %p29
      $region26: #{net5_forward.7} parent=23 // pred_check_branch
        %130 = sbr.rel (%p128) target = $region28
      $region27: #{net5_forward.7} parent=23 // pred_region
        %s131 = smul.u32 64, %s9
        %p132 = scmp.lt.s32.totalorder %s131, 191
        %s133 = scalar_select %p132, %s131, 191
        %s134 = smul.addr %s133, 8
        %s135 = scalar_lea.vmem %s0, %s134
        %s136 = smul.u32 64, %s9
      $region28: #{net5_forward.7} parent=23 // pred_fallthru
        _
    $region24: #{net5_forward.7} parent=5 // pred_fallthru
      _
    %p137 = scmp.le.s32.totalorder 1, %s9
    %p138 = scmp.lt.s32.totalorder %s9, 4
    %p139 = pnand %p137, %p138
    %p140 = pneg %p139
    // Predicated region
    $region29: #{net5_forward.7} parent=5 // pred_check
      _
    $region30: #{net5_forward.7} parent=5 // pred_check_branch
      %142 = sbr.rel (%p139) target = $region32
    $region31: #{net5_forward.7} parent=5 // pred_region
      %s143 = ssub.s32 %s9, 1
      %s144 = smul.u32 64, %s14
      %p145 = scmp.lt.s32.totalorder %s144, 191
      %s146 = scalar_select %p145, %s144, 191
      %s147 = smul.addr %s146, 8
      %s148 = scalar_lea.vmem %s0, %s147
      %p149 = pneg %p35
      %p150 = pneg %p32
      %p151 = pneg %p56
      %p152 = pneg %p53
      %p153 = pneg %p77
      %p154 = pneg %p74
      %p155 = pneg %p103
      %p156 = pneg %p100
      %s157 = smul.u32 64, %s14
      %p158 = scmp.lt.s32.totalorder %s157, 191
      %s159 = scalar_select %p158, %s157, 191
      %s160 = smul.addr %s159, 8
      %s161 = scalar_lea.vmem %s3, %s160
      %s162 = smul.u32 64, %s14
      %p163 = scmp.lt.s32.totalorder %s162, 191
      %s164 = scalar_select %p163, %s162, 191
      %s165 = smul.addr %s164, 8
      %s166 = scalar_lea.vmem %s0, %s165
      %s167 = smul.u32 64, %s14
      %s168 = smul.u32 64, %s14
      %p169 = scmp.lt.s32.totalorder %s168, 191
      %s170 = scalar_select %p169, %s168, 191
      %s171 = smul.addr %s170, 8
      %s172 = scalar_lea.vmem %s3, %s171
      %s173 = smul.u32 64, %s14
      %v174 = vld [vmem:[%s166] sm:$0xff]
      %v175 = vld [vmem:[%s166 + $0x8] sm:$0xff]
      %v176 = vld [vmem:[%s166 + $0x10] sm:$0xff]
      %v177 = vld [vmem:[%s166 + $0x18] sm:$0xff]
      %v178 = vld [vmem:[%s166 + $0x20] sm:$0xff]
      %v179 = vld [vmem:[%s166 + $0x28] sm:$0xff]
      %v180 = vld [vmem:[%s166 + $0x30] sm:$0xff]
      %v181 = vld [vmem:[%s166 + $0x38] sm:$0xff]
      %v182 = vld [vmem:[%s166 + $0x40] sm:$0xff]
      %v183 = vld [vmem:[%s166 + $0x48] sm:$0xff]
      %v184 = vld [vmem:[%s166 + $0x50] sm:$0xff]
      %v185 = vld [vmem:[%s166 + $0x58] sm:$0xff]
      %v186 = vld [vmem:[%s166 + $0x60] sm:$0xff]
      %v187 = vld [vmem:[%s166 + $0x68] sm:$0xff]
      %v188 = vld [vmem:[%s166 + $0x70] sm:$0xff]
      %v189 = vld [vmem:[%s166 + $0x78] sm:$0xff]
      %v190 = vld [vmem:[%s166 + $0x80] sm:$0xff]
      %v191 = vld [vmem:[%s166 + $0x88] sm:$0xff]
      %v192 = vld [vmem:[%s166 + $0x90] sm:$0xff]
      %v193 = vld [vmem:[%s166 + $0x98] sm:$0xff]
      %v194 = vld [vmem:[%s166 + $0xa0] sm:$0xff]
      %v195 = vld [vmem:[%s166 + $0xa8] sm:$0xff]
      %v196 = vld [vmem:[%s166 + $0xb0] sm:$0xff]
      %v197 = vld [vmem:[%s166 + $0xb8] sm:$0xff]
      %v198 = vld [vmem:[%s166 + $0xc0] sm:$0xff]
      %v199 = vld [vmem:[%s166 + $0xc8] sm:$0xff]
      %v200 = vld [vmem:[%s166 + $0xd0] sm:$0xff]
      %v201 = vld [vmem:[%s166 + $0xd8] sm:$0xff]
      %v202 = vld [vmem:[%s166 + $0xe0] sm:$0xff]
      %v203 = vld [vmem:[%s166 + $0xe8] sm:$0xff]
      %v204 = vld [vmem:[%s166 + $0xf0] sm:$0xff]
      %v205 = vld [vmem:[%s166 + $0xf8] sm:$0xff]
      %v206 = vld [vmem:[%s166 + $0x100] sm:$0xff]
      %v207 = vld [vmem:[%s166 + $0x108] sm:$0xff]
      %v208 = vld [vmem:[%s166 + $0x110] sm:$0xff]
      %v209 = vld [vmem:[%s166 + $0x118] sm:$0xff]
      %v210 = vld [vmem:[%s166 + $0x120] sm:$0xff]
      %v211 = vld [vmem:[%s166 + $0x128] sm:$0xff]
      %v212 = vld [vmem:[%s166 + $0x130] sm:$0xff]
      %v213 = vld [vmem:[%s166 + $0x138] sm:$0xff]
      %v214 = vld [vmem:[%s166 + $0x140] sm:$0xff]
      %v215 = vld [vmem:[%s166 + $0x148] sm:$0xff]
      %v216 = vld [vmem:[%s166 + $0x150] sm:$0xff]
      %v217 = vld [vmem:[%s166 + $0x158] sm:$0xff]
      %v218 = vld [vmem:[%s166 + $0x160] sm:$0xff]
      %v219 = vld [vmem:[%s166 + $0x168] sm:$0xff]
      %v220 = vld [vmem:[%s166 + $0x170] sm:$0xff]
      %v221 = vld [vmem:[%s166 + $0x178] sm:$0xff]
      %v222 = vld [vmem:[%s166 + $0x180] sm:$0xff]
      %v223 = vld [vmem:[%s166 + $0x188] sm:$0xff]
      %v224 = vld [vmem:[%s166 + $0x190] sm:$0xff]
      %v225 = vld [vmem:[%s166 + $0x198] sm:$0xff]
      %v226 = vld [vmem:[%s166 + $0x1a0] sm:$0xff]
      %v227 = vld [vmem:[%s166 + $0x1a8] sm:$0xff]
      %v228 = vld [vmem:[%s166 + $0x1b0] sm:$0xff]
      %v229 = vld [vmem:[%s166 + $0x1b8] sm:$0xff]
      %v230 = vld [vmem:[%s166 + $0x1c0] sm:$0xff]
      %v231 = vld [vmem:[%s166 + $0x1c8] sm:$0xff]
      %v232 = vld [vmem:[%s166 + $0x1d0] sm:$0xff]
      %v233 = vld [vmem:[%s166 + $0x1d8] sm:$0xff]
      %v234 = vld [vmem:[%s166 + $0x1e0] sm:$0xff]
      %v235 = vld [vmem:[%s166 + $0x1e8] sm:$0xff]
      %v236 = vld [vmem:[%s166 + $0x1f0] sm:$0xff]
      %v237 = vld [vmem:[%s166 + $0x1f8] sm:$0xff]
      %v238 = vld [vmem:[%s1] sm:$0xff]
      %v239 = vld [vmem:[%s1 + $0x8] sm:$0x1]
      %v240 = vld [vmem:[%s2] sm:$0x1]
      %v242 = vlaneseq
      %v243 = vshrl.u32 %v242, 7
      %v244 = vsub.s32 0, %v243
      %v245 = vrot.slane %v240, %v244
      %vm247 = vcmask 72704
      %v249 = vsel %vm247, %v174, 0
      %v252 = vsel %vm247, %v175, 0
      %v255 = vsel %vm247, %v176, 0
      %v258 = vsel %vm247, %v177, 0
      %v261 = vsel %vm247, %v178, 0
      %v264 = vsel %vm247, %v179, 0
      %v267 = vsel %vm247, %v180, 0
      %v270 = vsel %vm247, %v181, 0
      %v273 = vsel %vm247, %v182, 0
      %v276 = vsel %vm247, %v183, 0
      %v279 = vsel %vm247, %v184, 0
      %v282 = vsel %vm247, %v185, 0
      %v285 = vsel %vm247, %v186, 0
      %v288 = vsel %vm247, %v187, 0
      %v291 = vsel %vm247, %v188, 0
      %v294 = vsel %vm247, %v189, 0
      %v297 = vsel %vm247, %v190, 0
      %v300 = vsel %vm247, %v191, 0
      %v303 = vsel %vm247, %v192, 0
      %v306 = vsel %vm247, %v193, 0
      %v309 = vsel %vm247, %v194, 0
      %v312 = vsel %vm247, %v195, 0
      %v315 = vsel %vm247, %v196, 0
      %v318 = vsel %vm247, %v197, 0
      %v321 = vsel %vm247, %v198, 0
      %v324 = vsel %vm247, %v199, 0
      %v327 = vsel %vm247, %v200, 0
      %v330 = vsel %vm247, %v201, 0
      %v333 = vsel %vm247, %v202, 0
      %v336 = vsel %vm247, %v203, 0
      %v339 = vsel %vm247, %v204, 0
      %v342 = vsel %vm247, %v205, 0
      %v345 = vsel %vm247, %v206, 0
      %v348 = vsel %vm247, %v207, 0
      %v351 = vsel %vm247, %v208, 0
      %v354 = vsel %vm247, %v209, 0
      %v357 = vsel %vm247, %v210, 0
      %v360 = vsel %vm247, %v211, 0
      %v363 = vsel %vm247, %v212, 0
      %v366 = vsel %vm247, %v213, 0
      %v369 = vsel %vm247, %v214, 0
      %v372 = vsel %vm247, %v215, 0
      %v375 = vsel %vm247, %v216, 0
      %v378 = vsel %vm247, %v217, 0
      %v381 = vsel %vm247, %v218, 0
      %v384 = vsel %vm247, %v219, 0
      %v387 = vsel %vm247, %v220, 0
      %v390 = vsel %vm247, %v221, 0
      %v393 = vsel %vm247, %v222, 0
      %v396 = vsel %vm247, %v223, 0
      %v399 = vsel %vm247, %v224, 0
      %v402 = vsel %vm247, %v225, 0
      %v405 = vsel %vm247, %v226, 0
      %v408 = vsel %vm247, %v227, 0
      %v411 = vsel %vm247, %v228, 0
      %v414 = vsel %vm247, %v229, 0
      %v417 = vsel %vm247, %v230, 0
      %v420 = vsel %vm247, %v231, 0
      %v423 = vsel %vm247, %v232, 0
      %v426 = vsel %vm247, %v233, 0
      %v429 = vsel %vm247, %v234, 0
      %v432 = vsel %vm247, %v235, 0
      %v435 = vsel %vm247, %v236, 0
      %v438 = vsel %vm247, %v237, 0
      %vm440 = vcmask 1040384
      %v442 = vsel %vm440, %v239, 0
      %444 = vmatprep.subr.mxu0 0.0
      %445 = vmatpush1.msra.mxu0 0.0
      %446 = vmatprep.subr.mxu0 0.0
      %447 = vmatpush1.msra.mxu0 0.0
      %448 = vmatprep.subr.mxu0 0.0
      %449 = vmatpush1.msra.mxu0 0.0
      %450 = vmatprep.subr.mxu0 0.0
      %451 = vmatpush1.msra.mxu0 0.0
      %452 = vmatprep.subr.mxu0 0.0
      %453 = vmatpush1.msra.mxu0 0.0
      %454 = vmatprep.subr.mxu0 0.0
      %455 = vmatpush1.msra.mxu0 0.0
      %456 = vmatprep.subr.mxu0 0.0
      %457 = vmatpush1.msra.mxu0 0.0
      %458 = vmatprep.subr.mxu0 0.0
      %459 = vmatpush1.msra.mxu0 0.0
      %460 = vmatprep.subr.mxu0 0.0
      %461 = vmatpush1.msra.mxu0 0.0
      %462 = vmatprep.subr.mxu0 0.0
      %463 = vmatpush1.msra.mxu0 0.0
      %464 = vmatprep.subr.mxu0 0.0
      %465 = vmatpush1.msra.mxu0 0.0
      %466 = vmatprep.subr.mxu0 0.0
      %467 = vmatpush1.msra.mxu0 0.0
      %468 = vmatprep.subr.mxu0 0.0
      %469 = vmatpush1.msra.mxu0 0.0
      %470 = vmatprep.subr.mxu0 0.0
      %471 = vmatpush1.msra.mxu0 0.0
      %472 = vmatprep.subr.mxu0 0.0
      %473 = vmatpush1.msra.mxu0 %v442
      %474 = vmatprep.subr.mxu0 0.0
      %475 = vmatpush1.msra.mxu0 %v238
      %476 = vmatprep.subr.mxu0 0.0
      %477 = vmatpush2.msra.mxu0 0.0
      %478 = vmatprep.subr.mxu0 0.0
      %479 = vmatpush2.msra.mxu0 0.0
      %480 = vmatprep.subr.mxu0 0.0
      %481 = vmatpush2.msra.mxu0 0.0
      %482 = vmatprep.subr.mxu0 0.0
      %483 = vmatpush2.msra.mxu0 0.0
      %484 = vmatprep.subr.mxu0 0.0
      %485 = vmatpush2.msra.mxu0 0.0
      %486 = vmatprep.subr.mxu0 0.0
      %487 = vmatpush2.msra.mxu0 0.0
      %488 = vmatprep.subr.mxu0 0.0
      %489 = vmatpush2.msra.mxu0 0.0
      %490 = vmatprep.subr.mxu0 0.0
      %491 = vmatpush2.msra.mxu0 0.0
      %492 = vmatprep.subr.mxu0 0.0
      %493 = vmatpush2.msra.mxu0 0.0
      %494 = vmatprep.subr.mxu0 0.0
      %495 = vmatpush2.msra.mxu0 0.0
      %496 = vmatprep.subr.mxu0 0.0
      %497 = vmatpush2.msra.mxu0 0.0
      %498 = vmatprep.subr.mxu0 0.0
      %499 = vmatpush2.msra.mxu0 0.0
      %500 = vmatprep.subr.mxu0 0.0
      %501 = vmatpush2.msra.mxu0 0.0
      %502 = vmatprep.subr.mxu0 0.0
      %503 = vmatpush2.msra.mxu0 0.0
      %504 = vmatprep.subr.mxu0 0.0
      %505 = vmatpush2.msra.mxu0 0.0
      %506 = vmatprep.subr.mxu0 0.0
      %507 = vmatpush2.msra.mxu0 0.0
      %508 = vmatprep.mubr.f32.mxu0 0.0
      %509 = vmatmul.mubr.f32.gmra.mxu0 %v249
      %v510 = vpop.f32.mrf.mxu0
      %v511 = vadd.f32 %v245, %v510
      %v512 = vpop.f32.mrf.mxu0
      %513 = vmatprep.mubr.f32.mxu0 0.0
      %514 = vmatmul.mubr.f32.gmra.mxu0 %v252
      %v515 = vpop.f32.mrf.mxu0
      %v516 = vadd.f32 %v245, %v515
      %v517 = vpop.f32.mrf.mxu0
      %518 = vmatprep.mubr.f32.mxu0 0.0
      %519 = vmatmul.mubr.f32.gmra.mxu0 %v255
      %v520 = vpop.f32.mrf.mxu0
      %v521 = vadd.f32 %v245, %v520
      %v522 = vpop.f32.mrf.mxu0
      %523 = vmatprep.mubr.f32.mxu0 0.0
      %524 = vmatmul.mubr.f32.gmra.mxu0 %v258
      %v525 = vpop.f32.mrf.mxu0
      %v526 = vadd.f32 %v245, %v525
      %v527 = vpop.f32.mrf.mxu0
      %528 = vmatprep.mubr.f32.mxu0 0.0
      %529 = vmatmul.mubr.f32.gmra.mxu0 %v261
      %v530 = vpop.f32.mrf.mxu0
      %v531 = vadd.f32 %v245, %v530
      %v532 = vpop.f32.mrf.mxu0
      %533 = vmatprep.mubr.f32.mxu0 0.0
      %534 = vmatmul.mubr.f32.gmra.mxu0 %v264
      %v535 = vpop.f32.mrf.mxu0
      %v536 = vadd.f32 %v245, %v535
      %v537 = vpop.f32.mrf.mxu0
      %538 = vmatprep.mubr.f32.mxu0 0.0
      %539 = vmatmul.mubr.f32.gmra.mxu0 %v267
      %v540 = vpop.f32.mrf.mxu0
      %v541 = vadd.f32 %v245, %v540
      %v542 = vpop.f32.mrf.mxu0
      %543 = vmatprep.mubr.f32.mxu0 0.0
      %544 = vmatmul.mubr.f32.gmra.mxu0 %v270
      %v545 = vpop.f32.mrf.mxu0
      %v546 = vadd.f32 %v245, %v545
      %v547 = vpop.f32.mrf.mxu0
      %548 = vmatprep.mubr.f32.mxu0 0.0
      %549 = vmatmul.mubr.f32.gmra.mxu0 %v273
      %v550 = vpop.f32.mrf.mxu0
      %v551 = vadd.f32 %v245, %v550
      %v552 = vpop.f32.mrf.mxu0
      %553 = vmatprep.mubr.f32.mxu0 0.0
      %554 = vmatmul.mubr.f32.gmra.mxu0 %v276
      %v555 = vpop.f32.mrf.mxu0
      %v556 = vadd.f32 %v245, %v555
      %v557 = vpop.f32.mrf.mxu0
      %558 = vmatprep.mubr.f32.mxu0 0.0
      %559 = vmatmul.mubr.f32.gmra.mxu0 %v279
      %v560 = vpop.f32.mrf.mxu0
      %v561 = vadd.f32 %v245, %v560
      %v562 = vpop.f32.mrf.mxu0
      %563 = vmatprep.mubr.f32.mxu0 0.0
      %564 = vmatmul.mubr.f32.gmra.mxu0 %v282
      %v565 = vpop.f32.mrf.mxu0
      %v566 = vadd.f32 %v245, %v565
      %v567 = vpop.f32.mrf.mxu0
      %568 = vmatprep.mubr.f32.mxu0 0.0
      %569 = vmatmul.mubr.f32.gmra.mxu0 %v285
      %v570 = vpop.f32.mrf.mxu0
      %v571 = vadd.f32 %v245, %v570
      %v572 = vpop.f32.mrf.mxu0
      %573 = vmatprep.mubr.f32.mxu0 0.0
      %574 = vmatmul.mubr.f32.gmra.mxu0 %v288
      %v575 = vpop.f32.mrf.mxu0
      %v576 = vadd.f32 %v245, %v575
      %v577 = vpop.f32.mrf.mxu0
      %578 = vmatprep.mubr.f32.mxu0 0.0
      %579 = vmatmul.mubr.f32.gmra.mxu0 %v291
      %v580 = vpop.f32.mrf.mxu0
      %v581 = vadd.f32 %v245, %v580
      %v582 = vpop.f32.mrf.mxu0
      %583 = vmatprep.mubr.f32.mxu0 0.0
      %584 = vmatmul.mubr.f32.gmra.mxu0 %v294
      %v585 = vpop.f32.mrf.mxu0
      %v586 = vadd.f32 %v245, %v585
      %v587 = vpop.f32.mrf.mxu0
      %588 = vmatprep.mubr.f32.mxu0 0.0
      %589 = vmatmul.mubr.f32.gmra.mxu0 %v297
      %v590 = vpop.f32.mrf.mxu0
      %v591 = vadd.f32 %v245, %v590
      %v592 = vpop.f32.mrf.mxu0
      %593 = vmatprep.mubr.f32.mxu0 0.0
      %594 = vmatmul.mubr.f32.gmra.mxu0 %v300
      %v595 = vpop.f32.mrf.mxu0
      %v596 = vadd.f32 %v245, %v595
      %v597 = vpop.f32.mrf.mxu0
      %598 = vmatprep.mubr.f32.mxu0 0.0
      %599 = vmatmul.mubr.f32.gmra.mxu0 %v303
      %v600 = vpop.f32.mrf.mxu0
      %v601 = vadd.f32 %v245, %v600
      %v602 = vpop.f32.mrf.mxu0
      %603 = vmatprep.mubr.f32.mxu0 0.0
      %604 = vmatmul.mubr.f32.gmra.mxu0 %v306
      %v605 = vpop.f32.mrf.mxu0
      %v606 = vadd.f32 %v245, %v605
      %v607 = vpop.f32.mrf.mxu0
      %608 = vmatprep.mubr.f32.mxu0 0.0
      %609 = vmatmul.mubr.f32.gmra.mxu0 %v309
      %v610 = vpop.f32.mrf.mxu0
      %v611 = vadd.f32 %v245, %v610
      %v612 = vpop.f32.mrf.mxu0
      %613 = vmatprep.mubr.f32.mxu0 0.0
      %614 = vmatmul.mubr.f32.gmra.mxu0 %v312
      %v615 = vpop.f32.mrf.mxu0
      %v616 = vadd.f32 %v245, %v615
      %v617 = vpop.f32.mrf.mxu0
      %618 = vmatprep.mubr.f32.mxu0 0.0
      %619 = vmatmul.mubr.f32.gmra.mxu0 %v315
      %v620 = vpop.f32.mrf.mxu0
      %v621 = vadd.f32 %v245, %v620
      %v622 = vpop.f32.mrf.mxu0
      %623 = vmatprep.mubr.f32.mxu0 0.0
      %624 = vmatmul.mubr.f32.gmra.mxu0 %v318
      %v625 = vpop.f32.mrf.mxu0
      %v626 = vadd.f32 %v245, %v625
      %v627 = vpop.f32.mrf.mxu0
      %628 = vmatprep.mubr.f32.mxu0 0.0
      %629 = vmatmul.mubr.f32.gmra.mxu0 %v321
      %v630 = vpop.f32.mrf.mxu0
      %v631 = vadd.f32 %v245, %v630
      %v632 = vpop.f32.mrf.mxu0
      %633 = vmatprep.mubr.f32.mxu0 0.0
      %634 = vmatmul.mubr.f32.gmra.mxu0 %v324
      %v635 = vpop.f32.mrf.mxu0
      %v636 = vadd.f32 %v245, %v635
      %v637 = vpop.f32.mrf.mxu0
      %638 = vmatprep.mubr.f32.mxu0 0.0
      %639 = vmatmul.mubr.f32.gmra.mxu0 %v327
      %v640 = vpop.f32.mrf.mxu0
      %v641 = vadd.f32 %v245, %v640
      %v642 = vpop.f32.mrf.mxu0
      %643 = vmatprep.mubr.f32.mxu0 0.0
      %644 = vmatmul.mubr.f32.gmra.mxu0 %v330
      %v645 = vpop.f32.mrf.mxu0
      %v646 = vadd.f32 %v245, %v645
      %v647 = vpop.f32.mrf.mxu0
      %648 = vmatprep.mubr.f32.mxu0 0.0
      %649 = vmatmul.mubr.f32.gmra.mxu0 %v333
      %v650 = vpop.f32.mrf.mxu0
      %v651 = vadd.f32 %v245, %v650
      %v652 = vpop.f32.mrf.mxu0
      %653 = vmatprep.mubr.f32.mxu0 0.0
      %654 = vmatmul.mubr.f32.gmra.mxu0 %v336
      %v655 = vpop.f32.mrf.mxu0
      %v656 = vadd.f32 %v245, %v655
      %v657 = vpop.f32.mrf.mxu0
      %658 = vmatprep.mubr.f32.mxu0 0.0
      %659 = vmatmul.mubr.f32.gmra.mxu0 %v339
      %v660 = vpop.f32.mrf.mxu0
      %v661 = vadd.f32 %v245, %v660
      %v662 = vpop.f32.mrf.mxu0
      %663 = vmatprep.mubr.f32.mxu0 0.0
      %664 = vmatmul.mubr.f32.gmra.mxu0 %v342
      %v665 = vpop.f32.mrf.mxu0
      %v666 = vadd.f32 %v245, %v665
      %v667 = vpop.f32.mrf.mxu0
      %668 = vmatprep.mubr.f32.mxu0 0.0
      %669 = vmatmul.mubr.f32.gmra.mxu0 %v345
      %v670 = vpop.f32.mrf.mxu0
      %v671 = vadd.f32 %v245, %v670
      %v672 = vpop.f32.mrf.mxu0
      %673 = vmatprep.mubr.f32.mxu0 0.0
      %674 = vmatmul.mubr.f32.gmra.mxu0 %v348
      %v675 = vpop.f32.mrf.mxu0
      %v676 = vadd.f32 %v245, %v675
      %v677 = vpop.f32.mrf.mxu0
      %678 = vmatprep.mubr.f32.mxu0 0.0
      %679 = vmatmul.mubr.f32.gmra.mxu0 %v351
      %v680 = vpop.f32.mrf.mxu0
      %v681 = vadd.f32 %v245, %v680
      %v682 = vpop.f32.mrf.mxu0
      %683 = vmatprep.mubr.f32.mxu0 0.0
      %684 = vmatmul.mubr.f32.gmra.mxu0 %v354
      %v685 = vpop.f32.mrf.mxu0
      %v686 = vadd.f32 %v245, %v685
      %v687 = vpop.f32.mrf.mxu0
      %688 = vmatprep.mubr.f32.mxu0 0.0
      %689 = vmatmul.mubr.f32.gmra.mxu0 %v357
      %v690 = vpop.f32.mrf.mxu0
      %v691 = vadd.f32 %v245, %v690
      %v692 = vpop.f32.mrf.mxu0
      %693 = vmatprep.mubr.f32.mxu0 0.0
      %694 = vmatmul.mubr.f32.gmra.mxu0 %v360
      %v695 = vpop.f32.mrf.mxu0
      %v696 = vadd.f32 %v245, %v695
      %v697 = vpop.f32.mrf.mxu0
      %698 = vmatprep.mubr.f32.mxu0 0.0
      %699 = vmatmul.mubr.f32.gmra.mxu0 %v363
      %v700 = vpop.f32.mrf.mxu0
      %v701 = vadd.f32 %v245, %v700
      %v702 = vpop.f32.mrf.mxu0
      %703 = vmatprep.mubr.f32.mxu0 0.0
      %704 = vmatmul.mubr.f32.gmra.mxu0 %v366
      %v705 = vpop.f32.mrf.mxu0
      %v706 = vadd.f32 %v245, %v705
      %v707 = vpop.f32.mrf.mxu0
      %708 = vmatprep.mubr.f32.mxu0 0.0
      %709 = vmatmul.mubr.f32.gmra.mxu0 %v369
      %v710 = vpop.f32.mrf.mxu0
      %v711 = vadd.f32 %v245, %v710
      %v712 = vpop.f32.mrf.mxu0
      %713 = vmatprep.mubr.f32.mxu0 0.0
      %714 = vmatmul.mubr.f32.gmra.mxu0 %v372
      %v715 = vpop.f32.mrf.mxu0
      %v716 = vadd.f32 %v245, %v715
      %v717 = vpop.f32.mrf.mxu0
      %718 = vmatprep.mubr.f32.mxu0 0.0
      %719 = vmatmul.mubr.f32.gmra.mxu0 %v375
      %v720 = vpop.f32.mrf.mxu0
      %v721 = vadd.f32 %v245, %v720
      %v722 = vpop.f32.mrf.mxu0
      %723 = vmatprep.mubr.f32.mxu0 0.0
      %724 = vmatmul.mubr.f32.gmra.mxu0 %v378
      %v725 = vpop.f32.mrf.mxu0
      %v726 = vadd.f32 %v245, %v725
      %v727 = vpop.f32.mrf.mxu0
      %728 = vmatprep.mubr.f32.mxu0 0.0
      %729 = vmatmul.mubr.f32.gmra.mxu0 %v381
      %v730 = vpop.f32.mrf.mxu0
      %v731 = vadd.f32 %v245, %v730
      %v732 = vpop.f32.mrf.mxu0
      %733 = vmatprep.mubr.f32.mxu0 0.0
      %734 = vmatmul.mubr.f32.gmra.mxu0 %v384
      %v735 = vpop.f32.mrf.mxu0
      %v736 = vadd.f32 %v245, %v735
      %v737 = vpop.f32.mrf.mxu0
      %738 = vmatprep.mubr.f32.mxu0 0.0
      %739 = vmatmul.mubr.f32.gmra.mxu0 %v387
      %v740 = vpop.f32.mrf.mxu0
      %v741 = vadd.f32 %v245, %v740
      %v742 = vpop.f32.mrf.mxu0
      %743 = vmatprep.mubr.f32.mxu0 0.0
      %744 = vmatmul.mubr.f32.gmra.mxu0 %v390
      %v745 = vpop.f32.mrf.mxu0
      %v746 = vadd.f32 %v245, %v745
      %v747 = vpop.f32.mrf.mxu0
      %748 = vmatprep.mubr.f32.mxu0 0.0
      %749 = vmatmul.mubr.f32.gmra.mxu0 %v393
      %v750 = vpop.f32.mrf.mxu0
      %v751 = vadd.f32 %v245, %v750
      %v752 = vpop.f32.mrf.mxu0
      %753 = vmatprep.mubr.f32.mxu0 0.0
      %754 = vmatmul.mubr.f32.gmra.mxu0 %v396
      %v755 = vpop.f32.mrf.mxu0
      %v756 = vadd.f32 %v245, %v755
      %v757 = vpop.f32.mrf.mxu0
      %758 = vmatprep.mubr.f32.mxu0 0.0
      %759 = vmatmul.mubr.f32.gmra.mxu0 %v399
      %v760 = vpop.f32.mrf.mxu0
      %v761 = vadd.f32 %v245, %v760
      %v762 = vpop.f32.mrf.mxu0
      %763 = vmatprep.mubr.f32.mxu0 0.0
      %764 = vmatmul.mubr.f32.gmra.mxu0 %v402
      %v765 = vpop.f32.mrf.mxu0
      %v766 = vadd.f32 %v245, %v765
      %v767 = vpop.f32.mrf.mxu0
      %768 = vmatprep.mubr.f32.mxu0 0.0
      %769 = vmatmul.mubr.f32.gmra.mxu0 %v405
      %v770 = vpop.f32.mrf.mxu0
      %v771 = vadd.f32 %v245, %v770
      %v772 = vpop.f32.mrf.mxu0
      %773 = vmatprep.mubr.f32.mxu0 0.0
      %774 = vmatmul.mubr.f32.gmra.mxu0 %v408
      %v775 = vpop.f32.mrf.mxu0
      %v776 = vadd.f32 %v245, %v775
      %v777 = vpop.f32.mrf.mxu0
      %778 = vmatprep.mubr.f32.mxu0 0.0
      %779 = vmatmul.mubr.f32.gmra.mxu0 %v411
      %v780 = vpop.f32.mrf.mxu0
      %v781 = vadd.f32 %v245, %v780
      %v782 = vpop.f32.mrf.mxu0
      %783 = vmatprep.mubr.f32.mxu0 0.0
      %784 = vmatmul.mubr.f32.gmra.mxu0 %v414
      %v785 = vpop.f32.mrf.mxu0
      %v786 = vadd.f32 %v245, %v785
      %v787 = vpop.f32.mrf.mxu0
      %788 = vmatprep.mubr.f32.mxu0 0.0
      %789 = vmatmul.mubr.f32.gmra.mxu0 %v417
      %v790 = vpop.f32.mrf.mxu0
      %v791 = vadd.f32 %v245, %v790
      %v792 = vpop.f32.mrf.mxu0
      %793 = vmatprep.mubr.f32.mxu0 0.0
      %794 = vmatmul.mubr.f32.gmra.mxu0 %v420
      %v795 = vpop.f32.mrf.mxu0
      %v796 = vadd.f32 %v245, %v795
      %v797 = vpop.f32.mrf.mxu0
      %798 = vmatprep.mubr.f32.mxu0 0.0
      %799 = vmatmul.mubr.f32.gmra.mxu0 %v423
      %v800 = vpop.f32.mrf.mxu0
      %v801 = vadd.f32 %v245, %v800
      %v802 = vpop.f32.mrf.mxu0
      %803 = vmatprep.mubr.f32.mxu0 0.0
      %804 = vmatmul.mubr.f32.gmra.mxu0 %v426
      %v805 = vpop.f32.mrf.mxu0
      %v806 = vadd.f32 %v245, %v805
      %v807 = vpop.f32.mrf.mxu0
      %808 = vmatprep.mubr.f32.mxu0 0.0
      %809 = vmatmul.mubr.f32.gmra.mxu0 %v429
      %v810 = vpop.f32.mrf.mxu0
      %v811 = vadd.f32 %v245, %v810
      %v812 = vpop.f32.mrf.mxu0
      %813 = vmatprep.mubr.f32.mxu0 0.0
      %814 = vmatmul.mubr.f32.gmra.mxu0 %v432
      %v815 = vpop.f32.mrf.mxu0
      %v816 = vadd.f32 %v245, %v815
      %v817 = vpop.f32.mrf.mxu0
      %818 = vmatprep.mubr.f32.mxu0 0.0
      %819 = vmatmul.mubr.f32.gmra.mxu0 %v435
      %v820 = vpop.f32.mrf.mxu0
      %v821 = vadd.f32 %v245, %v820
      %v822 = vpop.f32.mrf.mxu0
      %823 = vmatprep.mubr.f32.mxu0 0.0
      %824 = vmatmul.mubr.f32.gmra.mxu0 %v438
      %v825 = vpop.f32.mrf.mxu0
      %v826 = vadd.f32 %v245, %v825
      %v827 = vpop.f32.mrf.mxu0
      %828 = vdwg.mxu0
      %v829 = vmax.f32 %v511, 0.0
      %v830 = vmax.f32 %v516, 0.0
      %v831 = vmax.f32 %v521, 0.0
      %v832 = vmax.f32 %v526, 0.0
      %v833 = vmax.f32 %v531, 0.0
      %v834 = vmax.f32 %v536, 0.0
      %v835 = vmax.f32 %v541, 0.0
      %v836 = vmax.f32 %v546, 0.0
      %v837 = vmax.f32 %v551, 0.0
      %v838 = vmax.f32 %v556, 0.0
      %v839 = vmax.f32 %v561, 0.0
      %v840 = vmax.f32 %v566, 0.0
      %v841 = vmax.f32 %v571, 0.0
      %v842 = vmax.f32 %v576, 0.0
      %v843 = vmax.f32 %v581, 0.0
      %v844 = vmax.f32 %v586, 0.0
      %v845 = vmax.f32 %v591, 0.0
      %v846 = vmax.f32 %v596, 0.0
      %v847 = vmax.f32 %v601, 0.0
      %v848 = vmax.f32 %v606, 0.0
      %v849 = vmax.f32 %v611, 0.0
      %v850 = vmax.f32 %v616, 0.0
      %v851 = vmax.f32 %v621, 0.0
      %v852 = vmax.f32 %v626, 0.0
      %v853 = vmax.f32 %v631, 0.0
      %v854 = vmax.f32 %v636, 0.0
      %v855 = vmax.f32 %v641, 0.0
      %v856 = vmax.f32 %v646, 0.0
      %v857 = vmax.f32 %v651, 0.0
      %v858 = vmax.f32 %v656, 0.0
      %v859 = vmax.f32 %v661, 0.0
      %v860 = vmax.f32 %v666, 0.0
      %v861 = vmax.f32 %v671, 0.0
      %v862 = vmax.f32 %v676, 0.0
      %v863 = vmax.f32 %v681, 0.0
      %v864 = vmax.f32 %v686, 0.0
      %v865 = vmax.f32 %v691, 0.0
      %v866 = vmax.f32 %v696, 0.0
      %v867 = vmax.f32 %v701, 0.0
      %v868 = vmax.f32 %v706, 0.0
      %v869 = vmax.f32 %v711, 0.0
      %v870 = vmax.f32 %v716, 0.0
      %v871 = vmax.f32 %v721, 0.0
      %v872 = vmax.f32 %v726, 0.0
      %v873 = vmax.f32 %v731, 0.0
      %v874 = vmax.f32 %v736, 0.0
      %v875 = vmax.f32 %v741, 0.0
      %v876 = vmax.f32 %v746, 0.0
      %v877 = vmax.f32 %v751, 0.0
      %v878 = vmax.f32 %v756, 0.0
      %v879 = vmax.f32 %v761, 0.0
      %v880 = vmax.f32 %v766, 0.0
      %v881 = vmax.f32 %v771, 0.0
      %v882 = vmax.f32 %v776, 0.0
      %v883 = vmax.f32 %v781, 0.0
      %v884 = vmax.f32 %v786, 0.0
      %v885 = vmax.f32 %v791, 0.0
      %v886 = vmax.f32 %v796, 0.0
      %v887 = vmax.f32 %v801, 0.0
      %v888 = vmax.f32 %v806, 0.0
      %v889 = vmax.f32 %v811, 0.0
      %v890 = vmax.f32 %v816, 0.0
      %v891 = vmax.f32 %v821, 0.0
      %v892 = vmax.f32 %v826, 0.0
      %893 = vst [vmem:[%s172] sm:$0xff] %v829
      %894 = vst [vmem:[%s172 + $0x8] sm:$0xff] %v830
      %895 = vst [vmem:[%s172 + $0x10] sm:$0xff] %v831
      %896 = vst [vmem:[%s172 + $0x18] sm:$0xff] %v832
      %897 = vst [vmem:[%s172 + $0x20] sm:$0xff] %v833
      %898 = vst [vmem:[%s172 + $0x28] sm:$0xff] %v834
      %899 = vst [vmem:[%s172 + $0x30] sm:$0xff] %v835
      %900 = vst [vmem:[%s172 + $0x38] sm:$0xff] %v836
      %901 = vst [vmem:[%s172 + $0x40] sm:$0xff] %v837
      %902 = vst [vmem:[%s172 + $0x48] sm:$0xff] %v838
      %903 = vst [vmem:[%s172 + $0x50] sm:$0xff] %v839
      %904 = vst [vmem:[%s172 + $0x58] sm:$0xff] %v840
      %905 = vst [vmem:[%s172 + $0x60] sm:$0xff] %v841
      %906 = vst [vmem:[%s172 + $0x68] sm:$0xff] %v842
      %907 = vst [vmem:[%s172 + $0x70] sm:$0xff] %v843
      %908 = vst [vmem:[%s172 + $0x78] sm:$0xff] %v844
      %909 = vst [vmem:[%s172 + $0x80] sm:$0xff] %v845
      %910 = vst [vmem:[%s172 + $0x88] sm:$0xff] %v846
      %911 = vst [vmem:[%s172 + $0x90] sm:$0xff] %v847
      %912 = vst [vmem:[%s172 + $0x98] sm:$0xff] %v848
      %913 = vst [vmem:[%s172 + $0xa0] sm:$0xff] %v849
      %914 = vst [vmem:[%s172 + $0xa8] sm:$0xff] %v850
      %915 = vst [vmem:[%s172 + $0xb0] sm:$0xff] %v851
      %916 = vst [vmem:[%s172 + $0xb8] sm:$0xff] %v852
      %917 = vst [vmem:[%s172 + $0xc0] sm:$0xff] %v853
      %918 = vst [vmem:[%s172 + $0xc8] sm:$0xff] %v854
      %919 = vst [vmem:[%s172 + $0xd0] sm:$0xff] %v855
      %920 = vst [vmem:[%s172 + $0xd8] sm:$0xff] %v856
      %921 = vst [vmem:[%s172 + $0xe0] sm:$0xff] %v857
      %922 = vst [vmem:[%s172 + $0xe8] sm:$0xff] %v858
      %923 = vst [vmem:[%s172 + $0xf0] sm:$0xff] %v859
      %924 = vst [vmem:[%s172 + $0xf8] sm:$0xff] %v860
      %925 = vst [vmem:[%s172 + $0x100] sm:$0xff] %v861
      %926 = vst [vmem:[%s172 + $0x108] sm:$0xff] %v862
      %927 = vst [vmem:[%s172 + $0x110] sm:$0xff] %v863
      %928 = vst [vmem:[%s172 + $0x118] sm:$0xff] %v864
      %929 = vst [vmem:[%s172 + $0x120] sm:$0xff] %v865
      %930 = vst [vmem:[%s172 + $0x128] sm:$0xff] %v866
      %931 = vst [vmem:[%s172 + $0x130] sm:$0xff] %v867
      %932 = vst [vmem:[%s172 + $0x138] sm:$0xff] %v868
      %933 = vst [vmem:[%s172 + $0x140] sm:$0xff] %v869
      %934 = vst [vmem:[%s172 + $0x148] sm:$0xff] %v870
      %935 = vst [vmem:[%s172 + $0x150] sm:$0xff] %v871
      %936 = vst [vmem:[%s172 + $0x158] sm:$0xff] %v872
      %937 = vst [vmem:[%s172 + $0x160] sm:$0xff] %v873
      %938 = vst [vmem:[%s172 + $0x168] sm:$0xff] %v874
      %939 = vst [vmem:[%s172 + $0x170] sm:$0xff] %v875
      %940 = vst [vmem:[%s172 + $0x178] sm:$0xff] %v876
      %941 = vst [vmem:[%s172 + $0x180] sm:$0xff] %v877
      %942 = vst [vmem:[%s172 + $0x188] sm:$0xff] %v878
      %943 = vst [vmem:[%s172 + $0x190] sm:$0xff] %v879
      %944 = vst [vmem:[%s172 + $0x198] sm:$0xff] %v880
      %945 = vst [vmem:[%s172 + $0x1a0] sm:$0xff] %v881
      %946 = vst [vmem:[%s172 + $0x1a8] sm:$0xff] %v882
      %947 = vst [vmem:[%s172 + $0x1b0] sm:$0xff] %v883
      %948 = vst [vmem:[%s172 + $0x1b8] sm:$0xff] %v884
      %949 = vst [vmem:[%s172 + $0x1c0] sm:$0xff] %v885
      %950 = vst [vmem:[%s172 + $0x1c8] sm:$0xff] %v886
      %951 = vst [vmem:[%s172 + $0x1d0] sm:$0xff] %v887
      %952 = vst [vmem:[%s172 + $0x1d8] sm:$0xff] %v888
      %953 = vst [vmem:[%s172 + $0x1e0] sm:$0xff] %v889
      %954 = vst [vmem:[%s172 + $0x1e8] sm:$0xff] %v890
      %955 = vst [vmem:[%s172 + $0x1f0] sm:$0xff] %v891
      %956 = vst [vmem:[%s172 + $0x1f8] sm:$0xff] %v892
      %s957 = smul.u32 64, %s14
      %p958 = scmp.lt.s32.totalorder %s957, 191
      %s959 = scalar_select %p958, %s957, 191
      %s960 = smul.addr %s959, 8
      %s961 = scalar_lea.vmem %s3, %s960
      // Predicated region
      $region33: #{net5_forward.7} parent=31 // pred_check
        %p962 = pneg %p100
      $region34: #{net5_forward.7} parent=31 // pred_check_branch
        %964 = sbr.rel (%p962) target = $region36
      $region35: #{net5_forward.7} parent=31 // pred_region
        %s965 = smul.u32 64, %s14
      $region36: #{net5_forward.7} parent=31 // pred_fallthru
        _
    $region32: #{net5_forward.7} parent=5 // pred_fallthru
      _
    %p966 = scmp.le.s32.totalorder 2, %s9
    // Predicated region
    $region37: #{net5_forward.7} parent=5 // pred_check
      %p967 = pneg %p966
    $region38: #{net5_forward.7} parent=5 // pred_check_branch
      %969 = sbr.rel (%p967) target = $region40
    $region39: #{net5_forward.7} parent=5 // pred_region
      %s970 = ssub.s32 %s9, 2
      // Predicated region
      $region41: #{net5_forward.7} parent=39 // pred_check
        %p971 = pneg %p106
      $region42: #{net5_forward.7} parent=39 // pred_check_branch
        %973 = sbr.rel (%p971) target = $region44
      $region43: #{net5_forward.7} parent=39 // pred_region
        %s974 = smul.u32 64, %s15
        %p975 = scmp.lt.s32.totalorder %s974, 191
        %s976 = scalar_select %p975, %s974, 191
        %s977 = smul.addr %s976, 8
        %s978 = scalar_lea.vmem %s3, %s977
      $region44: #{net5_forward.7} parent=39 // pred_fallthru
        _
    $region40: #{net5_forward.7} parent=5 // pred_fallthru
      _
  $region6: #{net5_forward.7} parent=0 // loop_footer
    %s13 = sadd.s32 1, %s9
  $region7: #{net5_forward.7} parent=0 // loop_footer_branch
    %8 = sbr.rel target = $region3
  $region8: #{net5_forward.7} parent=0 // loop_exit
    _

// kernel: net5_forward.8
$region0: #{net5_forward.8}
  #allocation0 [shape = 'u32[]', space=smem, size = 0x4, offset = 0x4, fixed_abs, tag = 'smem constant byte address 0x4 - core index']
  #allocation1 [shape = 'u32[144,128]{1,0:T(1,128)}', space=vmem, size = 0x12000, scoped, tag = 'internal scratch']
  %s0 = inlined_call_operand.vmem [shape: f32[4,288,72], index: 0, kind: input, shape index: {}]
  %s1 = inlined_call_operand.vmem [shape: f32[72,128], index: 1, kind: input, shape index: {}]
  %s2 = inlined_call_operand.vmem [shape: f32[1,128], index: 2, kind: input, shape index: {}]
  %s3 = inlined_call_operand.vmem [shape: f32[288,128], index: 3, kind: output, shape index: {}]
  %s4 = sld [smem:[#allocation0]]
  $region22: #{net5_forward.8} parent=0
    _
  %s6 = ssub.s32 1, %s4
  %s7 = scalar_select 0, %s6, %s4
  // Predicated region
  $region2: #{net5_forward.8} parent=0 // pred_check
    _
  $region3: #{net5_forward.8} parent=0 // pred_check_branch
    %9 = sbr.rel (0) target = $region5
  $region4: #{net5_forward.8} parent=0 // pred_region
    _
  $region5: #{net5_forward.8} parent=0 // pred_fallthru
    _
  // Predicated region
  $region6: #{net5_forward.8} parent=0 // pred_check
    _
  $region7: #{net5_forward.8} parent=0 // pred_check_branch
    %11 = sbr.rel (0) target = $region9
  $region8: #{net5_forward.8} parent=0 // pred_region
    _
  $region9: #{net5_forward.8} parent=0 // pred_fallthru
    _
  // Predicated region
  $region10: #{net5_forward.8} parent=0 // pred_check
    _
  $region11: #{net5_forward.8} parent=0 // pred_check_branch
    %13 = sbr.rel (0) target = $region13
  $region12: #{net5_forward.8} parent=0 // pred_region
    _
  $region13: #{net5_forward.8} parent=0 // pred_fallthru
    _
  %v14 = vld [vmem:[%s1] sm:$0xff]
  %v15 = vld [vmem:[%s1 + $0x8] sm:$0xff]
  %v16 = vld [vmem:[%s1 + $0x10] sm:$0xff]
  %v17 = vld [vmem:[%s1 + $0x18] sm:$0xff]
  %v18 = vld [vmem:[%s1 + $0x20] sm:$0xff]
  %v19 = vld [vmem:[%s1 + $0x28] sm:$0xff]
  %v20 = vld [vmem:[%s1 + $0x30] sm:$0xff]
  %v21 = vld [vmem:[%s1 + $0x38] sm:$0xff]
  %v22 = vld [vmem:[%s1 + $0x40] sm:$0xff]
  %v23 = vld [vmem:[%s2] sm:$0x1]
  %v24 = vld [vmem:[%s0] sm:$0xff]
  %v25 = vld [vmem:[%s0 + $0x8] sm:$0xff]
  %v26 = vld [vmem:[%s0 + $0x10] sm:$0xff]
  %v27 = vld [vmem:[%s0 + $0x18] sm:$0xff]
  %v28 = vld [vmem:[%s0 + $0x20] sm:$0xff]
  %v29 = vld [vmem:[%s0 + $0x28] sm:$0xff]
  %v30 = vld [vmem:[%s0 + $0x30] sm:$0xff]
  %v31 = vld [vmem:[%s0 + $0x38] sm:$0xff]
  %v32 = vld [vmem:[%s0 + $0x40] sm:$0xff]
  %v33 = vld [vmem:[%s0 + $0x48] sm:$0xff]
  %v34 = vld [vmem:[%s0 + $0x50] sm:$0xff]
  %v35 = vld [vmem:[%s0 + $0x58] sm:$0xff]
  %v36 = vld [vmem:[%s0 + $0x60] sm:$0xff]
  %v37 = vld [vmem:[%s0 + $0x68] sm:$0xff]
  %v38 = vld [vmem:[%s0 + $0x70] sm:$0xff]
  %v39 = vld [vmem:[%s0 + $0x78] sm:$0xff]
  %v40 = vld [vmem:[%s0 + $0x80] sm:$0xff]
  %v41 = vld [vmem:[%s0 + $0x88] sm:$0xff]
  %v42 = vld [vmem:[%s0 + $0x90] sm:$0xff]
  %v43 = vld [vmem:[%s0 + $0x98] sm:$0xff]
  %v44 = vld [vmem:[%s0 + $0xa0] sm:$0xff]
  %v45 = vld [vmem:[%s0 + $0xa8] sm:$0xff]
  %v46 = vld [vmem:[%s0 + $0xb0] sm:$0xff]
  %v47 = vld [vmem:[%s0 + $0xb8] sm:$0xff]
  %v48 = vld [vmem:[%s0 + $0xc0] sm:$0xff]
  %v49 = vld [vmem:[%s0 + $0xc8] sm:$0xff]
  %v50 = vld [vmem:[%s0 + $0xd0] sm:$0xff]
  %v51 = vld [vmem:[%s0 + $0xd8] sm:$0xff]
  %v52 = vld [vmem:[%s0 + $0xe0] sm:$0xff]
  %v53 = vld [vmem:[%s0 + $0xe8] sm:$0xff]
  %v54 = vld [vmem:[%s0 + $0xf0] sm:$0xff]
  %v55 = vld [vmem:[%s0 + $0xf8] sm:$0xff]
  %v56 = vld [vmem:[%s0 + $0x100] sm:$0xff]
  %v57 = vld [vmem:[%s0 + $0x108] sm:$0xff]
  %v58 = vld [vmem:[%s0 + $0x110] sm:$0xff]
  %v59 = vld [vmem:[%s0 + $0x118] sm:$0xff]
  %v61 = vlaneseq
  %v62 = vshrl.u32 %v61, 7
  %v63 = vsub.s32 0, %v62
  %v64 = vrot.slane %v23, %v63
  %vm66 = vcmask 588800
  %v68 = vsel %vm66, %v24, 0
  %v71 = vsel %vm66, %v25, 0
  %v74 = vsel %vm66, %v26, 0
  %v77 = vsel %vm66, %v27, 0
  %v80 = vsel %vm66, %v28, 0
  %v83 = vsel %vm66, %v29, 0
  %v86 = vsel %vm66, %v30, 0
  %v89 = vsel %vm66, %v31, 0
  %v92 = vsel %vm66, %v32, 0
  %v95 = vsel %vm66, %v33, 0
  %v98 = vsel %vm66, %v34, 0
  %v101 = vsel %vm66, %v35, 0
  %v104 = vsel %vm66, %v36, 0
  %v107 = vsel %vm66, %v37, 0
  %v110 = vsel %vm66, %v38, 0
  %v113 = vsel %vm66, %v39, 0
  %v116 = vsel %vm66, %v40, 0
  %v119 = vsel %vm66, %v41, 0
  %v122 = vsel %vm66, %v42, 0
  %v125 = vsel %vm66, %v43, 0
  %v128 = vsel %vm66, %v44, 0
  %v131 = vsel %vm66, %v45, 0
  %v134 = vsel %vm66, %v46, 0
  %v137 = vsel %vm66, %v47, 0
  %v140 = vsel %vm66, %v48, 0
  %v143 = vsel %vm66, %v49, 0
  %v146 = vsel %vm66, %v50, 0
  %v149 = vsel %vm66, %v51, 0
  %v152 = vsel %vm66, %v52, 0
  %v155 = vsel %vm66, %v53, 0
  %v158 = vsel %vm66, %v54, 0
  %v161 = vsel %vm66, %v55, 0
  %v164 = vsel %vm66, %v56, 0
  %v167 = vsel %vm66, %v57, 0
  %v170 = vsel %vm66, %v58, 0
  %v173 = vsel %vm66, %v59, 0
  %175 = vmatprep.subr.mxu0 0.0
  %176 = vmatpush1.msra.mxu0 0.0
  %177 = vmatprep.subr.mxu0 0.0
  %178 = vmatpush1.msra.mxu0 0.0
  %179 = vmatprep.subr.mxu0 0.0
  %180 = vmatpush1.msra.mxu0 0.0
  %181 = vmatprep.subr.mxu0 0.0
  %182 = vmatpush1.msra.mxu0 0.0
  %183 = vmatprep.subr.mxu0 0.0
  %184 = vmatpush1.msra.mxu0 0.0
  %185 = vmatprep.subr.mxu0 0.0
  %186 = vmatpush1.msra.mxu0 0.0
  %187 = vmatprep.subr.mxu0 0.0
  %188 = vmatpush1.msra.mxu0 0.0
  %189 = vmatprep.subr.mxu0 0.0
  %190 = vmatpush1.msra.mxu0 %v22
  %191 = vmatprep.subr.mxu0 0.0
  %192 = vmatpush1.msra.mxu0 %v21
  %193 = vmatprep.subr.mxu0 0.0
  %194 = vmatpush1.msra.mxu0 %v20
  %195 = vmatprep.subr.mxu0 0.0
  %196 = vmatpush1.msra.mxu0 %v19
  %197 = vmatprep.subr.mxu0 0.0
  %198 = vmatpush1.msra.mxu0 %v18
  %199 = vmatprep.subr.mxu0 0.0
  %200 = vmatpush1.msra.mxu0 %v17
  %201 = vmatprep.subr.mxu0 0.0
  %202 = vmatpush1.msra.mxu0 %v16
  %203 = vmatprep.subr.mxu0 0.0
  %204 = vmatpush1.msra.mxu0 %v15
  %205 = vmatprep.subr.mxu0 0.0
  %206 = vmatpush1.msra.mxu0 %v14
  %207 = vmatprep.subr.mxu0 0.0
  %208 = vmatpush2.msra.mxu0 0.0
  %209 = vmatprep.subr.mxu0 0.0
  %210 = vmatpush2.msra.mxu0 0.0
  %211 = vmatprep.subr.mxu0 0.0
  %212 = vmatpush2.msra.mxu0 0.0
  %213 = vmatprep.subr.mxu0 0.0
  %214 = vmatpush2.msra.mxu0 0.0
  %215 = vmatprep.subr.mxu0 0.0
  %216 = vmatpush2.msra.mxu0 0.0
  %217 = vmatprep.subr.mxu0 0.0
  %218 = vmatpush2.msra.mxu0 0.0
  %219 = vmatprep.subr.mxu0 0.0
  %220 = vmatpush2.msra.mxu0 0.0
  %221 = vmatprep.subr.mxu0 0.0
  %222 = vmatpush2.msra.mxu0 0.0
  %223 = vmatprep.subr.mxu0 0.0
  %224 = vmatpush2.msra.mxu0 0.0
  %225 = vmatprep.subr.mxu0 0.0
  %226 = vmatpush2.msra.mxu0 0.0
  %227 = vmatprep.subr.mxu0 0.0
  %228 = vmatpush2.msra.mxu0 0.0
  %229 = vmatprep.subr.mxu0 0.0
  %230 = vmatpush2.msra.mxu0 0.0
  %231 = vmatprep.subr.mxu0 0.0
  %232 = vmatpush2.msra.mxu0 0.0
  %233 = vmatprep.subr.mxu0 0.0
  %234 = vmatpush2.msra.mxu0 0.0
  %235 = vmatprep.subr.mxu0 0.0
  %236 = vmatpush2.msra.mxu0 0.0
  %237 = vmatprep.subr.mxu0 0.0
  %238 = vmatpush2.msra.mxu0 0.0
  %239 = vmatprep.mubr.f32.mxu0 0.0
  %240 = vmatmul.mubr.f32.gmra.mxu0 %v68
  %v241 = vpop.f32.mrf.mxu0
  %v242 = vadd.f32 %v64, %v241
  %v243 = vpop.f32.mrf.mxu0
  %244 = vmatprep.mubr.f32.mxu0 0.0
  %245 = vmatmul.mubr.f32.gmra.mxu0 %v71
  %v246 = vpop.f32.mrf.mxu0
  %v247 = vadd.f32 %v64, %v246
  %v248 = vpop.f32.mrf.mxu0
  %249 = vmatprep.mubr.f32.mxu0 0.0
  %250 = vmatmul.mubr.f32.gmra.mxu0 %v74
  %v251 = vpop.f32.mrf.mxu0
  %v252 = vadd.f32 %v64, %v251
  %v253 = vpop.f32.mrf.mxu0
  %254 = vmatprep.mubr.f32.mxu0 0.0
  %255 = vmatmul.mubr.f32.gmra.mxu0 %v77
  %v256 = vpop.f32.mrf.mxu0
  %v257 = vadd.f32 %v64, %v256
  %v258 = vpop.f32.mrf.mxu0
  %259 = vmatprep.mubr.f32.mxu0 0.0
  %260 = vmatmul.mubr.f32.gmra.mxu0 %v80
  %v261 = vpop.f32.mrf.mxu0
  %v262 = vadd.f32 %v64, %v261
  %v263 = vpop.f32.mrf.mxu0
  %264 = vmatprep.mubr.f32.mxu0 0.0
  %265 = vmatmul.mubr.f32.gmra.mxu0 %v83
  %v266 = vpop.f32.mrf.mxu0
  %v267 = vadd.f32 %v64, %v266
  %v268 = vpop.f32.mrf.mxu0
  %269 = vmatprep.mubr.f32.mxu0 0.0
  %270 = vmatmul.mubr.f32.gmra.mxu0 %v86
  %v271 = vpop.f32.mrf.mxu0
  %v272 = vadd.f32 %v64, %v271
  %v273 = vpop.f32.mrf.mxu0
  %274 = vmatprep.mubr.f32.mxu0 0.0
  %275 = vmatmul.mubr.f32.gmra.mxu0 %v89
  %v276 = vpop.f32.mrf.mxu0
  %v277 = vadd.f32 %v64, %v276
  %v278 = vpop.f32.mrf.mxu0
  %279 = vmatprep.mubr.f32.mxu0 0.0
  %280 = vmatmul.mubr.f32.gmra.mxu0 %v92
  %v281 = vpop.f32.mrf.mxu0
  %v282 = vadd.f32 %v64, %v281
  %v283 = vpop.f32.mrf.mxu0
  %284 = vmatprep.mubr.f32.mxu0 0.0
  %285 = vmatmul.mubr.f32.gmra.mxu0 %v95
  %v286 = vpop.f32.mrf.mxu0
  %v287 = vadd.f32 %v64, %v286
  %v288 = vpop.f32.mrf.mxu0
  %289 = vmatprep.mubr.f32.mxu0 0.0
  %290 = vmatmul.mubr.f32.gmra.mxu0 %v98
  %v291 = vpop.f32.mrf.mxu0
  %v292 = vadd.f32 %v64, %v291
  %v293 = vpop.f32.mrf.mxu0
  %294 = vmatprep.mubr.f32.mxu0 0.0
  %295 = vmatmul.mubr.f32.gmra.mxu0 %v101
  %v296 = vpop.f32.mrf.mxu0
  %v297 = vadd.f32 %v64, %v296
  %v298 = vpop.f32.mrf.mxu0
  %299 = vmatprep.mubr.f32.mxu0 0.0
  %300 = vmatmul.mubr.f32.gmra.mxu0 %v104
  %v301 = vpop.f32.mrf.mxu0
  %v302 = vadd.f32 %v64, %v301
  %v303 = vpop.f32.mrf.mxu0
  %304 = vmatprep.mubr.f32.mxu0 0.0
  %305 = vmatmul.mubr.f32.gmra.mxu0 %v107
  %v306 = vpop.f32.mrf.mxu0
  %v307 = vadd.f32 %v64, %v306
  %v308 = vpop.f32.mrf.mxu0
  %309 = vmatprep.mubr.f32.mxu0 0.0
  %310 = vmatmul.mubr.f32.gmra.mxu0 %v110
  %v311 = vpop.f32.mrf.mxu0
  %v312 = vadd.f32 %v64, %v311
  %v313 = vpop.f32.mrf.mxu0
  %314 = vmatprep.mubr.f32.mxu0 0.0
  %315 = vmatmul.mubr.f32.gmra.mxu0 %v113
  %v316 = vpop.f32.mrf.mxu0
  %v317 = vadd.f32 %v64, %v316
  %v318 = vpop.f32.mrf.mxu0
  %319 = vmatprep.mubr.f32.mxu0 0.0
  %320 = vmatmul.mubr.f32.gmra.mxu0 %v116
  %v321 = vpop.f32.mrf.mxu0
  %v322 = vadd.f32 %v64, %v321
  %v323 = vpop.f32.mrf.mxu0
  %324 = vmatprep.mubr.f32.mxu0 0.0
  %325 = vmatmul.mubr.f32.gmra.mxu0 %v119
  %v326 = vpop.f32.mrf.mxu0
  %v327 = vadd.f32 %v64, %v326
  %v328 = vpop.f32.mrf.mxu0
  %329 = vmatprep.mubr.f32.mxu0 0.0
  %330 = vmatmul.mubr.f32.gmra.mxu0 %v122
  %v331 = vpop.f32.mrf.mxu0
  %v332 = vadd.f32 %v64, %v331
  %v333 = vpop.f32.mrf.mxu0
  %334 = vmatprep.mubr.f32.mxu0 0.0
  %335 = vmatmul.mubr.f32.gmra.mxu0 %v125
  %v336 = vpop.f32.mrf.mxu0
  %v337 = vadd.f32 %v64, %v336
  %v338 = vpop.f32.mrf.mxu0
  %339 = vmatprep.mubr.f32.mxu0 0.0
  %340 = vmatmul.mubr.f32.gmra.mxu0 %v128
  %v341 = vpop.f32.mrf.mxu0
  %v342 = vadd.f32 %v64, %v341
  %v343 = vpop.f32.mrf.mxu0
  %344 = vmatprep.mubr.f32.mxu0 0.0
  %345 = vmatmul.mubr.f32.gmra.mxu0 %v131
  %v346 = vpop.f32.mrf.mxu0
  %v347 = vadd.f32 %v64, %v346
  %v348 = vpop.f32.mrf.mxu0
  %349 = vmatprep.mubr.f32.mxu0 0.0
  %350 = vmatmul.mubr.f32.gmra.mxu0 %v134
  %v351 = vpop.f32.mrf.mxu0
  %v352 = vadd.f32 %v64, %v351
  %v353 = vpop.f32.mrf.mxu0
  %354 = vmatprep.mubr.f32.mxu0 0.0
  %355 = vmatmul.mubr.f32.gmra.mxu0 %v137
  %v356 = vpop.f32.mrf.mxu0
  %v357 = vadd.f32 %v64, %v356
  %v358 = vpop.f32.mrf.mxu0
  %359 = vmatprep.mubr.f32.mxu0 0.0
  %360 = vmatmul.mubr.f32.gmra.mxu0 %v140
  %v361 = vpop.f32.mrf.mxu0
  %v362 = vadd.f32 %v64, %v361
  %v363 = vpop.f32.mrf.mxu0
  %364 = vmatprep.mubr.f32.mxu0 0.0
  %365 = vmatmul.mubr.f32.gmra.mxu0 %v143
  %v366 = vpop.f32.mrf.mxu0
  %v367 = vadd.f32 %v64, %v366
  %v368 = vpop.f32.mrf.mxu0
  %369 = vmatprep.mubr.f32.mxu0 0.0
  %370 = vmatmul.mubr.f32.gmra.mxu0 %v146
  %v371 = vpop.f32.mrf.mxu0
  %v372 = vadd.f32 %v64, %v371
  %v373 = vpop.f32.mrf.mxu0
  %374 = vmatprep.mubr.f32.mxu0 0.0
  %375 = vmatmul.mubr.f32.gmra.mxu0 %v149
  %v376 = vpop.f32.mrf.mxu0
  %v377 = vadd.f32 %v64, %v376
  %v378 = vpop.f32.mrf.mxu0
  %379 = vmatprep.mubr.f32.mxu0 0.0
  %380 = vmatmul.mubr.f32.gmra.mxu0 %v152
  %v381 = vpop.f32.mrf.mxu0
  %v382 = vadd.f32 %v64, %v381
  %v383 = vpop.f32.mrf.mxu0
  %384 = vmatprep.mubr.f32.mxu0 0.0
  %385 = vmatmul.mubr.f32.gmra.mxu0 %v155
  %v386 = vpop.f32.mrf.mxu0
  %v387 = vadd.f32 %v64, %v386
  %v388 = vpop.f32.mrf.mxu0
  %389 = vmatprep.mubr.f32.mxu0 0.0
  %390 = vmatmul.mubr.f32.gmra.mxu0 %v158
  %v391 = vpop.f32.mrf.mxu0
  %v392 = vadd.f32 %v64, %v391
  %v393 = vpop.f32.mrf.mxu0
  %394 = vmatprep.mubr.f32.mxu0 0.0
  %395 = vmatmul.mubr.f32.gmra.mxu0 %v161
  %v396 = vpop.f32.mrf.mxu0
  %v397 = vadd.f32 %v64, %v396
  %v398 = vpop.f32.mrf.mxu0
  %399 = vmatprep.mubr.f32.mxu0 0.0
  %400 = vmatmul.mubr.f32.gmra.mxu0 %v164
  %v401 = vpop.f32.mrf.mxu0
  %v402 = vadd.f32 %v64, %v401
  %v403 = vpop.f32.mrf.mxu0
  %404 = vmatprep.mubr.f32.mxu0 0.0
  %405 = vmatmul.mubr.f32.gmra.mxu0 %v167
  %v406 = vpop.f32.mrf.mxu0
  %v407 = vadd.f32 %v64, %v406
  %v408 = vpop.f32.mrf.mxu0
  %409 = vmatprep.mubr.f32.mxu0 0.0
  %410 = vmatmul.mubr.f32.gmra.mxu0 %v170
  %v411 = vpop.f32.mrf.mxu0
  %v412 = vadd.f32 %v64, %v411
  %v413 = vpop.f32.mrf.mxu0
  %414 = vmatprep.mubr.f32.mxu0 0.0
  %415 = vmatmul.mubr.f32.gmra.mxu0 %v173
  %v416 = vpop.f32.mrf.mxu0
  %v417 = vadd.f32 %v64, %v416
  %v418 = vpop.f32.mrf.mxu0
  %419 = vdwg.mxu0
  %v420 = vmax.f32 %v242, 0.0
  %v421 = vmax.f32 %v247, 0.0
  %v422 = vmax.f32 %v252, 0.0
  %v423 = vmax.f32 %v257, 0.0
  %v424 = vmax.f32 %v262, 0.0
  %v425 = vmax.f32 %v267, 0.0
  %v426 = vmax.f32 %v272, 0.0
  %v427 = vmax.f32 %v277, 0.0
  %v428 = vmax.f32 %v282, 0.0
  %v429 = vmax.f32 %v287, 0.0
  %v430 = vmax.f32 %v292, 0.0
  %v431 = vmax.f32 %v297, 0.0
  %v432 = vmax.f32 %v302, 0.0
  %v433 = vmax.f32 %v307, 0.0
  %v434 = vmax.f32 %v312, 0.0
  %v435 = vmax.f32 %v317, 0.0
  %v436 = vmax.f32 %v322, 0.0
  %v437 = vmax.f32 %v327, 0.0
  %v438 = vmax.f32 %v332, 0.0
  %v439 = vmax.f32 %v337, 0.0
  %v440 = vmax.f32 %v342, 0.0
  %v441 = vmax.f32 %v347, 0.0
  %v442 = vmax.f32 %v352, 0.0
  %v443 = vmax.f32 %v357, 0.0
  %v444 = vmax.f32 %v362, 0.0
  %v445 = vmax.f32 %v367, 0.0
  %v446 = vmax.f32 %v372, 0.0
  %v447 = vmax.f32 %v377, 0.0
  %v448 = vmax.f32 %v382, 0.0
  %v449 = vmax.f32 %v387, 0.0
  %v450 = vmax.f32 %v392, 0.0
  %v451 = vmax.f32 %v397, 0.0
  %v452 = vmax.f32 %v402, 0.0
  %v453 = vmax.f32 %v407, 0.0
  %v454 = vmax.f32 %v412, 0.0
  %v455 = vmax.f32 %v417, 0.0
  %s456 = scalar_lea.vmem %s0, 288
  %v457 = vld [vmem:[%s456] sm:$0xff]
  %v458 = vld [vmem:[%s456 + $0x8] sm:$0xff]
  %v459 = vld [vmem:[%s456 + $0x10] sm:$0xff]
  %v460 = vld [vmem:[%s456 + $0x18] sm:$0xff]
  %v461 = vld [vmem:[%s456 + $0x20] sm:$0xff]
  %v462 = vld [vmem:[%s456 + $0x28] sm:$0xff]
  %v463 = vld [vmem:[%s456 + $0x30] sm:$0xff]
  %v464 = vld [vmem:[%s456 + $0x38] sm:$0xff]
  %v465 = vld [vmem:[%s456 + $0x40] sm:$0xff]
  %v466 = vld [vmem:[%s456 + $0x48] sm:$0xff]
  %v467 = vld [vmem:[%s456 + $0x50] sm:$0xff]
  %v468 = vld [vmem:[%s456 + $0x58] sm:$0xff]
  %v469 = vld [vmem:[%s456 + $0x60] sm:$0xff]
  %v470 = vld [vmem:[%s456 + $0x68] sm:$0xff]
  %v471 = vld [vmem:[%s456 + $0x70] sm:$0xff]
  %v472 = vld [vmem:[%s456 + $0x78] sm:$0xff]
  %v473 = vld [vmem:[%s456 + $0x80] sm:$0xff]
  %v474 = vld [vmem:[%s456 + $0x88] sm:$0xff]
  %v475 = vld [vmem:[%s456 + $0x90] sm:$0xff]
  %v476 = vld [vmem:[%s456 + $0x98] sm:$0xff]
  %v477 = vld [vmem:[%s456 + $0xa0] sm:$0xff]
  %v478 = vld [vmem:[%s456 + $0xa8] sm:$0xff]
  %v479 = vld [vmem:[%s456 + $0xb0] sm:$0xff]
  %v480 = vld [vmem:[%s456 + $0xb8] sm:$0xff]
  %v481 = vld [vmem:[%s456 + $0xc0] sm:$0xff]
  %v482 = vld [vmem:[%s456 + $0xc8] sm:$0xff]
  %v483 = vld [vmem:[%s456 + $0xd0] sm:$0xff]
  %v484 = vld [vmem:[%s456 + $0xd8] sm:$0xff]
  %v485 = vld [vmem:[%s456 + $0xe0] sm:$0xff]
  %v486 = vld [vmem:[%s456 + $0xe8] sm:$0xff]
  %v487 = vld [vmem:[%s456 + $0xf0] sm:$0xff]
  %v488 = vld [vmem:[%s456 + $0xf8] sm:$0xff]
  %v489 = vld [vmem:[%s456 + $0x100] sm:$0xff]
  %v490 = vld [vmem:[%s456 + $0x108] sm:$0xff]
  %v491 = vld [vmem:[%s456 + $0x110] sm:$0xff]
  %v492 = vld [vmem:[%s456 + $0x118] sm:$0xff]
  %v494 = vsel %vm66, %v457, 0
  %v497 = vsel %vm66, %v458, 0
  %v500 = vsel %vm66, %v459, 0
  %v503 = vsel %vm66, %v460, 0
  %v506 = vsel %vm66, %v461, 0
  %v509 = vsel %vm66, %v462, 0
  %v512 = vsel %vm66, %v463, 0
  %v515 = vsel %vm66, %v464, 0
  %v518 = vsel %vm66, %v465, 0
  %v521 = vsel %vm66, %v466, 0
  %v524 = vsel %vm66, %v467, 0
  %v527 = vsel %vm66, %v468, 0
  %v530 = vsel %vm66, %v469, 0
  %v533 = vsel %vm66, %v470, 0
  %v536 = vsel %vm66, %v471, 0
  %v539 = vsel %vm66, %v472, 0
  %v542 = vsel %vm66, %v473, 0
  %v545 = vsel %vm66, %v474, 0
  %v548 = vsel %vm66, %v475, 0
  %v551 = vsel %vm66, %v476, 0
  %v554 = vsel %vm66, %v477, 0
  %v557 = vsel %vm66, %v478, 0
  %v560 = vsel %vm66, %v479, 0
  %v563 = vsel %vm66, %v480, 0
  %v566 = vsel %vm66, %v481, 0
  %v569 = vsel %vm66, %v482, 0
  %v572 = vsel %vm66, %v483, 0
  %v575 = vsel %vm66, %v484, 0
  %v578 = vsel %vm66, %v485, 0
  %v581 = vsel %vm66, %v486, 0
  %v584 = vsel %vm66, %v487, 0
  %v587 = vsel %vm66, %v488, 0
  %v590 = vsel %vm66, %v489, 0
  %v593 = vsel %vm66, %v490, 0
  %v596 = vsel %vm66, %v491, 0
  %v599 = vsel %vm66, %v492, 0
  %601 = vmatprep.subr.mxu0 0.0
  %602 = vmatpush1.msra.mxu0 0.0
  %603 = vmatprep.subr.mxu0 0.0
  %604 = vmatpush1.msra.mxu0 0.0
  %605 = vmatprep.subr.mxu0 0.0
  %606 = vmatpush1.msra.mxu0 0.0
  %607 = vmatprep.subr.mxu0 0.0
  %608 = vmatpush1.msra.mxu0 0.0
  %609 = vmatprep.subr.mxu0 0.0
  %610 = vmatpush1.msra.mxu0 0.0
  %611 = vmatprep.subr.mxu0 0.0
  %612 = vmatpush1.msra.mxu0 0.0
  %613 = vmatprep.subr.mxu0 0.0
  %614 = vmatpush1.msra.mxu0 0.0
  %615 = vmatprep.subr.mxu0 0.0
  %616 = vmatpush1.msra.mxu0 %v22
  %617 = vmatprep.subr.mxu0 0.0
  %618 = vmatpush1.msra.mxu0 %v21
  %619 = vmatprep.subr.mxu0 0.0
  %620 = vmatpush1.msra.mxu0 %v20
  %621 = vmatprep.subr.mxu0 0.0
  %622 = vmatpush1.msra.mxu0 %v19
  %623 = vmatprep.subr.mxu0 0.0
  %624 = vmatpush1.msra.mxu0 %v18
  %625 = vmatprep.subr.mxu0 0.0
  %626 = vmatpush1.msra.mxu0 %v17
  %627 = vmatprep.subr.mxu0 0.0
  %628 = vmatpush1.msra.mxu0 %v16
  %629 = vmatprep.subr.mxu0 0.0
  %630 = vmatpush1.msra.mxu0 %v15
  %631 = vmatprep.subr.mxu0 0.0
  %632 = vmatpush1.msra.mxu0 %v14
  %633 = vmatprep.subr.mxu0 0.0
  %634 = vmatpush2.msra.mxu0 0.0
  %635 = vmatprep.subr.mxu0 0.0
  %636 = vmatpush2.msra.mxu0 0.0
  %637 = vmatprep.subr.mxu0 0.0
  %638 = vmatpush2.msra.mxu0 0.0
  %639 = vmatprep.subr.mxu0 0.0
  %640 = vmatpush2.msra.mxu0 0.0
  %641 = vmatprep.subr.mxu0 0.0
  %642 = vmatpush2.msra.mxu0 0.0
  %643 = vmatprep.subr.mxu0 0.0
  %644 = vmatpush2.msra.mxu0 0.0
  %645 = vmatprep.subr.mxu0 0.0
  %646 = vmatpush2.msra.mxu0 0.0
  %647 = vmatprep.subr.mxu0 0.0
  %648 = vmatpush2.msra.mxu0 0.0
  %649 = vmatprep.subr.mxu0 0.0
  %650 = vmatpush2.msra.mxu0 0.0
  %651 = vmatprep.subr.mxu0 0.0
  %652 = vmatpush2.msra.mxu0 0.0
  %653 = vmatprep.subr.mxu0 0.0
  %654 = vmatpush2.msra.mxu0 0.0
  %655 = vmatprep.subr.mxu0 0.0
  %656 = vmatpush2.msra.mxu0 0.0
  %657 = vmatprep.subr.mxu0 0.0
  %658 = vmatpush2.msra.mxu0 0.0
  %659 = vmatprep.subr.mxu0 0.0
  %660 = vmatpush2.msra.mxu0 0.0
  %661 = vmatprep.subr.mxu0 0.0
  %662 = vmatpush2.msra.mxu0 0.0
  %663 = vmatprep.subr.mxu0 0.0
  %664 = vmatpush2.msra.mxu0 0.0
  %665 = vmatprep.mubr.f32.mxu0 0.0
  %666 = vmatmul.mubr.f32.gmra.mxu0 %v494
  %v667 = vpop.f32.mrf.mxu0
  %v668 = vadd.f32 %v64, %v667
  %v669 = vpop.f32.mrf.mxu0
  %670 = vmatprep.mubr.f32.mxu0 0.0
  %671 = vmatmul.mubr.f32.gmra.mxu0 %v497
  %v672 = vpop.f32.mrf.mxu0
  %v673 = vadd.f32 %v64, %v672
  %v674 = vpop.f32.mrf.mxu0
  %675 = vmatprep.mubr.f32.mxu0 0.0
  %676 = vmatmul.mubr.f32.gmra.mxu0 %v500
  %v677 = vpop.f32.mrf.mxu0
  %v678 = vadd.f32 %v64, %v677
  %v679 = vpop.f32.mrf.mxu0
  %680 = vmatprep.mubr.f32.mxu0 0.0
  %681 = vmatmul.mubr.f32.gmra.mxu0 %v503
  %v682 = vpop.f32.mrf.mxu0
  %v683 = vadd.f32 %v64, %v682
  %v684 = vpop.f32.mrf.mxu0
  %685 = vmatprep.mubr.f32.mxu0 0.0
  %686 = vmatmul.mubr.f32.gmra.mxu0 %v506
  %v687 = vpop.f32.mrf.mxu0
  %v688 = vadd.f32 %v64, %v687
  %v689 = vpop.f32.mrf.mxu0
  %690 = vmatprep.mubr.f32.mxu0 0.0
  %691 = vmatmul.mubr.f32.gmra.mxu0 %v509
  %v692 = vpop.f32.mrf.mxu0
  %v693 = vadd.f32 %v64, %v692
  %v694 = vpop.f32.mrf.mxu0
  %695 = vmatprep.mubr.f32.mxu0 0.0
  %696 = vmatmul.mubr.f32.gmra.mxu0 %v512
  %v697 = vpop.f32.mrf.mxu0
  %v698 = vadd.f32 %v64, %v697
  %v699 = vpop.f32.mrf.mxu0
  %700 = vmatprep.mubr.f32.mxu0 0.0
  %701 = vmatmul.mubr.f32.gmra.mxu0 %v515
  %v702 = vpop.f32.mrf.mxu0
  %v703 = vadd.f32 %v64, %v702
  %v704 = vpop.f32.mrf.mxu0
  %705 = vmatprep.mubr.f32.mxu0 0.0
  %706 = vmatmul.mubr.f32.gmra.mxu0 %v518
  %v707 = vpop.f32.mrf.mxu0
  %v708 = vadd.f32 %v64, %v707
  %v709 = vpop.f32.mrf.mxu0
  %710 = vmatprep.mubr.f32.mxu0 0.0
  %711 = vmatmul.mubr.f32.gmra.mxu0 %v521
  %v712 = vpop.f32.mrf.mxu0
  %v713 = vadd.f32 %v64, %v712
  %v714 = vpop.f32.mrf.mxu0
  %715 = vmatprep.mubr.f32.mxu0 0.0
  %716 = vmatmul.mubr.f32.gmra.mxu0 %v524
  %v717 = vpop.f32.mrf.mxu0
  %v718 = vadd.f32 %v64, %v717
  %v719 = vpop.f32.mrf.mxu0
  %720 = vmatprep.mubr.f32.mxu0 0.0
  %721 = vmatmul.mubr.f32.gmra.mxu0 %v527
  %v722 = vpop.f32.mrf.mxu0
  %v723 = vadd.f32 %v64, %v722
  %v724 = vpop.f32.mrf.mxu0
  %725 = vmatprep.mubr.f32.mxu0 0.0
  %726 = vmatmul.mubr.f32.gmra.mxu0 %v530
  %v727 = vpop.f32.mrf.mxu0
  %v728 = vadd.f32 %v64, %v727
  %v729 = vpop.f32.mrf.mxu0
  %730 = vmatprep.mubr.f32.mxu0 0.0
  %731 = vmatmul.mubr.f32.gmra.mxu0 %v533
  %v732 = vpop.f32.mrf.mxu0
  %v733 = vadd.f32 %v64, %v732
  %v734 = vpop.f32.mrf.mxu0
  %735 = vmatprep.mubr.f32.mxu0 0.0
  %736 = vmatmul.mubr.f32.gmra.mxu0 %v536
  %v737 = vpop.f32.mrf.mxu0
  %v738 = vadd.f32 %v64, %v737
  %v739 = vpop.f32.mrf.mxu0
  %740 = vmatprep.mubr.f32.mxu0 0.0
  %741 = vmatmul.mubr.f32.gmra.mxu0 %v539
  %v742 = vpop.f32.mrf.mxu0
  %v743 = vadd.f32 %v64, %v742
  %v744 = vpop.f32.mrf.mxu0
  %745 = vmatprep.mubr.f32.mxu0 0.0
  %746 = vmatmul.mubr.f32.gmra.mxu0 %v542
  %v747 = vpop.f32.mrf.mxu0
  %v748 = vadd.f32 %v64, %v747
  %v749 = vpop.f32.mrf.mxu0
  %750 = vmatprep.mubr.f32.mxu0 0.0
  %751 = vmatmul.mubr.f32.gmra.mxu0 %v545
  %v752 = vpop.f32.mrf.mxu0
  %v753 = vadd.f32 %v64, %v752
  %v754 = vpop.f32.mrf.mxu0
  %755 = vmatprep.mubr.f32.mxu0 0.0
  %756 = vmatmul.mubr.f32.gmra.mxu0 %v548
  %v757 = vpop.f32.mrf.mxu0
  %v758 = vadd.f32 %v64, %v757
  %v759 = vpop.f32.mrf.mxu0
  %760 = vmatprep.mubr.f32.mxu0 0.0
  %761 = vmatmul.mubr.f32.gmra.mxu0 %v551
  %v762 = vpop.f32.mrf.mxu0
  %v763 = vadd.f32 %v64, %v762
  %v764 = vpop.f32.mrf.mxu0
  %765 = vmatprep.mubr.f32.mxu0 0.0
  %766 = vmatmul.mubr.f32.gmra.mxu0 %v554
  %v767 = vpop.f32.mrf.mxu0
  %v768 = vadd.f32 %v64, %v767
  %v769 = vpop.f32.mrf.mxu0
  %770 = vmatprep.mubr.f32.mxu0 0.0
  %771 = vmatmul.mubr.f32.gmra.mxu0 %v557
  %v772 = vpop.f32.mrf.mxu0
  %v773 = vadd.f32 %v64, %v772
  %v774 = vpop.f32.mrf.mxu0
  %775 = vmatprep.mubr.f32.mxu0 0.0
  %776 = vmatmul.mubr.f32.gmra.mxu0 %v560
  %v777 = vpop.f32.mrf.mxu0
  %v778 = vadd.f32 %v64, %v777
  %v779 = vpop.f32.mrf.mxu0
  %780 = vmatprep.mubr.f32.mxu0 0.0
  %781 = vmatmul.mubr.f32.gmra.mxu0 %v563
  %v782 = vpop.f32.mrf.mxu0
  %v783 = vadd.f32 %v64, %v782
  %v784 = vpop.f32.mrf.mxu0
  %785 = vmatprep.mubr.f32.mxu0 0.0
  %786 = vmatmul.mubr.f32.gmra.mxu0 %v566
  %v787 = vpop.f32.mrf.mxu0
  %v788 = vadd.f32 %v64, %v787
  %v789 = vpop.f32.mrf.mxu0
  %790 = vmatprep.mubr.f32.mxu0 0.0
  %791 = vmatmul.mubr.f32.gmra.mxu0 %v569
  %v792 = vpop.f32.mrf.mxu0
  %v793 = vadd.f32 %v64, %v792
  %v794 = vpop.f32.mrf.mxu0
  %795 = vmatprep.mubr.f32.mxu0 0.0
  %796 = vmatmul.mubr.f32.gmra.mxu0 %v572
  %v797 = vpop.f32.mrf.mxu0
  %v798 = vadd.f32 %v64, %v797
  %v799 = vpop.f32.mrf.mxu0
  %800 = vmatprep.mubr.f32.mxu0 0.0
  %801 = vmatmul.mubr.f32.gmra.mxu0 %v575
  %v802 = vpop.f32.mrf.mxu0
  %v803 = vadd.f32 %v64, %v802
  %v804 = vpop.f32.mrf.mxu0
  %805 = vmatprep.mubr.f32.mxu0 0.0
  %806 = vmatmul.mubr.f32.gmra.mxu0 %v578
  %v807 = vpop.f32.mrf.mxu0
  %v808 = vadd.f32 %v64, %v807
  %v809 = vpop.f32.mrf.mxu0
  %810 = vmatprep.mubr.f32.mxu0 0.0
  %811 = vmatmul.mubr.f32.gmra.mxu0 %v581
  %v812 = vpop.f32.mrf.mxu0
  %v813 = vadd.f32 %v64, %v812
  %v814 = vpop.f32.mrf.mxu0
  %815 = vmatprep.mubr.f32.mxu0 0.0
  %816 = vmatmul.mubr.f32.gmra.mxu0 %v584
  %v817 = vpop.f32.mrf.mxu0
  %v818 = vadd.f32 %v64, %v817
  %v819 = vpop.f32.mrf.mxu0
  %820 = vmatprep.mubr.f32.mxu0 0.0
  %821 = vmatmul.mubr.f32.gmra.mxu0 %v587
  %v822 = vpop.f32.mrf.mxu0
  %v823 = vadd.f32 %v64, %v822
  %v824 = vpop.f32.mrf.mxu0
  %825 = vmatprep.mubr.f32.mxu0 0.0
  %826 = vmatmul.mubr.f32.gmra.mxu0 %v590
  %v827 = vpop.f32.mrf.mxu0
  %v828 = vadd.f32 %v64, %v827
  %v829 = vpop.f32.mrf.mxu0
  %830 = vmatprep.mubr.f32.mxu0 0.0
  %831 = vmatmul.mubr.f32.gmra.mxu0 %v593
  %v832 = vpop.f32.mrf.mxu0
  %v833 = vadd.f32 %v64, %v832
  %v834 = vpop.f32.mrf.mxu0
  %835 = vmatprep.mubr.f32.mxu0 0.0
  %836 = vmatmul.mubr.f32.gmra.mxu0 %v596
  %v837 = vpop.f32.mrf.mxu0
  %v838 = vadd.f32 %v64, %v837
  %v839 = vpop.f32.mrf.mxu0
  %840 = vmatprep.mubr.f32.mxu0 0.0
  %841 = vmatmul.mubr.f32.gmra.mxu0 %v599
  %v842 = vpop.f32.mrf.mxu0
  %v843 = vadd.f32 %v64, %v842
  %v844 = vpop.f32.mrf.mxu0
  %845 = vdwg.mxu0
  %v846 = vmax.f32 %v668, 0.0
  %v847 = vmax.f32 %v673, 0.0
  %v848 = vmax.f32 %v678, 0.0
  %v849 = vmax.f32 %v683, 0.0
  %v850 = vmax.f32 %v688, 0.0
  %v851 = vmax.f32 %v693, 0.0
  %v852 = vmax.f32 %v698, 0.0
  %v853 = vmax.f32 %v703, 0.0
  %v854 = vmax.f32 %v708, 0.0
  %v855 = vmax.f32 %v713, 0.0
  %v856 = vmax.f32 %v718, 0.0
  %v857 = vmax.f32 %v723, 0.0
  %v858 = vmax.f32 %v728, 0.0
  %v859 = vmax.f32 %v733, 0.0
  %v860 = vmax.f32 %v738, 0.0
  %v861 = vmax.f32 %v743, 0.0
  %v862 = vmax.f32 %v748, 0.0
  %v863 = vmax.f32 %v753, 0.0
  %v864 = vmax.f32 %v758, 0.0
  %v865 = vmax.f32 %v763, 0.0
  %v866 = vmax.f32 %v768, 0.0
  %v867 = vmax.f32 %v773, 0.0
  %v868 = vmax.f32 %v778, 0.0
  %v869 = vmax.f32 %v783, 0.0
  %v870 = vmax.f32 %v788, 0.0
  %v871 = vmax.f32 %v793, 0.0
  %v872 = vmax.f32 %v798, 0.0
  %v873 = vmax.f32 %v803, 0.0
  %v874 = vmax.f32 %v808, 0.0
  %v875 = vmax.f32 %v813, 0.0
  %v876 = vmax.f32 %v818, 0.0
  %v877 = vmax.f32 %v823, 0.0
  %v878 = vmax.f32 %v828, 0.0
  %v879 = vmax.f32 %v833, 0.0
  %v880 = vmax.f32 %v838, 0.0
  %v881 = vmax.f32 %v843, 0.0
  %v882 = vmax.f32 %v420, %v846
  %v883 = vmax.f32 %v421, %v847
  %v884 = vmax.f32 %v422, %v848
  %v885 = vmax.f32 %v423, %v849
  %v886 = vmax.f32 %v424, %v850
  %v887 = vmax.f32 %v425, %v851
  %v888 = vmax.f32 %v426, %v852
  %v889 = vmax.f32 %v427, %v853
  %v890 = vmax.f32 %v428, %v854
  %v891 = vmax.f32 %v429, %v855
  %v892 = vmax.f32 %v430, %v856
  %v893 = vmax.f32 %v431, %v857
  %v894 = vmax.f32 %v432, %v858
  %v895 = vmax.f32 %v433, %v859
  %v896 = vmax.f32 %v434, %v860
  %v897 = vmax.f32 %v435, %v861
  %v898 = vmax.f32 %v436, %v862
  %v899 = vmax.f32 %v437, %v863
  %v900 = vmax.f32 %v438, %v864
  %v901 = vmax.f32 %v439, %v865
  %v902 = vmax.f32 %v440, %v866
  %v903 = vmax.f32 %v441, %v867
  %v904 = vmax.f32 %v442, %v868
  %v905 = vmax.f32 %v443, %v869
  %v906 = vmax.f32 %v444, %v870
  %v907 = vmax.f32 %v445, %v871
  %v908 = vmax.f32 %v446, %v872
  %v909 = vmax.f32 %v447, %v873
  %v910 = vmax.f32 %v448, %v874
  %v911 = vmax.f32 %v449, %v875
  %v912 = vmax.f32 %v450, %v876
  %v913 = vmax.f32 %v451, %v877
  %v914 = vmax.f32 %v452, %v878
  %v915 = vmax.f32 %v453, %v879
  %v916 = vmax.f32 %v454, %v880
  %v917 = vmax.f32 %v455, %v881
  %s918 = scalar_lea.vmem %s0, 576
  %v919 = vld [vmem:[%s918] sm:$0xff]
  %v920 = vld [vmem:[%s918 + $0x8] sm:$0xff]
  %v921 = vld [vmem:[%s918 + $0x10] sm:$0xff]
  %v922 = vld [vmem:[%s918 + $0x18] sm:$0xff]
  %v923 = vld [vmem:[%s918 + $0x20] sm:$0xff]
  %v924 = vld [vmem:[%s918 + $0x28] sm:$0xff]
  %v925 = vld [vmem:[%s918 + $0x30] sm:$0xff]
  %v926 = vld [vmem:[%s918 + $0x38] sm:$0xff]
  %v927 = vld [vmem:[%s918 + $0x40] sm:$0xff]
  %v928 = vld [vmem:[%s918 + $0x48] sm:$0xff]
  %v929 = vld [vmem:[%s918 + $0x50] sm:$0xff]
  %v930 = vld [vmem:[%s918 + $0x58] sm:$0xff]
  %v931 = vld [vmem:[%s918 + $0x60] sm:$0xff]
  %v932 = vld [vmem:[%s918 + $0x68] sm:$0xff]
  %v933 = vld [vmem:[%s918 + $0x70] sm:$0xff]
  %v934 = vld [vmem:[%s918 + $0x78] sm:$0xff]
  %v935 = vld [vmem:[%s918 + $0x80] sm:$0xff]
  %v936 = vld [vmem:[%s918 + $0x88] sm:$0xff]
  %v937 = vld [vmem:[%s918 + $0x90] sm:$0xff]
  %v938 = vld [vmem:[%s918 + $0x98] sm:$0xff]
  %v939 = vld [vmem:[%s918 + $0xa0] sm:$0xff]
  %v940 = vld [vmem:[%s918 + $0xa8] sm:$0xff]
  %v941 = vld [vmem:[%s918 + $0xb0] sm:$0xff]
  %v942 = vld [vmem:[%s918 + $0xb8] sm:$0xff]
  %v943 = vld [vmem:[%s918 + $0xc0] sm:$0xff]
  %v944 = vld [vmem:[%s918 + $0xc8] sm:$0xff]
  %v945 = vld [vmem:[%s918 + $0xd0] sm:$0xff]
  %v946 = vld [vmem:[%s918 + $0xd8] sm:$0xff]
  %v947 = vld [vmem:[%s918 + $0xe0] sm:$0xff]
  %v948 = vld [vmem:[%s918 + $0xe8] sm:$0xff]
  %v949 = vld [vmem:[%s918 + $0xf0] sm:$0xff]
  %v950 = vld [vmem:[%s918 + $0xf8] sm:$0xff]
  %v951 = vld [vmem:[%s918 + $0x100] sm:$0xff]
  %v952 = vld [vmem:[%s918 + $0x108] sm:$0xff]
  %v953 = vld [vmem:[%s918 + $0x110] sm:$0xff]
  %v954 = vld [vmem:[%s918 + $0x118] sm:$0xff]
  %v956 = vsel %vm66, %v919, 0
  %v959 = vsel %vm66, %v920, 0
  %v962 = vsel %vm66, %v921, 0
  %v965 = vsel %vm66, %v922, 0
  %v968 = vsel %vm66, %v923, 0
  %v971 = vsel %vm66, %v924, 0
  %v974 = vsel %vm66, %v925, 0
  %v977 = vsel %vm66, %v926, 0
  %v980 = vsel %vm66, %v927, 0
  %v983 = vsel %vm66, %v928, 0
  %v986 = vsel %vm66, %v929, 0
  %v989 = vsel %vm66, %v930, 0
  %v992 = vsel %vm66, %v931, 0
  %v995 = vsel %vm66, %v932, 0
  %v998 = vsel %vm66, %v933, 0
  %v1001 = vsel %vm66, %v934, 0
  %v1004 = vsel %vm66, %v935, 0
  %v1007 = vsel %vm66, %v936, 0
  %v1010 = vsel %vm66, %v937, 0
  %v1013 = vsel %vm66, %v938, 0
  %v1016 = vsel %vm66, %v939, 0
  %v1019 = vsel %vm66, %v940, 0
  %v1022 = vsel %vm66, %v941, 0
  %v1025 = vsel %vm66, %v942, 0
  %v1028 = vsel %vm66, %v943, 0
  %v1031 = vsel %vm66, %v944, 0
  %v1034 = vsel %vm66, %v945, 0
  %v1037 = vsel %vm66, %v946, 0
  %v1040 = vsel %vm66, %v947, 0
  %v1043 = vsel %vm66, %v948, 0
  %v1046 = vsel %vm66, %v949, 0
  %v1049 = vsel %vm66, %v950, 0
  %v1052 = vsel %vm66, %v951, 0
  %v1055 = vsel %vm66, %v952, 0
  %v1058 = vsel %vm66, %v953, 0
  %v1061 = vsel %vm66, %v954, 0
  %1063 = vmatprep.subr.mxu0 0.0
  %1064 = vmatpush1.msra.mxu0 0.0
  %1065 = vmatprep.subr.mxu0 0.0
  %1066 = vmatpush1.msra.mxu0 0.0
  %1067 = vmatprep.subr.mxu0 0.0
  %1068 = vmatpush1.msra.mxu0 0.0
  %1069 = vmatprep.subr.mxu0 0.0
  %1070 = vmatpush1.msra.mxu0 0.0
  %1071 = vmatprep.subr.mxu0 0.0
  %1072 = vmatpush1.msra.mxu0 0.0
  %1073 = vmatprep.subr.mxu0 0.0
  %1074 = vmatpush1.msra.mxu0 0.0
  %1075 = vmatprep.subr.mxu0 0.0
  %1076 = vmatpush1.msra.mxu0 0.0
  %1077 = vmatprep.subr.mxu0 0.0
  %1078 = vmatpush1.msra.mxu0 %v22
  %1079 = vmatprep.subr.mxu0 0.0
  %1080 = vmatpush1.msra.mxu0 %v21
  %1081 = vmatprep.subr.mxu0 0.0
  %1082 = vmatpush1.msra.mxu0 %v20
  %1083 = vmatprep.subr.mxu0 0.0
  %1084 = vmatpush1.msra.mxu0 %v19
  %1085 = vmatprep.subr.mxu0 0.0
  %1086 = vmatpush1.msra.mxu0 %v18
  %1087 = vmatprep.subr.mxu0 0.0
  %1088 = vmatpush1.msra.mxu0 %v17
  %1089 = vmatprep.subr.mxu0 0.0
  %1090 = vmatpush1.msra.mxu0 %v16
  %1091 = vmatprep.subr.mxu0 0.0
  %1092 = vmatpush1.msra.mxu0 %v15
  %1093 = vmatprep.subr.mxu0 0.0
  %1094 = vmatpush1.msra.mxu0 %v14
  %1095 = vmatprep.subr.mxu0 0.0
  %1096 = vmatpush2.msra.mxu0 0.0
  %1097 = vmatprep.subr.mxu0 0.0
  %1098 = vmatpush2.msra.mxu0 0.0
  %1099 = vmatprep.subr.mxu0 0.0
  %1100 = vmatpush2.msra.mxu0 0.0
  %1101 = vmatprep.subr.mxu0 0.0
  %1102 = vmatpush2.msra.mxu0 0.0
  %1103 = vmatprep.subr.mxu0 0.0
  %1104 = vmatpush2.msra.mxu0 0.0
  %1105 = vmatprep.subr.mxu0 0.0
  %1106 = vmatpush2.msra.mxu0 0.0
  %1107 = vmatprep.subr.mxu0 0.0
  %1108 = vmatpush2.msra.mxu0 0.0
  %1109 = vmatprep.subr.mxu0 0.0
  %1110 = vmatpush2.msra.mxu0 0.0
  %1111 = vmatprep.subr.mxu0 0.0
  %1112 = vmatpush2.msra.mxu0 0.0
  %1113 = vmatprep.subr.mxu0 0.0
  %1114 = vmatpush2.msra.mxu0 0.0
  %1115 = vmatprep.subr.mxu0 0.0
  %1116 = vmatpush2.msra.mxu0 0.0
  %1117 = vmatprep.subr.mxu0 0.0
  %1118 = vmatpush2.msra.mxu0 0.0
  %1119 = vmatprep.subr.mxu0 0.0
  %1120 = vmatpush2.msra.mxu0 0.0
  %1121 = vmatprep.subr.mxu0 0.0
  %1122 = vmatpush2.msra.mxu0 0.0
  %1123 = vmatprep.subr.mxu0 0.0
  %1124 = vmatpush2.msra.mxu0 0.0
  %1125 = vmatprep.subr.mxu0 0.0
  %1126 = vmatpush2.msra.mxu0 0.0
  %1127 = vmatprep.mubr.f32.mxu0 0.0
  %1128 = vmatmul.mubr.f32.gmra.mxu0 %v956
  %v1129 = vpop.f32.mrf.mxu0
  %v1130 = vadd.f32 %v64, %v1129
  %v1131 = vpop.f32.mrf.mxu0
  %1132 = vmatprep.mubr.f32.mxu0 0.0
  %1133 = vmatmul.mubr.f32.gmra.mxu0 %v959
  %v1134 = vpop.f32.mrf.mxu0
  %v1135 = vadd.f32 %v64, %v1134
  %v1136 = vpop.f32.mrf.mxu0
  %1137 = vmatprep.mubr.f32.mxu0 0.0
  %1138 = vmatmul.mubr.f32.gmra.mxu0 %v962
  %v1139 = vpop.f32.mrf.mxu0
  %v1140 = vadd.f32 %v64, %v1139
  %v1141 = vpop.f32.mrf.mxu0
  %1142 = vmatprep.mubr.f32.mxu0 0.0
  %1143 = vmatmul.mubr.f32.gmra.mxu0 %v965
  %v1144 = vpop.f32.mrf.mxu0
  %v1145 = vadd.f32 %v64, %v1144
  %v1146 = vpop.f32.mrf.mxu0
  %1147 = vmatprep.mubr.f32.mxu0 0.0
  %1148 = vmatmul.mubr.f32.gmra.mxu0 %v968
  %v1149 = vpop.f32.mrf.mxu0
  %v1150 = vadd.f32 %v64, %v1149
  %v1151 = vpop.f32.mrf.mxu0
  %1152 = vmatprep.mubr.f32.mxu0 0.0
  %1153 = vmatmul.mubr.f32.gmra.mxu0 %v971
  %v1154 = vpop.f32.mrf.mxu0
  %v1155 = vadd.f32 %v64, %v1154
  %v1156 = vpop.f32.mrf.mxu0
  %1157 = vmatprep.mubr.f32.mxu0 0.0
  %1158 = vmatmul.mubr.f32.gmra.mxu0 %v974
  %v1159 = vpop.f32.mrf.mxu0
  %v1160 = vadd.f32 %v64, %v1159
  %v1161 = vpop.f32.mrf.mxu0
  %1162 = vmatprep.mubr.f32.mxu0 0.0
  %1163 = vmatmul.mubr.f32.gmra.mxu0 %v977
  %v1164 = vpop.f32.mrf.mxu0
  %v1165 = vadd.f32 %v64, %v1164
  %v1166 = vpop.f32.mrf.mxu0
  %1167 = vmatprep.mubr.f32.mxu0 0.0
  %1168 = vmatmul.mubr.f32.gmra.mxu0 %v980
  %v1169 = vpop.f32.mrf.mxu0
  %v1170 = vadd.f32 %v64, %v1169
  %v1171 = vpop.f32.mrf.mxu0
  %1172 = vmatprep.mubr.f32.mxu0 0.0
  %1173 = vmatmul.mubr.f32.gmra.mxu0 %v983
  %v1174 = vpop.f32.mrf.mxu0
  %v1175 = vadd.f32 %v64, %v1174
  %v1176 = vpop.f32.mrf.mxu0
  %1177 = vmatprep.mubr.f32.mxu0 0.0
  %1178 = vmatmul.mubr.f32.gmra.mxu0 %v986
  %v1179 = vpop.f32.mrf.mxu0
  %v1180 = vadd.f32 %v64, %v1179
  %v1181 = vpop.f32.mrf.mxu0
  %1182 = vmatprep.mubr.f32.mxu0 0.0
  %1183 = vmatmul.mubr.f32.gmra.mxu0 %v989
  %v1184 = vpop.f32.mrf.mxu0
  %v1185 = vadd.f32 %v64, %v1184
  %v1186 = vpop.f32.mrf.mxu0
  %1187 = vmatprep.mubr.f32.mxu0 0.0
  %1188 = vmatmul.mubr.f32.gmra.mxu0 %v992
  %v1189 = vpop.f32.mrf.mxu0
  %v1190 = vadd.f32 %v64, %v1189
  %v1191 = vpop.f32.mrf.mxu0
  %1192 = vmatprep.mubr.f32.mxu0 0.0
  %1193 = vmatmul.mubr.f32.gmra.mxu0 %v995
  %v1194 = vpop.f32.mrf.mxu0
  %v1195 = vadd.f32 %v64, %v1194
  %v1196 = vpop.f32.mrf.mxu0
  %1197 = vmatprep.mubr.f32.mxu0 0.0
  %1198 = vmatmul.mubr.f32.gmra.mxu0 %v998
  %v1199 = vpop.f32.mrf.mxu0
  %v1200 = vadd.f32 %v64, %v1199
  %v1201 = vpop.f32.mrf.mxu0
  %1202 = vmatprep.mubr.f32.mxu0 0.0
  %1203 = vmatmul.mubr.f32.gmra.mxu0 %v1001
  %v1204 = vpop.f32.mrf.mxu0
  %v1205 = vadd.f32 %v64, %v1204
  %v1206 = vpop.f32.mrf.mxu0
  %1207 = vmatprep.mubr.f32.mxu0 0.0
  %1208 = vmatmul.mubr.f32.gmra.mxu0 %v1004
  %v1209 = vpop.f32.mrf.mxu0
  %v1210 = vadd.f32 %v64, %v1209
  %v1211 = vpop.f32.mrf.mxu0
  %1212 = vmatprep.mubr.f32.mxu0 0.0
  %1213 = vmatmul.mubr.f32.gmra.mxu0 %v1007
  %v1214 = vpop.f32.mrf.mxu0
  %v1215 = vadd.f32 %v64, %v1214
  %v1216 = vpop.f32.mrf.mxu0
  %1217 = vmatprep.mubr.f32.mxu0 0.0
  %1218 = vmatmul.mubr.f32.gmra.mxu0 %v1010
  %v1219 = vpop.f32.mrf.mxu0
  %v1220 = vadd.f32 %v64, %v1219
  %v1221 = vpop.f32.mrf.mxu0
  %1222 = vmatprep.mubr.f32.mxu0 0.0
  %1223 = vmatmul.mubr.f32.gmra.mxu0 %v1013
  %v1224 = vpop.f32.mrf.mxu0
  %v1225 = vadd.f32 %v64, %v1224
  %v1226 = vpop.f32.mrf.mxu0
  %1227 = vmatprep.mubr.f32.mxu0 0.0
  %1228 = vmatmul.mubr.f32.gmra.mxu0 %v1016
  %v1229 = vpop.f32.mrf.mxu0
  %v1230 = vadd.f32 %v64, %v1229
  %v1231 = vpop.f32.mrf.mxu0
  %1232 = vmatprep.mubr.f32.mxu0 0.0
  %1233 = vmatmul.mubr.f32.gmra.mxu0 %v1019
  %v1234 = vpop.f32.mrf.mxu0
  %v1235 = vadd.f32 %v64, %v1234
  %v1236 = vpop.f32.mrf.mxu0
  %1237 = vmatprep.mubr.f32.mxu0 0.0
  %1238 = vmatmul.mubr.f32.gmra.mxu0 %v1022
  %v1239 = vpop.f32.mrf.mxu0
  %v1240 = vadd.f32 %v64, %v1239
  %v1241 = vpop.f32.mrf.mxu0
  %1242 = vmatprep.mubr.f32.mxu0 0.0
  %1243 = vmatmul.mubr.f32.gmra.mxu0 %v1025
  %v1244 = vpop.f32.mrf.mxu0
  %v1245 = vadd.f32 %v64, %v1244
  %v1246 = vpop.f32.mrf.mxu0
  %1247 = vmatprep.mubr.f32.mxu0 0.0
  %1248 = vmatmul.mubr.f32.gmra.mxu0 %v1028
  %v1249 = vpop.f32.mrf.mxu0
  %v1250 = vadd.f32 %v64, %v1249
  %v1251 = vpop.f32.mrf.mxu0
  %1252 = vmatprep.mubr.f32.mxu0 0.0
  %1253 = vmatmul.mubr.f32.gmra.mxu0 %v1031
  %v1254 = vpop.f32.mrf.mxu0
  %v1255 = vadd.f32 %v64, %v1254
  %v1256 = vpop.f32.mrf.mxu0
  %1257 = vmatprep.mubr.f32.mxu0 0.0
  %1258 = vmatmul.mubr.f32.gmra.mxu0 %v1034
  %v1259 = vpop.f32.mrf.mxu0
  %v1260 = vadd.f32 %v64, %v1259
  %v1261 = vpop.f32.mrf.mxu0
  %1262 = vmatprep.mubr.f32.mxu0 0.0
  %1263 = vmatmul.mubr.f32.gmra.mxu0 %v1037
  %v1264 = vpop.f32.mrf.mxu0
  %v1265 = vadd.f32 %v64, %v1264
  %v1266 = vpop.f32.mrf.mxu0
  %1267 = vmatprep.mubr.f32.mxu0 0.0
  %1268 = vmatmul.mubr.f32.gmra.mxu0 %v1040
  %v1269 = vpop.f32.mrf.mxu0
  %v1270 = vadd.f32 %v64, %v1269
  %v1271 = vpop.f32.mrf.mxu0
  %1272 = vmatprep.mubr.f32.mxu0 0.0
  %1273 = vmatmul.mubr.f32.gmra.mxu0 %v1043
  %v1274 = vpop.f32.mrf.mxu0
  %v1275 = vadd.f32 %v64, %v1274
  %v1276 = vpop.f32.mrf.mxu0
  %1277 = vmatprep.mubr.f32.mxu0 0.0
  %1278 = vmatmul.mubr.f32.gmra.mxu0 %v1046
  %v1279 = vpop.f32.mrf.mxu0
  %v1280 = vadd.f32 %v64, %v1279
  %v1281 = vpop.f32.mrf.mxu0
  %1282 = vmatprep.mubr.f32.mxu0 0.0
  %1283 = vmatmul.mubr.f32.gmra.mxu0 %v1049
  %v1284 = vpop.f32.mrf.mxu0
  %v1285 = vadd.f32 %v64, %v1284
  %v1286 = vpop.f32.mrf.mxu0
  %1287 = vmatprep.mubr.f32.mxu0 0.0
  %1288 = vmatmul.mubr.f32.gmra.mxu0 %v1052
  %v1289 = vpop.f32.mrf.mxu0
  %v1290 = vadd.f32 %v64, %v1289
  %v1291 = vpop.f32.mrf.mxu0
  %1292 = vmatprep.mubr.f32.mxu0 0.0
  %1293 = vmatmul.mubr.f32.gmra.mxu0 %v1055
  %v1294 = vpop.f32.mrf.mxu0
  %v1295 = vadd.f32 %v64, %v1294
  %v1296 = vpop.f32.mrf.mxu0
  %1297 = vmatprep.mubr.f32.mxu0 0.0
  %1298 = vmatmul.mubr.f32.gmra.mxu0 %v1058
  %v1299 = vpop.f32.mrf.mxu0
  %v1300 = vadd.f32 %v64, %v1299
  %v1301 = vpop.f32.mrf.mxu0
  %1302 = vmatprep.mubr.f32.mxu0 0.0
  %1303 = vmatmul.mubr.f32.gmra.mxu0 %v1061
  %v1304 = vpop.f32.mrf.mxu0
  %v1305 = vadd.f32 %v64, %v1304
  %v1306 = vpop.f32.mrf.mxu0
  %1307 = vdwg.mxu0
  %v1308 = vmax.f32 %v1130, 0.0
  %v1309 = vmax.f32 %v1135, 0.0
  %v1310 = vmax.f32 %v1140, 0.0
  %v1311 = vmax.f32 %v1145, 0.0
  %v1312 = vmax.f32 %v1150, 0.0
  %v1313 = vmax.f32 %v1155, 0.0
  %v1314 = vmax.f32 %v1160, 0.0
  %v1315 = vmax.f32 %v1165, 0.0
  %v1316 = vmax.f32 %v1170, 0.0
  %v1317 = vmax.f32 %v1175, 0.0
  %v1318 = vmax.f32 %v1180, 0.0
  %v1319 = vmax.f32 %v1185, 0.0
  %v1320 = vmax.f32 %v1190, 0.0
  %v1321 = vmax.f32 %v1195, 0.0
  %v1322 = vmax.f32 %v1200, 0.0
  %v1323 = vmax.f32 %v1205, 0.0
  %v1324 = vmax.f32 %v1210, 0.0
  %v1325 = vmax.f32 %v1215, 0.0
  %v1326 = vmax.f32 %v1220, 0.0
  %v1327 = vmax.f32 %v1225, 0.0
  %v1328 = vmax.f32 %v1230, 0.0
  %v1329 = vmax.f32 %v1235, 0.0
  %v1330 = vmax.f32 %v1240, 0.0
  %v1331 = vmax.f32 %v1245, 0.0
  %v1332 = vmax.f32 %v1250, 0.0
  %v1333 = vmax.f32 %v1255, 0.0
  %v1334 = vmax.f32 %v1260, 0.0
  %v1335 = vmax.f32 %v1265, 0.0
  %v1336 = vmax.f32 %v1270, 0.0
  %v1337 = vmax.f32 %v1275, 0.0
  %v1338 = vmax.f32 %v1280, 0.0
  %v1339 = vmax.f32 %v1285, 0.0
  %v1340 = vmax.f32 %v1290, 0.0
  %v1341 = vmax.f32 %v1295, 0.0
  %v1342 = vmax.f32 %v1300, 0.0
  %v1343 = vmax.f32 %v1305, 0.0
  %v1344 = vmax.f32 %v882, %v1308
  %v1345 = vmax.f32 %v883, %v1309
  %v1346 = vmax.f32 %v884, %v1310
  %v1347 = vmax.f32 %v885, %v1311
  %v1348 = vmax.f32 %v886, %v1312
  %v1349 = vmax.f32 %v887, %v1313
  %v1350 = vmax.f32 %v888, %v1314
  %v1351 = vmax.f32 %v889, %v1315
  %v1352 = vmax.f32 %v890, %v1316
  %v1353 = vmax.f32 %v891, %v1317
  %v1354 = vmax.f32 %v892, %v1318
  %v1355 = vmax.f32 %v893, %v1319
  %v1356 = vmax.f32 %v894, %v1320
  %v1357 = vmax.f32 %v895, %v1321
  %v1358 = vmax.f32 %v896, %v1322
  %v1359 = vmax.f32 %v897, %v1323
  %v1360 = vmax.f32 %v898, %v1324
  %v1361 = vmax.f32 %v899, %v1325
  %v1362 = vmax.f32 %v900, %v1326
  %v1363 = vmax.f32 %v901, %v1327
  %v1364 = vmax.f32 %v902, %v1328
  %v1365 = vmax.f32 %v903, %v1329
  %v1366 = vmax.f32 %v904, %v1330
  %v1367 = vmax.f32 %v905, %v1331
  %v1368 = vmax.f32 %v906, %v1332
  %v1369 = vmax.f32 %v907, %v1333
  %v1370 = vmax.f32 %v908, %v1334
  %v1371 = vmax.f32 %v909, %v1335
  %v1372 = vmax.f32 %v910, %v1336
  %v1373 = vmax.f32 %v911, %v1337
  %v1374 = vmax.f32 %v912, %v1338
  %v1375 = vmax.f32 %v913, %v1339
  %v1376 = vmax.f32 %v914, %v1340
  %v1377 = vmax.f32 %v915, %v1341
  %v1378 = vmax.f32 %v916, %v1342
  %v1379 = vmax.f32 %v917, %v1343
  %s1380 = scalar_lea.vmem %s0, 864
  %v1381 = vld [vmem:[%s1380] sm:$0xff]
  %v1382 = vld [vmem:[%s1380 + $0x8] sm:$0xff]
  %v1383 = vld [vmem:[%s1380 + $0x10] sm:$0xff]
  %v1384 = vld [vmem:[%s1380 + $0x18] sm:$0xff]
  %v1385 = vld [vmem:[%s1380 + $0x20] sm:$0xff]
  %v1386 = vld [vmem:[%s1380 + $0x28] sm:$0xff]
  %v1387 = vld [vmem:[%s1380 + $0x30] sm:$0xff]
  %v1388 = vld [vmem:[%s1380 + $0x38] sm:$0xff]
  %v1389 = vld [vmem:[%s1380 + $0x40] sm:$0xff]
  %v1390 = vld [vmem:[%s1380 + $0x48] sm:$0xff]
  %v1391 = vld [vmem:[%s1380 + $0x50] sm:$0xff]
  %v1392 = vld [vmem:[%s1380 + $0x58] sm:$0xff]
  %v1393 = vld [vmem:[%s1380 + $0x60] sm:$0xff]
  %v1394 = vld [vmem:[%s1380 + $0x68] sm:$0xff]
  %v1395 = vld [vmem:[%s1380 + $0x70] sm:$0xff]
  %v1396 = vld [vmem:[%s1380 + $0x78] sm:$0xff]
  %v1397 = vld [vmem:[%s1380 + $0x80] sm:$0xff]
  %v1398 = vld [vmem:[%s1380 + $0x88] sm:$0xff]
  %v1399 = vld [vmem:[%s1380 + $0x90] sm:$0xff]
  %v1400 = vld [vmem:[%s1380 + $0x98] sm:$0xff]
  %v1401 = vld [vmem:[%s1380 + $0xa0] sm:$0xff]
  %v1402 = vld [vmem:[%s1380 + $0xa8] sm:$0xff]
  %v1403 = vld [vmem:[%s1380 + $0xb0] sm:$0xff]
  %v1404 = vld [vmem:[%s1380 + $0xb8] sm:$0xff]
  %v1405 = vld [vmem:[%s1380 + $0xc0] sm:$0xff]
  %v1406 = vld [vmem:[%s1380 + $0xc8] sm:$0xff]
  %v1407 = vld [vmem:[%s1380 + $0xd0] sm:$0xff]
  %v1408 = vld [vmem:[%s1380 + $0xd8] sm:$0xff]
  %v1409 = vld [vmem:[%s1380 + $0xe0] sm:$0xff]
  %v1410 = vld [vmem:[%s1380 + $0xe8] sm:$0xff]
  %v1411 = vld [vmem:[%s1380 + $0xf0] sm:$0xff]
  %v1412 = vld [vmem:[%s1380 + $0xf8] sm:$0xff]
  %v1413 = vld [vmem:[%s1380 + $0x100] sm:$0xff]
  %v1414 = vld [vmem:[%s1380 + $0x108] sm:$0xff]
  %v1415 = vld [vmem:[%s1380 + $0x110] sm:$0xff]
  %v1416 = vld [vmem:[%s1380 + $0x118] sm:$0xff]
  %v1418 = vsel %vm66, %v1381, 0
  %v1421 = vsel %vm66, %v1382, 0
  %v1424 = vsel %vm66, %v1383, 0
  %v1427 = vsel %vm66, %v1384, 0
  %v1430 = vsel %vm66, %v1385, 0
  %v1433 = vsel %vm66, %v1386, 0
  %v1436 = vsel %vm66, %v1387, 0
  %v1439 = vsel %vm66, %v1388, 0
  %v1442 = vsel %vm66, %v1389, 0
  %v1445 = vsel %vm66, %v1390, 0
  %v1448 = vsel %vm66, %v1391, 0
  %v1451 = vsel %vm66, %v1392, 0
  %v1454 = vsel %vm66, %v1393, 0
  %v1457 = vsel %vm66, %v1394, 0
  %v1460 = vsel %vm66, %v1395, 0
  %v1463 = vsel %vm66, %v1396, 0
  %v1466 = vsel %vm66, %v1397, 0
  %v1469 = vsel %vm66, %v1398, 0
  %v1472 = vsel %vm66, %v1399, 0
  %v1475 = vsel %vm66, %v1400, 0
  %v1478 = vsel %vm66, %v1401, 0
  %v1481 = vsel %vm66, %v1402, 0
  %v1484 = vsel %vm66, %v1403, 0
  %v1487 = vsel %vm66, %v1404, 0
  %v1490 = vsel %vm66, %v1405, 0
  %v1493 = vsel %vm66, %v1406, 0
  %v1496 = vsel %vm66, %v1407, 0
  %v1499 = vsel %vm66, %v1408, 0
  %v1502 = vsel %vm66, %v1409, 0
  %v1505 = vsel %vm66, %v1410, 0
  %v1508 = vsel %vm66, %v1411, 0
  %v1511 = vsel %vm66, %v1412, 0
  %v1514 = vsel %vm66, %v1413, 0
  %v1517 = vsel %vm66, %v1414, 0
  %v1520 = vsel %vm66, %v1415, 0
  %v1523 = vsel %vm66, %v1416, 0
  %1525 = vmatprep.subr.mxu0 0.0
  %1526 = vmatpush1.msra.mxu0 0.0
  %1527 = vmatprep.subr.mxu0 0.0
  %1528 = vmatpush1.msra.mxu0 0.0
  %1529 = vmatprep.subr.mxu0 0.0
  %1530 = vmatpush1.msra.mxu0 0.0
  %1531 = vmatprep.subr.mxu0 0.0
  %1532 = vmatpush1.msra.mxu0 0.0
  %1533 = vmatprep.subr.mxu0 0.0
  %1534 = vmatpush1.msra.mxu0 0.0
  %1535 = vmatprep.subr.mxu0 0.0
  %1536 = vmatpush1.msra.mxu0 0.0
  %1537 = vmatprep.subr.mxu0 0.0
  %1538 = vmatpush1.msra.mxu0 0.0
  %1539 = vmatprep.subr.mxu0 0.0
  %1540 = vmatpush1.msra.mxu0 %v22
  %1541 = vmatprep.subr.mxu0 0.0
  %1542 = vmatpush1.msra.mxu0 %v21
  %1543 = vmatprep.subr.mxu0 0.0
  %1544 = vmatpush1.msra.mxu0 %v20
  %1545 = vmatprep.subr.mxu0 0.0
  %1546 = vmatpush1.msra.mxu0 %v19
  %1547 = vmatprep.subr.mxu0 0.0
  %1548 = vmatpush1.msra.mxu0 %v18
  %1549 = vmatprep.subr.mxu0 0.0
  %1550 = vmatpush1.msra.mxu0 %v17
  %1551 = vmatprep.subr.mxu0 0.0
  %1552 = vmatpush1.msra.mxu0 %v16
  %1553 = vmatprep.subr.mxu0 0.0
  %1554 = vmatpush1.msra.mxu0 %v15
  %1555 = vmatprep.subr.mxu0 0.0
  %1556 = vmatpush1.msra.mxu0 %v14
  %1557 = vmatprep.subr.mxu0 0.0
  %1558 = vmatpush2.msra.mxu0 0.0
  %1559 = vmatprep.subr.mxu0 0.0
  %1560 = vmatpush2.msra.mxu0 0.0
  %1561 = vmatprep.subr.mxu0 0.0
  %1562 = vmatpush2.msra.mxu0 0.0
  %1563 = vmatprep.subr.mxu0 0.0
  %1564 = vmatpush2.msra.mxu0 0.0
  %1565 = vmatprep.subr.mxu0 0.0
  %1566 = vmatpush2.msra.mxu0 0.0
  %1567 = vmatprep.subr.mxu0 0.0
  %1568 = vmatpush2.msra.mxu0 0.0
  %1569 = vmatprep.subr.mxu0 0.0
  %1570 = vmatpush2.msra.mxu0 0.0
  %1571 = vmatprep.subr.mxu0 0.0
  %1572 = vmatpush2.msra.mxu0 0.0
  %1573 = vmatprep.subr.mxu0 0.0
  %1574 = vmatpush2.msra.mxu0 0.0
  %1575 = vmatprep.subr.mxu0 0.0
  %1576 = vmatpush2.msra.mxu0 0.0
  %1577 = vmatprep.subr.mxu0 0.0
  %1578 = vmatpush2.msra.mxu0 0.0
  %1579 = vmatprep.subr.mxu0 0.0
  %1580 = vmatpush2.msra.mxu0 0.0
  %1581 = vmatprep.subr.mxu0 0.0
  %1582 = vmatpush2.msra.mxu0 0.0
  %1583 = vmatprep.subr.mxu0 0.0
  %1584 = vmatpush2.msra.mxu0 0.0
  %1585 = vmatprep.subr.mxu0 0.0
  %1586 = vmatpush2.msra.mxu0 0.0
  %1587 = vmatprep.subr.mxu0 0.0
  %1588 = vmatpush2.msra.mxu0 0.0
  %1589 = vmatprep.mubr.f32.mxu0 0.0
  %1590 = vmatmul.mubr.f32.gmra.mxu0 %v1418
  %v1591 = vpop.f32.mrf.mxu0
  %v1592 = vadd.f32 %v64, %v1591
  %v1593 = vpop.f32.mrf.mxu0
  %1594 = vmatprep.mubr.f32.mxu0 0.0
  %1595 = vmatmul.mubr.f32.gmra.mxu0 %v1421
  %v1596 = vpop.f32.mrf.mxu0
  %v1597 = vadd.f32 %v64, %v1596
  %v1598 = vpop.f32.mrf.mxu0
  %1599 = vmatprep.mubr.f32.mxu0 0.0
  %1600 = vmatmul.mubr.f32.gmra.mxu0 %v1424
  %v1601 = vpop.f32.mrf.mxu0
  %v1602 = vadd.f32 %v64, %v1601
  %v1603 = vpop.f32.mrf.mxu0
  %1604 = vmatprep.mubr.f32.mxu0 0.0
  %1605 = vmatmul.mubr.f32.gmra.mxu0 %v1427
  %v1606 = vpop.f32.mrf.mxu0
  %v1607 = vadd.f32 %v64, %v1606
  %v1608 = vpop.f32.mrf.mxu0
  %1609 = vmatprep.mubr.f32.mxu0 0.0
  %1610 = vmatmul.mubr.f32.gmra.mxu0 %v1430
  %v1611 = vpop.f32.mrf.mxu0
  %v1612 = vadd.f32 %v64, %v1611
  %v1613 = vpop.f32.mrf.mxu0
  %1614 = vmatprep.mubr.f32.mxu0 0.0
  %1615 = vmatmul.mubr.f32.gmra.mxu0 %v1433
  %v1616 = vpop.f32.mrf.mxu0
  %v1617 = vadd.f32 %v64, %v1616
  %v1618 = vpop.f32.mrf.mxu0
  %1619 = vmatprep.mubr.f32.mxu0 0.0
  %1620 = vmatmul.mubr.f32.gmra.mxu0 %v1436
  %v1621 = vpop.f32.mrf.mxu0
  %v1622 = vadd.f32 %v64, %v1621
  %v1623 = vpop.f32.mrf.mxu0
  %1624 = vmatprep.mubr.f32.mxu0 0.0
  %1625 = vmatmul.mubr.f32.gmra.mxu0 %v1439
  %v1626 = vpop.f32.mrf.mxu0
  %v1627 = vadd.f32 %v64, %v1626
  %v1628 = vpop.f32.mrf.mxu0
  %1629 = vmatprep.mubr.f32.mxu0 0.0
  %1630 = vmatmul.mubr.f32.gmra.mxu0 %v1442
  %v1631 = vpop.f32.mrf.mxu0
  %v1632 = vadd.f32 %v64, %v1631
  %v1633 = vpop.f32.mrf.mxu0
  %1634 = vmatprep.mubr.f32.mxu0 0.0
  %1635 = vmatmul.mubr.f32.gmra.mxu0 %v1445
  %v1636 = vpop.f32.mrf.mxu0
  %v1637 = vadd.f32 %v64, %v1636
  %v1638 = vpop.f32.mrf.mxu0
  %1639 = vmatprep.mubr.f32.mxu0 0.0
  %1640 = vmatmul.mubr.f32.gmra.mxu0 %v1448
  %v1641 = vpop.f32.mrf.mxu0
  %v1642 = vadd.f32 %v64, %v1641
  %v1643 = vpop.f32.mrf.mxu0
  %1644 = vmatprep.mubr.f32.mxu0 0.0
  %1645 = vmatmul.mubr.f32.gmra.mxu0 %v1451
  %v1646 = vpop.f32.mrf.mxu0
  %v1647 = vadd.f32 %v64, %v1646
  %v1648 = vpop.f32.mrf.mxu0
  %1649 = vmatprep.mubr.f32.mxu0 0.0
  %1650 = vmatmul.mubr.f32.gmra.mxu0 %v1454
  %v1651 = vpop.f32.mrf.mxu0
  %v1652 = vadd.f32 %v64, %v1651
  %v1653 = vpop.f32.mrf.mxu0
  %1654 = vmatprep.mubr.f32.mxu0 0.0
  %1655 = vmatmul.mubr.f32.gmra.mxu0 %v1457
  %v1656 = vpop.f32.mrf.mxu0
  %v1657 = vadd.f32 %v64, %v1656
  %v1658 = vpop.f32.mrf.mxu0
  %1659 = vmatprep.mubr.f32.mxu0 0.0
  %1660 = vmatmul.mubr.f32.gmra.mxu0 %v1460
  %v1661 = vpop.f32.mrf.mxu0
  %v1662 = vadd.f32 %v64, %v1661
  %v1663 = vpop.f32.mrf.mxu0
  %1664 = vmatprep.mubr.f32.mxu0 0.0
  %1665 = vmatmul.mubr.f32.gmra.mxu0 %v1463
  %v1666 = vpop.f32.mrf.mxu0
  %v1667 = vadd.f32 %v64, %v1666
  %v1668 = vpop.f32.mrf.mxu0
  %1669 = vmatprep.mubr.f32.mxu0 0.0
  %1670 = vmatmul.mubr.f32.gmra.mxu0 %v1466
  %v1671 = vpop.f32.mrf.mxu0
  %v1672 = vadd.f32 %v64, %v1671
  %v1673 = vpop.f32.mrf.mxu0
  %1674 = vmatprep.mubr.f32.mxu0 0.0
  %1675 = vmatmul.mubr.f32.gmra.mxu0 %v1469
  %v1676 = vpop.f32.mrf.mxu0
  %v1677 = vadd.f32 %v64, %v1676
  %v1678 = vpop.f32.mrf.mxu0
  %1679 = vmatprep.mubr.f32.mxu0 0.0
  %1680 = vmatmul.mubr.f32.gmra.mxu0 %v1472
  %v1681 = vpop.f32.mrf.mxu0
  %v1682 = vadd.f32 %v64, %v1681
  %v1683 = vpop.f32.mrf.mxu0
  %1684 = vmatprep.mubr.f32.mxu0 0.0
  %1685 = vmatmul.mubr.f32.gmra.mxu0 %v1475
  %v1686 = vpop.f32.mrf.mxu0
  %v1687 = vadd.f32 %v64, %v1686
  %v1688 = vpop.f32.mrf.mxu0
  %1689 = vmatprep.mubr.f32.mxu0 0.0
  %1690 = vmatmul.mubr.f32.gmra.mxu0 %v1478
  %v1691 = vpop.f32.mrf.mxu0
  %v1692 = vadd.f32 %v64, %v1691
  %v1693 = vpop.f32.mrf.mxu0
  %1694 = vmatprep.mubr.f32.mxu0 0.0
  %1695 = vmatmul.mubr.f32.gmra.mxu0 %v1481
  %v1696 = vpop.f32.mrf.mxu0
  %v1697 = vadd.f32 %v64, %v1696
  %v1698 = vpop.f32.mrf.mxu0
  %1699 = vmatprep.mubr.f32.mxu0 0.0
  %1700 = vmatmul.mubr.f32.gmra.mxu0 %v1484
  %v1701 = vpop.f32.mrf.mxu0
  %v1702 = vadd.f32 %v64, %v1701
  %v1703 = vpop.f32.mrf.mxu0
  %1704 = vmatprep.mubr.f32.mxu0 0.0
  %1705 = vmatmul.mubr.f32.gmra.mxu0 %v1487
  %v1706 = vpop.f32.mrf.mxu0
  %v1707 = vadd.f32 %v64, %v1706
  %v1708 = vpop.f32.mrf.mxu0
  %1709 = vmatprep.mubr.f32.mxu0 0.0
  %1710 = vmatmul.mubr.f32.gmra.mxu0 %v1490
  %v1711 = vpop.f32.mrf.mxu0
  %v1712 = vadd.f32 %v64, %v1711
  %v1713 = vpop.f32.mrf.mxu0
  %1714 = vmatprep.mubr.f32.mxu0 0.0
  %1715 = vmatmul.mubr.f32.gmra.mxu0 %v1493
  %v1716 = vpop.f32.mrf.mxu0
  %v1717 = vadd.f32 %v64, %v1716
  %v1718 = vpop.f32.mrf.mxu0
  %1719 = vmatprep.mubr.f32.mxu0 0.0
  %1720 = vmatmul.mubr.f32.gmra.mxu0 %v1496
  %v1721 = vpop.f32.mrf.mxu0
  %v1722 = vadd.f32 %v64, %v1721
  %v1723 = vpop.f32.mrf.mxu0
  %1724 = vmatprep.mubr.f32.mxu0 0.0
  %1725 = vmatmul.mubr.f32.gmra.mxu0 %v1499
  %v1726 = vpop.f32.mrf.mxu0
  %v1727 = vadd.f32 %v64, %v1726
  %v1728 = vpop.f32.mrf.mxu0
  %1729 = vmatprep.mubr.f32.mxu0 0.0
  %1730 = vmatmul.mubr.f32.gmra.mxu0 %v1502
  %v1731 = vpop.f32.mrf.mxu0
  %v1732 = vadd.f32 %v64, %v1731
  %v1733 = vpop.f32.mrf.mxu0
  %1734 = vmatprep.mubr.f32.mxu0 0.0
  %1735 = vmatmul.mubr.f32.gmra.mxu0 %v1505
  %v1736 = vpop.f32.mrf.mxu0
  %v1737 = vadd.f32 %v64, %v1736
  %v1738 = vpop.f32.mrf.mxu0
  %1739 = vmatprep.mubr.f32.mxu0 0.0
  %1740 = vmatmul.mubr.f32.gmra.mxu0 %v1508
  %v1741 = vpop.f32.mrf.mxu0
  %v1742 = vadd.f32 %v64, %v1741
  %v1743 = vpop.f32.mrf.mxu0
  %1744 = vmatprep.mubr.f32.mxu0 0.0
  %1745 = vmatmul.mubr.f32.gmra.mxu0 %v1511
  %v1746 = vpop.f32.mrf.mxu0
  %v1747 = vadd.f32 %v64, %v1746
  %v1748 = vpop.f32.mrf.mxu0
  %1749 = vmatprep.mubr.f32.mxu0 0.0
  %1750 = vmatmul.mubr.f32.gmra.mxu0 %v1514
  %v1751 = vpop.f32.mrf.mxu0
  %v1752 = vadd.f32 %v64, %v1751
  %v1753 = vpop.f32.mrf.mxu0
  %1754 = vmatprep.mubr.f32.mxu0 0.0
  %1755 = vmatmul.mubr.f32.gmra.mxu0 %v1517
  %v1756 = vpop.f32.mrf.mxu0
  %v1757 = vadd.f32 %v64, %v1756
  %v1758 = vpop.f32.mrf.mxu0
  %1759 = vmatprep.mubr.f32.mxu0 0.0
  %1760 = vmatmul.mubr.f32.gmra.mxu0 %v1520
  %v1761 = vpop.f32.mrf.mxu0
  %v1762 = vadd.f32 %v64, %v1761
  %v1763 = vpop.f32.mrf.mxu0
  %1764 = vmatprep.mubr.f32.mxu0 0.0
  %1765 = vmatmul.mubr.f32.gmra.mxu0 %v1523
  %v1766 = vpop.f32.mrf.mxu0
  %v1767 = vadd.f32 %v64, %v1766
  %v1768 = vpop.f32.mrf.mxu0
  %1769 = vdwg.mxu0
  %v1770 = vmax.f32 %v1592, 0.0
  %v1771 = vmax.f32 %v1597, 0.0
  %v1772 = vmax.f32 %v1602, 0.0
  %v1773 = vmax.f32 %v1607, 0.0
  %v1774 = vmax.f32 %v1612, 0.0
  %v1775 = vmax.f32 %v1617, 0.0
  %v1776 = vmax.f32 %v1622, 0.0
  %v1777 = vmax.f32 %v1627, 0.0
  %v1778 = vmax.f32 %v1632, 0.0
  %v1779 = vmax.f32 %v1637, 0.0
  %v1780 = vmax.f32 %v1642, 0.0
  %v1781 = vmax.f32 %v1647, 0.0
  %v1782 = vmax.f32 %v1652, 0.0
  %v1783 = vmax.f32 %v1657, 0.0
  %v1784 = vmax.f32 %v1662, 0.0
  %v1785 = vmax.f32 %v1667, 0.0
  %v1786 = vmax.f32 %v1672, 0.0
  %v1787 = vmax.f32 %v1677, 0.0
  %v1788 = vmax.f32 %v1682, 0.0
  %v1789 = vmax.f32 %v1687, 0.0
  %v1790 = vmax.f32 %v1692, 0.0
  %v1791 = vmax.f32 %v1697, 0.0
  %v1792 = vmax.f32 %v1702, 0.0
  %v1793 = vmax.f32 %v1707, 0.0
  %v1794 = vmax.f32 %v1712, 0.0
  %v1795 = vmax.f32 %v1717, 0.0
  %v1796 = vmax.f32 %v1722, 0.0
  %v1797 = vmax.f32 %v1727, 0.0
  %v1798 = vmax.f32 %v1732, 0.0
  %v1799 = vmax.f32 %v1737, 0.0
  %v1800 = vmax.f32 %v1742, 0.0
  %v1801 = vmax.f32 %v1747, 0.0
  %v1802 = vmax.f32 %v1752, 0.0
  %v1803 = vmax.f32 %v1757, 0.0
  %v1804 = vmax.f32 %v1762, 0.0
  %v1805 = vmax.f32 %v1767, 0.0
  %v1806 = vmax.f32 %v1344, %v1770
  %v1807 = vmax.f32 %v1345, %v1771
  %v1808 = vmax.f32 %v1346, %v1772
  %v1809 = vmax.f32 %v1347, %v1773
  %v1810 = vmax.f32 %v1348, %v1774
  %v1811 = vmax.f32 %v1349, %v1775
  %v1812 = vmax.f32 %v1350, %v1776
  %v1813 = vmax.f32 %v1351, %v1777
  %v1814 = vmax.f32 %v1352, %v1778
  %v1815 = vmax.f32 %v1353, %v1779
  %v1816 = vmax.f32 %v1354, %v1780
  %v1817 = vmax.f32 %v1355, %v1781
  %v1818 = vmax.f32 %v1356, %v1782
  %v1819 = vmax.f32 %v1357, %v1783
  %v1820 = vmax.f32 %v1358, %v1784
  %v1821 = vmax.f32 %v1359, %v1785
  %v1822 = vmax.f32 %v1360, %v1786
  %v1823 = vmax.f32 %v1361, %v1787
  %v1824 = vmax.f32 %v1362, %v1788
  %v1825 = vmax.f32 %v1363, %v1789
  %v1826 = vmax.f32 %v1364, %v1790
  %v1827 = vmax.f32 %v1365, %v1791
  %v1828 = vmax.f32 %v1366, %v1792
  %v1829 = vmax.f32 %v1367, %v1793
  %v1830 = vmax.f32 %v1368, %v1794
  %v1831 = vmax.f32 %v1369, %v1795
  %v1832 = vmax.f32 %v1370, %v1796
  %v1833 = vmax.f32 %v1371, %v1797
  %v1834 = vmax.f32 %v1372, %v1798
  %v1835 = vmax.f32 %v1373, %v1799
  %v1836 = vmax.f32 %v1374, %v1800
  %v1837 = vmax.f32 %v1375, %v1801
  %v1838 = vmax.f32 %v1376, %v1802
  %v1839 = vmax.f32 %v1377, %v1803
  %v1840 = vmax.f32 %v1378, %v1804
  %v1841 = vmax.f32 %v1379, %v1805
  %1842 = vst [vmem:[%s3] sm:$0xff] %v1806
  %1843 = vst [vmem:[%s3 + $0x8] sm:$0xff] %v1807
  %1844 = vst [vmem:[%s3 + $0x10] sm:$0xff] %v1808
  %1845 = vst [vmem:[%s3 + $0x18] sm:$0xff] %v1809
  %1846 = vst [vmem:[%s3 + $0x20] sm:$0xff] %v1810
  %1847 = vst [vmem:[%s3 + $0x28] sm:$0xff] %v1811
  %1848 = vst [vmem:[%s3 + $0x30] sm:$0xff] %v1812
  %1849 = vst [vmem:[%s3 + $0x38] sm:$0xff] %v1813
  %1850 = vst [vmem:[%s3 + $0x40] sm:$0xff] %v1814
  %1851 = vst [vmem:[%s3 + $0x48] sm:$0xff] %v1815
  %1852 = vst [vmem:[%s3 + $0x50] sm:$0xff] %v1816
  %1853 = vst [vmem:[%s3 + $0x58] sm:$0xff] %v1817
  %1854 = vst [vmem:[%s3 + $0x60] sm:$0xff] %v1818
  %1855 = vst [vmem:[%s3 + $0x68] sm:$0xff] %v1819
  %1856 = vst [vmem:[%s3 + $0x70] sm:$0xff] %v1820
  %1857 = vst [vmem:[%s3 + $0x78] sm:$0xff] %v1821
  %1858 = vst [vmem:[%s3 + $0x80] sm:$0xff] %v1822
  %1859 = vst [vmem:[%s3 + $0x88] sm:$0xff] %v1823
  %1860 = vst [vmem:[%s3 + $0x90] sm:$0xff] %v1824
  %1861 = vst [vmem:[%s3 + $0x98] sm:$0xff] %v1825
  %1862 = vst [vmem:[%s3 + $0xa0] sm:$0xff] %v1826
  %1863 = vst [vmem:[%s3 + $0xa8] sm:$0xff] %v1827
  %1864 = vst [vmem:[%s3 + $0xb0] sm:$0xff] %v1828
  %1865 = vst [vmem:[%s3 + $0xb8] sm:$0xff] %v1829
  %1866 = vst [vmem:[%s3 + $0xc0] sm:$0xff] %v1830
  %1867 = vst [vmem:[%s3 + $0xc8] sm:$0xff] %v1831
  %1868 = vst [vmem:[%s3 + $0xd0] sm:$0xff] %v1832
  %1869 = vst [vmem:[%s3 + $0xd8] sm:$0xff] %v1833
  %1870 = vst [vmem:[%s3 + $0xe0] sm:$0xff] %v1834
  %1871 = vst [vmem:[%s3 + $0xe8] sm:$0xff] %v1835
  %1872 = vst [vmem:[%s3 + $0xf0] sm:$0xff] %v1836
  %1873 = vst [vmem:[%s3 + $0xf8] sm:$0xff] %v1837
  %1874 = vst [vmem:[%s3 + $0x100] sm:$0xff] %v1838
  %1875 = vst [vmem:[%s3 + $0x108] sm:$0xff] %v1839
  %1876 = vst [vmem:[%s3 + $0x110] sm:$0xff] %v1840
  %1877 = vst [vmem:[%s3 + $0x118] sm:$0xff] %v1841
  // Predicated region
  $region14: #{net5_forward.8} parent=0 // pred_check
    _
  $region15: #{net5_forward.8} parent=0 // pred_check_branch
    %1879 = sbr.rel (0) target = $region17
  $region16: #{net5_forward.8} parent=0 // pred_region
    _
  $region17: #{net5_forward.8} parent=0 // pred_fallthru
    _
  // Predicated region
  $region18: #{net5_forward.8} parent=0 // pred_check
    _
  $region19: #{net5_forward.8} parent=0 // pred_check_branch
    %1881 = sbr.rel (0) target = $region21
  $region20: #{net5_forward.8} parent=0 // pred_region
    _
  $region21: #{net5_forward.8} parent=0 // pred_fallthru
    _

// kernel: net5_forward.9
$region0: #{net5_forward.9}
  #allocation0 [shape = 'u32[]', space=smem, size = 0x4, offset = 0x4, fixed_abs, tag = 'smem constant byte address 0x4 - core index']
  #allocation1 [shape = 'u32[144,128]{1,0:T(1,128)}', space=vmem, size = 0x12000, scoped, tag = 'internal scratch']
  %s0 = inlined_call_operand.vmem [shape: f32[288,72], index: 0, kind: input, shape index: {}]
  %s1 = inlined_call_operand.vmem [shape: f32[72,128], index: 1, kind: input, shape index: {}]
  %s2 = inlined_call_operand.vmem [shape: f32[1,128], index: 2, kind: input, shape index: {}]
  %s3 = inlined_call_operand.vmem [shape: f32[288,128], index: 3, kind: output, shape index: {}]
  %s4 = sld [smem:[#allocation0]]
  $region22: #{net5_forward.9} parent=0
    _
  %s6 = ssub.s32 1, %s4
  %s7 = scalar_select 0, %s6, %s4
  // Predicated region
  $region2: #{net5_forward.9} parent=0 // pred_check
    _
  $region3: #{net5_forward.9} parent=0 // pred_check_branch
    %9 = sbr.rel (0) target = $region5
  $region4: #{net5_forward.9} parent=0 // pred_region
    _
  $region5: #{net5_forward.9} parent=0 // pred_fallthru
    _
  // Predicated region
  $region6: #{net5_forward.9} parent=0 // pred_check
    _
  $region7: #{net5_forward.9} parent=0 // pred_check_branch
    %11 = sbr.rel (0) target = $region9
  $region8: #{net5_forward.9} parent=0 // pred_region
    _
  $region9: #{net5_forward.9} parent=0 // pred_fallthru
    _
  // Predicated region
  $region10: #{net5_forward.9} parent=0 // pred_check
    _
  $region11: #{net5_forward.9} parent=0 // pred_check_branch
    %13 = sbr.rel (0) target = $region13
  $region12: #{net5_forward.9} parent=0 // pred_region
    _
  $region13: #{net5_forward.9} parent=0 // pred_fallthru
    _
  %v14 = vld [vmem:[%s0] sm:$0xff]
  %v15 = vld [vmem:[%s0 + $0x8] sm:$0xff]
  %v16 = vld [vmem:[%s0 + $0x10] sm:$0xff]
  %v17 = vld [vmem:[%s0 + $0x18] sm:$0xff]
  %v18 = vld [vmem:[%s0 + $0x20] sm:$0xff]
  %v19 = vld [vmem:[%s0 + $0x28] sm:$0xff]
  %v20 = vld [vmem:[%s0 + $0x30] sm:$0xff]
  %v21 = vld [vmem:[%s0 + $0x38] sm:$0xff]
  %v22 = vld [vmem:[%s0 + $0x40] sm:$0xff]
  %v23 = vld [vmem:[%s0 + $0x48] sm:$0xff]
  %v24 = vld [vmem:[%s0 + $0x50] sm:$0xff]
  %v25 = vld [vmem:[%s0 + $0x58] sm:$0xff]
  %v26 = vld [vmem:[%s0 + $0x60] sm:$0xff]
  %v27 = vld [vmem:[%s0 + $0x68] sm:$0xff]
  %v28 = vld [vmem:[%s0 + $0x70] sm:$0xff]
  %v29 = vld [vmem:[%s0 + $0x78] sm:$0xff]
  %v30 = vld [vmem:[%s0 + $0x80] sm:$0xff]
  %v31 = vld [vmem:[%s0 + $0x88] sm:$0xff]
  %v32 = vld [vmem:[%s0 + $0x90] sm:$0xff]
  %v33 = vld [vmem:[%s0 + $0x98] sm:$0xff]
  %v34 = vld [vmem:[%s0 + $0xa0] sm:$0xff]
  %v35 = vld [vmem:[%s0 + $0xa8] sm:$0xff]
  %v36 = vld [vmem:[%s0 + $0xb0] sm:$0xff]
  %v37 = vld [vmem:[%s0 + $0xb8] sm:$0xff]
  %v38 = vld [vmem:[%s0 + $0xc0] sm:$0xff]
  %v39 = vld [vmem:[%s0 + $0xc8] sm:$0xff]
  %v40 = vld [vmem:[%s0 + $0xd0] sm:$0xff]
  %v41 = vld [vmem:[%s0 + $0xd8] sm:$0xff]
  %v42 = vld [vmem:[%s0 + $0xe0] sm:$0xff]
  %v43 = vld [vmem:[%s0 + $0xe8] sm:$0xff]
  %v44 = vld [vmem:[%s0 + $0xf0] sm:$0xff]
  %v45 = vld [vmem:[%s0 + $0xf8] sm:$0xff]
  %v46 = vld [vmem:[%s0 + $0x100] sm:$0xff]
  %v47 = vld [vmem:[%s0 + $0x108] sm:$0xff]
  %v48 = vld [vmem:[%s0 + $0x110] sm:$0xff]
  %v49 = vld [vmem:[%s0 + $0x118] sm:$0xff]
  %v50 = vld [vmem:[%s1] sm:$0xff]
  %v51 = vld [vmem:[%s1 + $0x8] sm:$0xff]
  %v52 = vld [vmem:[%s1 + $0x10] sm:$0xff]
  %v53 = vld [vmem:[%s1 + $0x18] sm:$0xff]
  %v54 = vld [vmem:[%s1 + $0x20] sm:$0xff]
  %v55 = vld [vmem:[%s1 + $0x28] sm:$0xff]
  %v56 = vld [vmem:[%s1 + $0x30] sm:$0xff]
  %v57 = vld [vmem:[%s1 + $0x38] sm:$0xff]
  %v58 = vld [vmem:[%s1 + $0x40] sm:$0xff]
  %v59 = vld [vmem:[%s2] sm:$0x1]
  %v61 = vlaneseq
  %v62 = vshrl.u32 %v61, 7
  %v63 = vsub.s32 0, %v62
  %v64 = vrot.slane %v59, %v63
  %vm66 = vcmask 588800
  %v68 = vsel %vm66, %v14, 0
  %v71 = vsel %vm66, %v15, 0
  %v74 = vsel %vm66, %v16, 0
  %v77 = vsel %vm66, %v17, 0
  %v80 = vsel %vm66, %v18, 0
  %v83 = vsel %vm66, %v19, 0
  %v86 = vsel %vm66, %v20, 0
  %v89 = vsel %vm66, %v21, 0
  %v92 = vsel %vm66, %v22, 0
  %v95 = vsel %vm66, %v23, 0
  %v98 = vsel %vm66, %v24, 0
  %v101 = vsel %vm66, %v25, 0
  %v104 = vsel %vm66, %v26, 0
  %v107 = vsel %vm66, %v27, 0
  %v110 = vsel %vm66, %v28, 0
  %v113 = vsel %vm66, %v29, 0
  %v116 = vsel %vm66, %v30, 0
  %v119 = vsel %vm66, %v31, 0
  %v122 = vsel %vm66, %v32, 0
  %v125 = vsel %vm66, %v33, 0
  %v128 = vsel %vm66, %v34, 0
  %v131 = vsel %vm66, %v35, 0
  %v134 = vsel %vm66, %v36, 0
  %v137 = vsel %vm66, %v37, 0
  %v140 = vsel %vm66, %v38, 0
  %v143 = vsel %vm66, %v39, 0
  %v146 = vsel %vm66, %v40, 0
  %v149 = vsel %vm66, %v41, 0
  %v152 = vsel %vm66, %v42, 0
  %v155 = vsel %vm66, %v43, 0
  %v158 = vsel %vm66, %v44, 0
  %v161 = vsel %vm66, %v45, 0
  %v164 = vsel %vm66, %v46, 0
  %v167 = vsel %vm66, %v47, 0
  %v170 = vsel %vm66, %v48, 0
  %v173 = vsel %vm66, %v49, 0
  %175 = vmatprep.subr.mxu0 0.0
  %176 = vmatpush1.msra.mxu0 0.0
  %177 = vmatprep.subr.mxu0 0.0
  %178 = vmatpush1.msra.mxu0 0.0
  %179 = vmatprep.subr.mxu0 0.0
  %180 = vmatpush1.msra.mxu0 0.0
  %181 = vmatprep.subr.mxu0 0.0
  %182 = vmatpush1.msra.mxu0 0.0
  %183 = vmatprep.subr.mxu0 0.0
  %184 = vmatpush1.msra.mxu0 0.0
  %185 = vmatprep.subr.mxu0 0.0
  %186 = vmatpush1.msra.mxu0 0.0
  %187 = vmatprep.subr.mxu0 0.0
  %188 = vmatpush1.msra.mxu0 0.0
  %189 = vmatprep.subr.mxu0 0.0
  %190 = vmatpush1.msra.mxu0 %v58
  %191 = vmatprep.subr.mxu0 0.0
  %192 = vmatpush1.msra.mxu0 %v57
  %193 = vmatprep.subr.mxu0 0.0
  %194 = vmatpush1.msra.mxu0 %v56
  %195 = vmatprep.subr.mxu0 0.0
  %196 = vmatpush1.msra.mxu0 %v55
  %197 = vmatprep.subr.mxu0 0.0
  %198 = vmatpush1.msra.mxu0 %v54
  %199 = vmatprep.subr.mxu0 0.0
  %200 = vmatpush1.msra.mxu0 %v53
  %201 = vmatprep.subr.mxu0 0.0
  %202 = vmatpush1.msra.mxu0 %v52
  %203 = vmatprep.subr.mxu0 0.0
  %204 = vmatpush1.msra.mxu0 %v51
  %205 = vmatprep.subr.mxu0 0.0
  %206 = vmatpush1.msra.mxu0 %v50
  %207 = vmatprep.subr.mxu0 0.0
  %208 = vmatpush2.msra.mxu0 0.0
  %209 = vmatprep.subr.mxu0 0.0
  %210 = vmatpush2.msra.mxu0 0.0
  %211 = vmatprep.subr.mxu0 0.0
  %212 = vmatpush2.msra.mxu0 0.0
  %213 = vmatprep.subr.mxu0 0.0
  %214 = vmatpush2.msra.mxu0 0.0
  %215 = vmatprep.subr.mxu0 0.0
  %216 = vmatpush2.msra.mxu0 0.0
  %217 = vmatprep.subr.mxu0 0.0
  %218 = vmatpush2.msra.mxu0 0.0
  %219 = vmatprep.subr.mxu0 0.0
  %220 = vmatpush2.msra.mxu0 0.0
  %221 = vmatprep.subr.mxu0 0.0
  %222 = vmatpush2.msra.mxu0 0.0
  %223 = vmatprep.subr.mxu0 0.0
  %224 = vmatpush2.msra.mxu0 0.0
  %225 = vmatprep.subr.mxu0 0.0
  %226 = vmatpush2.msra.mxu0 0.0
  %227 = vmatprep.subr.mxu0 0.0
  %228 = vmatpush2.msra.mxu0 0.0
  %229 = vmatprep.subr.mxu0 0.0
  %230 = vmatpush2.msra.mxu0 0.0
  %231 = vmatprep.subr.mxu0 0.0
  %232 = vmatpush2.msra.mxu0 0.0
  %233 = vmatprep.subr.mxu0 0.0
  %234 = vmatpush2.msra.mxu0 0.0
  %235 = vmatprep.subr.mxu0 0.0
  %236 = vmatpush2.msra.mxu0 0.0
  %237 = vmatprep.subr.mxu0 0.0
  %238 = vmatpush2.msra.mxu0 0.0
  %239 = vmatprep.mubr.f32.mxu0 0.0
  %240 = vmatmul.mubr.f32.gmra.mxu0 %v68
  %v241 = vpop.f32.mrf.mxu0
  %v242 = vadd.f32 %v64, %v241
  %v243 = vpop.f32.mrf.mxu0
  %244 = vmatprep.mubr.f32.mxu0 0.0
  %245 = vmatmul.mubr.f32.gmra.mxu0 %v71
  %v246 = vpop.f32.mrf.mxu0
  %v247 = vadd.f32 %v64, %v246
  %v248 = vpop.f32.mrf.mxu0
  %249 = vmatprep.mubr.f32.mxu0 0.0
  %250 = vmatmul.mubr.f32.gmra.mxu0 %v74
  %v251 = vpop.f32.mrf.mxu0
  %v252 = vadd.f32 %v64, %v251
  %v253 = vpop.f32.mrf.mxu0
  %254 = vmatprep.mubr.f32.mxu0 0.0
  %255 = vmatmul.mubr.f32.gmra.mxu0 %v77
  %v256 = vpop.f32.mrf.mxu0
  %v257 = vadd.f32 %v64, %v256
  %v258 = vpop.f32.mrf.mxu0
  %259 = vmatprep.mubr.f32.mxu0 0.0
  %260 = vmatmul.mubr.f32.gmra.mxu0 %v80
  %v261 = vpop.f32.mrf.mxu0
  %v262 = vadd.f32 %v64, %v261
  %v263 = vpop.f32.mrf.mxu0
  %264 = vmatprep.mubr.f32.mxu0 0.0
  %265 = vmatmul.mubr.f32.gmra.mxu0 %v83
  %v266 = vpop.f32.mrf.mxu0
  %v267 = vadd.f32 %v64, %v266
  %v268 = vpop.f32.mrf.mxu0
  %269 = vmatprep.mubr.f32.mxu0 0.0
  %270 = vmatmul.mubr.f32.gmra.mxu0 %v86
  %v271 = vpop.f32.mrf.mxu0
  %v272 = vadd.f32 %v64, %v271
  %v273 = vpop.f32.mrf.mxu0
  %274 = vmatprep.mubr.f32.mxu0 0.0
  %275 = vmatmul.mubr.f32.gmra.mxu0 %v89
  %v276 = vpop.f32.mrf.mxu0
  %v277 = vadd.f32 %v64, %v276
  %v278 = vpop.f32.mrf.mxu0
  %279 = vmatprep.mubr.f32.mxu0 0.0
  %280 = vmatmul.mubr.f32.gmra.mxu0 %v92
  %v281 = vpop.f32.mrf.mxu0
  %v282 = vadd.f32 %v64, %v281
  %v283 = vpop.f32.mrf.mxu0
  %284 = vmatprep.mubr.f32.mxu0 0.0
  %285 = vmatmul.mubr.f32.gmra.mxu0 %v95
  %v286 = vpop.f32.mrf.mxu0
  %v287 = vadd.f32 %v64, %v286
  %v288 = vpop.f32.mrf.mxu0
  %289 = vmatprep.mubr.f32.mxu0 0.0
  %290 = vmatmul.mubr.f32.gmra.mxu0 %v98
  %v291 = vpop.f32.mrf.mxu0
  %v292 = vadd.f32 %v64, %v291
  %v293 = vpop.f32.mrf.mxu0
  %294 = vmatprep.mubr.f32.mxu0 0.0
  %295 = vmatmul.mubr.f32.gmra.mxu0 %v101
  %v296 = vpop.f32.mrf.mxu0
  %v297 = vadd.f32 %v64, %v296
  %v298 = vpop.f32.mrf.mxu0
  %299 = vmatprep.mubr.f32.mxu0 0.0
  %300 = vmatmul.mubr.f32.gmra.mxu0 %v104
  %v301 = vpop.f32.mrf.mxu0
  %v302 = vadd.f32 %v64, %v301
  %v303 = vpop.f32.mrf.mxu0
  %304 = vmatprep.mubr.f32.mxu0 0.0
  %305 = vmatmul.mubr.f32.gmra.mxu0 %v107
  %v306 = vpop.f32.mrf.mxu0
  %v307 = vadd.f32 %v64, %v306
  %v308 = vpop.f32.mrf.mxu0
  %309 = vmatprep.mubr.f32.mxu0 0.0
  %310 = vmatmul.mubr.f32.gmra.mxu0 %v110
  %v311 = vpop.f32.mrf.mxu0
  %v312 = vadd.f32 %v64, %v311
  %v313 = vpop.f32.mrf.mxu0
  %314 = vmatprep.mubr.f32.mxu0 0.0
  %315 = vmatmul.mubr.f32.gmra.mxu0 %v113
  %v316 = vpop.f32.mrf.mxu0
  %v317 = vadd.f32 %v64, %v316
  %v318 = vpop.f32.mrf.mxu0
  %319 = vmatprep.mubr.f32.mxu0 0.0
  %320 = vmatmul.mubr.f32.gmra.mxu0 %v116
  %v321 = vpop.f32.mrf.mxu0
  %v322 = vadd.f32 %v64, %v321
  %v323 = vpop.f32.mrf.mxu0
  %324 = vmatprep.mubr.f32.mxu0 0.0
  %325 = vmatmul.mubr.f32.gmra.mxu0 %v119
  %v326 = vpop.f32.mrf.mxu0
  %v327 = vadd.f32 %v64, %v326
  %v328 = vpop.f32.mrf.mxu0
  %329 = vmatprep.mubr.f32.mxu0 0.0
  %330 = vmatmul.mubr.f32.gmra.mxu0 %v122
  %v331 = vpop.f32.mrf.mxu0
  %v332 = vadd.f32 %v64, %v331
  %v333 = vpop.f32.mrf.mxu0
  %334 = vmatprep.mubr.f32.mxu0 0.0
  %335 = vmatmul.mubr.f32.gmra.mxu0 %v125
  %v336 = vpop.f32.mrf.mxu0
  %v337 = vadd.f32 %v64, %v336
  %v338 = vpop.f32.mrf.mxu0
  %339 = vmatprep.mubr.f32.mxu0 0.0
  %340 = vmatmul.mubr.f32.gmra.mxu0 %v128
  %v341 = vpop.f32.mrf.mxu0
  %v342 = vadd.f32 %v64, %v341
  %v343 = vpop.f32.mrf.mxu0
  %344 = vmatprep.mubr.f32.mxu0 0.0
  %345 = vmatmul.mubr.f32.gmra.mxu0 %v131
  %v346 = vpop.f32.mrf.mxu0
  %v347 = vadd.f32 %v64, %v346
  %v348 = vpop.f32.mrf.mxu0
  %349 = vmatprep.mubr.f32.mxu0 0.0
  %350 = vmatmul.mubr.f32.gmra.mxu0 %v134
  %v351 = vpop.f32.mrf.mxu0
  %v352 = vadd.f32 %v64, %v351
  %v353 = vpop.f32.mrf.mxu0
  %354 = vmatprep.mubr.f32.mxu0 0.0
  %355 = vmatmul.mubr.f32.gmra.mxu0 %v137
  %v356 = vpop.f32.mrf.mxu0
  %v357 = vadd.f32 %v64, %v356
  %v358 = vpop.f32.mrf.mxu0
  %359 = vmatprep.mubr.f32.mxu0 0.0
  %360 = vmatmul.mubr.f32.gmra.mxu0 %v140
  %v361 = vpop.f32.mrf.mxu0
  %v362 = vadd.f32 %v64, %v361
  %v363 = vpop.f32.mrf.mxu0
  %364 = vmatprep.mubr.f32.mxu0 0.0
  %365 = vmatmul.mubr.f32.gmra.mxu0 %v143
  %v366 = vpop.f32.mrf.mxu0
  %v367 = vadd.f32 %v64, %v366
  %v368 = vpop.f32.mrf.mxu0
  %369 = vmatprep.mubr.f32.mxu0 0.0
  %370 = vmatmul.mubr.f32.gmra.mxu0 %v146
  %v371 = vpop.f32.mrf.mxu0
  %v372 = vadd.f32 %v64, %v371
  %v373 = vpop.f32.mrf.mxu0
  %374 = vmatprep.mubr.f32.mxu0 0.0
  %375 = vmatmul.mubr.f32.gmra.mxu0 %v149
  %v376 = vpop.f32.mrf.mxu0
  %v377 = vadd.f32 %v64, %v376
  %v378 = vpop.f32.mrf.mxu0
  %379 = vmatprep.mubr.f32.mxu0 0.0
  %380 = vmatmul.mubr.f32.gmra.mxu0 %v152
  %v381 = vpop.f32.mrf.mxu0
  %v382 = vadd.f32 %v64, %v381
  %v383 = vpop.f32.mrf.mxu0
  %384 = vmatprep.mubr.f32.mxu0 0.0
  %385 = vmatmul.mubr.f32.gmra.mxu0 %v155
  %v386 = vpop.f32.mrf.mxu0
  %v387 = vadd.f32 %v64, %v386
  %v388 = vpop.f32.mrf.mxu0
  %389 = vmatprep.mubr.f32.mxu0 0.0
  %390 = vmatmul.mubr.f32.gmra.mxu0 %v158
  %v391 = vpop.f32.mrf.mxu0
  %v392 = vadd.f32 %v64, %v391
  %v393 = vpop.f32.mrf.mxu0
  %394 = vmatprep.mubr.f32.mxu0 0.0
  %395 = vmatmul.mubr.f32.gmra.mxu0 %v161
  %v396 = vpop.f32.mrf.mxu0
  %v397 = vadd.f32 %v64, %v396
  %v398 = vpop.f32.mrf.mxu0
  %399 = vmatprep.mubr.f32.mxu0 0.0
  %400 = vmatmul.mubr.f32.gmra.mxu0 %v164
  %v401 = vpop.f32.mrf.mxu0
  %v402 = vadd.f32 %v64, %v401
  %v403 = vpop.f32.mrf.mxu0
  %404 = vmatprep.mubr.f32.mxu0 0.0
  %405 = vmatmul.mubr.f32.gmra.mxu0 %v167
  %v406 = vpop.f32.mrf.mxu0
  %v407 = vadd.f32 %v64, %v406
  %v408 = vpop.f32.mrf.mxu0
  %409 = vmatprep.mubr.f32.mxu0 0.0
  %410 = vmatmul.mubr.f32.gmra.mxu0 %v170
  %v411 = vpop.f32.mrf.mxu0
  %v412 = vadd.f32 %v64, %v411
  %v413 = vpop.f32.mrf.mxu0
  %414 = vmatprep.mubr.f32.mxu0 0.0
  %415 = vmatmul.mubr.f32.gmra.mxu0 %v173
  %v416 = vpop.f32.mrf.mxu0
  %v417 = vadd.f32 %v64, %v416
  %v418 = vpop.f32.mrf.mxu0
  %419 = vdwg.mxu0
  %v420 = vmax.f32 %v242, 0.0
  %v421 = vmax.f32 %v247, 0.0
  %v422 = vmax.f32 %v252, 0.0
  %v423 = vmax.f32 %v257, 0.0
  %v424 = vmax.f32 %v262, 0.0
  %v425 = vmax.f32 %v267, 0.0
  %v426 = vmax.f32 %v272, 0.0
  %v427 = vmax.f32 %v277, 0.0
  %v428 = vmax.f32 %v282, 0.0
  %v429 = vmax.f32 %v287, 0.0
  %v430 = vmax.f32 %v292, 0.0
  %v431 = vmax.f32 %v297, 0.0
  %v432 = vmax.f32 %v302, 0.0
  %v433 = vmax.f32 %v307, 0.0
  %v434 = vmax.f32 %v312, 0.0
  %v435 = vmax.f32 %v317, 0.0
  %v436 = vmax.f32 %v322, 0.0
  %v437 = vmax.f32 %v327, 0.0
  %v438 = vmax.f32 %v332, 0.0
  %v439 = vmax.f32 %v337, 0.0
  %v440 = vmax.f32 %v342, 0.0
  %v441 = vmax.f32 %v347, 0.0
  %v442 = vmax.f32 %v352, 0.0
  %v443 = vmax.f32 %v357, 0.0
  %v444 = vmax.f32 %v362, 0.0
  %v445 = vmax.f32 %v367, 0.0
  %v446 = vmax.f32 %v372, 0.0
  %v447 = vmax.f32 %v377, 0.0
  %v448 = vmax.f32 %v382, 0.0
  %v449 = vmax.f32 %v387, 0.0
  %v450 = vmax.f32 %v392, 0.0
  %v451 = vmax.f32 %v397, 0.0
  %v452 = vmax.f32 %v402, 0.0
  %v453 = vmax.f32 %v407, 0.0
  %v454 = vmax.f32 %v412, 0.0
  %v455 = vmax.f32 %v417, 0.0
  %456 = vst [vmem:[%s3] sm:$0xff] %v420
  %457 = vst [vmem:[%s3 + $0x8] sm:$0xff] %v421
  %458 = vst [vmem:[%s3 + $0x10] sm:$0xff] %v422
  %459 = vst [vmem:[%s3 + $0x18] sm:$0xff] %v423
  %460 = vst [vmem:[%s3 + $0x20] sm:$0xff] %v424
  %461 = vst [vmem:[%s3 + $0x28] sm:$0xff] %v425
  %462 = vst [vmem:[%s3 + $0x30] sm:$0xff] %v426
  %463 = vst [vmem:[%s3 + $0x38] sm:$0xff] %v427
  %464 = vst [vmem:[%s3 + $0x40] sm:$0xff] %v428
  %465 = vst [vmem:[%s3 + $0x48] sm:$0xff] %v429
  %466 = vst [vmem:[%s3 + $0x50] sm:$0xff] %v430
  %467 = vst [vmem:[%s3 + $0x58] sm:$0xff] %v431
  %468 = vst [vmem:[%s3 + $0x60] sm:$0xff] %v432
  %469 = vst [vmem:[%s3 + $0x68] sm:$0xff] %v433
  %470 = vst [vmem:[%s3 + $0x70] sm:$0xff] %v434
  %471 = vst [vmem:[%s3 + $0x78] sm:$0xff] %v435
  %472 = vst [vmem:[%s3 + $0x80] sm:$0xff] %v436
  %473 = vst [vmem:[%s3 + $0x88] sm:$0xff] %v437
  %474 = vst [vmem:[%s3 + $0x90] sm:$0xff] %v438
  %475 = vst [vmem:[%s3 + $0x98] sm:$0xff] %v439
  %476 = vst [vmem:[%s3 + $0xa0] sm:$0xff] %v440
  %477 = vst [vmem:[%s3 + $0xa8] sm:$0xff] %v441
  %478 = vst [vmem:[%s3 + $0xb0] sm:$0xff] %v442
  %479 = vst [vmem:[%s3 + $0xb8] sm:$0xff] %v443
  %480 = vst [vmem:[%s3 + $0xc0] sm:$0xff] %v444
  %481 = vst [vmem:[%s3 + $0xc8] sm:$0xff] %v445
  %482 = vst [vmem:[%s3 + $0xd0] sm:$0xff] %v446
  %483 = vst [vmem:[%s3 + $0xd8] sm:$0xff] %v447
  %484 = vst [vmem:[%s3 + $0xe0] sm:$0xff] %v448
  %485 = vst [vmem:[%s3 + $0xe8] sm:$0xff] %v449
  %486 = vst [vmem:[%s3 + $0xf0] sm:$0xff] %v450
  %487 = vst [vmem:[%s3 + $0xf8] sm:$0xff] %v451
  %488 = vst [vmem:[%s3 + $0x100] sm:$0xff] %v452
  %489 = vst [vmem:[%s3 + $0x108] sm:$0xff] %v453
  %490 = vst [vmem:[%s3 + $0x110] sm:$0xff] %v454
  %491 = vst [vmem:[%s3 + $0x118] sm:$0xff] %v455
  // Predicated region
  $region14: #{net5_forward.9} parent=0 // pred_check
    _
  $region15: #{net5_forward.9} parent=0 // pred_check_branch
    %493 = sbr.rel (0) target = $region17
  $region16: #{net5_forward.9} parent=0 // pred_region
    _
  $region17: #{net5_forward.9} parent=0 // pred_fallthru
    _
  // Predicated region
  $region18: #{net5_forward.9} parent=0 // pred_check
    _
  $region19: #{net5_forward.9} parent=0 // pred_check_branch
    %495 = sbr.rel (0) target = $region21
  $region20: #{net5_forward.9} parent=0 // pred_region
    _
  $region21: #{net5_forward.9} parent=0 // pred_fallthru
    _

// kernel: net5_forward.10
$region0: #{net5_forward.10}
  #allocation0 [shape = 'u32[]', space=smem, size = 0x4, offset = 0x4, fixed_abs, tag = 'smem constant byte address 0x4 - core index']
  #allocation1 [shape = 'u32[144,128]{1,0:T(1,128)}', space=vmem, size = 0x12000, scoped, tag = 'internal scratch']
  %s0 = inlined_call_operand.vmem [shape: f32[4,56,144], index: 0, kind: input, shape index: {}]
  %s1 = inlined_call_operand.vmem [shape: f32[144,128], index: 1, kind: input, shape index: {}]
  %s2 = inlined_call_operand.vmem [shape: f32[1,128], index: 2, kind: input, shape index: {}]
  %s3 = inlined_call_operand.vmem [shape: f32[56,128], index: 3, kind: output, shape index: {}]
  %s4 = sld [smem:[#allocation0]]
  $region22: #{net5_forward.10} parent=0
    _
  %s6 = ssub.s32 1, %s4
  %s7 = scalar_select 0, %s6, %s4
  // Predicated region
  $region2: #{net5_forward.10} parent=0 // pred_check
    _
  $region3: #{net5_forward.10} parent=0 // pred_check_branch
    %9 = sbr.rel (0) target = $region5
  $region4: #{net5_forward.10} parent=0 // pred_region
    _
  $region5: #{net5_forward.10} parent=0 // pred_fallthru
    _
  // Predicated region
  $region6: #{net5_forward.10} parent=0 // pred_check
    _
  $region7: #{net5_forward.10} parent=0 // pred_check_branch
    %11 = sbr.rel (0) target = $region9
  $region8: #{net5_forward.10} parent=0 // pred_region
    _
  $region9: #{net5_forward.10} parent=0 // pred_fallthru
    _
  // Predicated region
  $region10: #{net5_forward.10} parent=0 // pred_check
    _
  $region11: #{net5_forward.10} parent=0 // pred_check_branch
    %13 = sbr.rel (0) target = $region13
  $region12: #{net5_forward.10} parent=0 // pred_region
    _
  $region13: #{net5_forward.10} parent=0 // pred_fallthru
    _
  %v14 = vld [vmem:[%s1] sm:$0xff]
  %v15 = vld [vmem:[%s1 + $0x8] sm:$0xff]
  %v16 = vld [vmem:[%s1 + $0x10] sm:$0xff]
  %v17 = vld [vmem:[%s1 + $0x18] sm:$0xff]
  %v18 = vld [vmem:[%s1 + $0x20] sm:$0xff]
  %v19 = vld [vmem:[%s1 + $0x28] sm:$0xff]
  %v20 = vld [vmem:[%s1 + $0x30] sm:$0xff]
  %v21 = vld [vmem:[%s1 + $0x38] sm:$0xff]
  %v22 = vld [vmem:[%s1 + $0x40] sm:$0xff]
  %v23 = vld [vmem:[%s1 + $0x48] sm:$0xff]
  %v24 = vld [vmem:[%s1 + $0x50] sm:$0xff]
  %v25 = vld [vmem:[%s1 + $0x58] sm:$0xff]
  %v26 = vld [vmem:[%s1 + $0x60] sm:$0xff]
  %v27 = vld [vmem:[%s1 + $0x68] sm:$0xff]
  %v28 = vld [vmem:[%s1 + $0x70] sm:$0xff]
  %v29 = vld [vmem:[%s1 + $0x78] sm:$0xff]
  %v30 = vld [vmem:[%s1 + $0x80] sm:$0xff]
  %v31 = vld [vmem:[%s1 + $0x88] sm:$0xff]
  %v32 = vld [vmem:[%s2] sm:$0x1]
  %v33 = vld [vmem:[%s0] sm:$0xff]
  %v34 = vld [vmem:[%s0 + $0x8] sm:$0xff]
  %v35 = vld [vmem:[%s0 + $0x10] sm:$0xff]
  %v36 = vld [vmem:[%s0 + $0x18] sm:$0xff]
  %v37 = vld [vmem:[%s0 + $0x20] sm:$0xff]
  %v38 = vld [vmem:[%s0 + $0x28] sm:$0xff]
  %v39 = vld [vmem:[%s0 + $0x30] sm:$0xff]
  %v40 = vld [vmem:[%s0 + $0x38] sm:$0xff]
  %v41 = vld [vmem:[%s0 + $0x40] sm:$0xff]
  %v42 = vld [vmem:[%s0 + $0x48] sm:$0xff]
  %v43 = vld [vmem:[%s0 + $0x50] sm:$0xff]
  %v44 = vld [vmem:[%s0 + $0x58] sm:$0xff]
  %v45 = vld [vmem:[%s0 + $0x60] sm:$0xff]
  %v46 = vld [vmem:[%s0 + $0x68] sm:$0xff]
  %v48 = vlaneseq
  %v49 = vshrl.u32 %v48, 7
  %v50 = vsub.s32 0, %v49
  %v51 = vrot.slane %v32, %v50
  %vm53 = vcmask 130048
  %v55 = vsel %vm53, %v34, 0
  %v58 = vsel %vm53, %v36, 0
  %v61 = vsel %vm53, %v38, 0
  %v64 = vsel %vm53, %v40, 0
  %v67 = vsel %vm53, %v42, 0
  %v70 = vsel %vm53, %v44, 0
  %v73 = vsel %vm53, %v46, 0
  %75 = vmatprep.subr.mxu0 0.0
  %76 = vmatpush1.msra.mxu0 %v29
  %77 = vmatprep.subr.mxu0 0.0
  %78 = vmatpush1.msra.mxu0 %v28
  %79 = vmatprep.subr.mxu0 0.0
  %80 = vmatpush1.msra.mxu0 %v27
  %81 = vmatprep.subr.mxu0 0.0
  %82 = vmatpush1.msra.mxu0 %v26
  %83 = vmatprep.subr.mxu0 0.0
  %84 = vmatpush1.msra.mxu0 %v25
  %85 = vmatprep.subr.mxu0 0.0
  %86 = vmatpush1.msra.mxu0 %v24
  %87 = vmatprep.subr.mxu0 0.0
  %88 = vmatpush1.msra.mxu0 %v23
  %89 = vmatprep.subr.mxu0 0.0
  %90 = vmatpush1.msra.mxu0 %v22
  %91 = vmatprep.subr.mxu0 0.0
  %92 = vmatpush1.msra.mxu0 %v21
  %93 = vmatprep.subr.mxu0 0.0
  %94 = vmatpush1.msra.mxu0 %v20
  %95 = vmatprep.subr.mxu0 0.0
  %96 = vmatpush1.msra.mxu0 %v19
  %97 = vmatprep.subr.mxu0 0.0
  %98 = vmatpush1.msra.mxu0 %v18
  %99 = vmatprep.subr.mxu0 0.0
  %100 = vmatpush1.msra.mxu0 %v17
  %101 = vmatprep.subr.mxu0 0.0
  %102 = vmatpush1.msra.mxu0 %v16
  %103 = vmatprep.subr.mxu0 0.0
  %104 = vmatpush1.msra.mxu0 %v15
  %105 = vmatprep.subr.mxu0 0.0
  %106 = vmatpush1.msra.mxu0 %v14
  %107 = vmatprep.subr.mxu0 0.0
  %108 = vmatpush2.msra.mxu0 0.0
  %109 = vmatprep.subr.mxu0 0.0
  %110 = vmatpush2.msra.mxu0 0.0
  %111 = vmatprep.subr.mxu0 0.0
  %112 = vmatpush2.msra.mxu0 0.0
  %113 = vmatprep.subr.mxu0 0.0
  %114 = vmatpush2.msra.mxu0 0.0
  %115 = vmatprep.subr.mxu0 0.0
  %116 = vmatpush2.msra.mxu0 0.0
  %117 = vmatprep.subr.mxu0 0.0
  %118 = vmatpush2.msra.mxu0 0.0
  %119 = vmatprep.subr.mxu0 0.0
  %120 = vmatpush2.msra.mxu0 0.0
  %121 = vmatprep.subr.mxu0 0.0
  %122 = vmatpush2.msra.mxu0 0.0
  %123 = vmatprep.subr.mxu0 0.0
  %124 = vmatpush2.msra.mxu0 0.0
  %125 = vmatprep.subr.mxu0 0.0
  %126 = vmatpush2.msra.mxu0 0.0
  %127 = vmatprep.subr.mxu0 0.0
  %128 = vmatpush2.msra.mxu0 0.0
  %129 = vmatprep.subr.mxu0 0.0
  %130 = vmatpush2.msra.mxu0 0.0
  %131 = vmatprep.subr.mxu0 0.0
  %132 = vmatpush2.msra.mxu0 0.0
  %133 = vmatprep.subr.mxu0 0.0
  %134 = vmatpush2.msra.mxu0 0.0
  %135 = vmatprep.subr.mxu0 0.0
  %136 = vmatpush2.msra.mxu0 %v31
  %137 = vmatprep.subr.mxu0 0.0
  %138 = vmatpush2.msra.mxu0 %v30
  %139 = vmatprep.mubr.f32.mxu0 %v55
  %140 = vmatmul.mubr.f32.gmra.mxu0 %v33
  %v141 = vpop.f32.mrf.mxu0
  %v142 = vadd.f32 %v51, %v141
  %v143 = vpop.f32.mrf.mxu0
  %144 = vmatprep.mubr.f32.mxu0 %v58
  %145 = vmatmul.mubr.f32.gmra.mxu0 %v35
  %v146 = vpop.f32.mrf.mxu0
  %v147 = vadd.f32 %v51, %v146
  %v148 = vpop.f32.mrf.mxu0
  %149 = vmatprep.mubr.f32.mxu0 %v61
  %150 = vmatmul.mubr.f32.gmra.mxu0 %v37
  %v151 = vpop.f32.mrf.mxu0
  %v152 = vadd.f32 %v51, %v151
  %v153 = vpop.f32.mrf.mxu0
  %154 = vmatprep.mubr.f32.mxu0 %v64
  %155 = vmatmul.mubr.f32.gmra.mxu0 %v39
  %v156 = vpop.f32.mrf.mxu0
  %v157 = vadd.f32 %v51, %v156
  %v158 = vpop.f32.mrf.mxu0
  %159 = vmatprep.mubr.f32.mxu0 %v67
  %160 = vmatmul.mubr.f32.gmra.mxu0 %v41
  %v161 = vpop.f32.mrf.mxu0
  %v162 = vadd.f32 %v51, %v161
  %v163 = vpop.f32.mrf.mxu0
  %164 = vmatprep.mubr.f32.mxu0 %v70
  %165 = vmatmul.mubr.f32.gmra.mxu0 %v43
  %v166 = vpop.f32.mrf.mxu0
  %v167 = vadd.f32 %v51, %v166
  %v168 = vpop.f32.mrf.mxu0
  %169 = vmatprep.mubr.f32.mxu0 %v73
  %170 = vmatmul.mubr.f32.gmra.mxu0 %v45
  %v171 = vpop.f32.mrf.mxu0
  %v172 = vadd.f32 %v51, %v171
  %v173 = vpop.f32.mrf.mxu0
  %174 = vdwg.mxu0
  %v175 = vmax.f32 %v142, 0.0
  %v176 = vmax.f32 %v147, 0.0
  %v177 = vmax.f32 %v152, 0.0
  %v178 = vmax.f32 %v157, 0.0
  %v179 = vmax.f32 %v162, 0.0
  %v180 = vmax.f32 %v167, 0.0
  %v181 = vmax.f32 %v172, 0.0
  %s182 = scalar_lea.vmem %s0, 112
  %v183 = vld [vmem:[%s182] sm:$0xff]
  %v184 = vld [vmem:[%s182 + $0x8] sm:$0xff]
  %v185 = vld [vmem:[%s182 + $0x10] sm:$0xff]
  %v186 = vld [vmem:[%s182 + $0x18] sm:$0xff]
  %v187 = vld [vmem:[%s182 + $0x20] sm:$0xff]
  %v188 = vld [vmem:[%s182 + $0x28] sm:$0xff]
  %v189 = vld [vmem:[%s182 + $0x30] sm:$0xff]
  %v190 = vld [vmem:[%s182 + $0x38] sm:$0xff]
  %v191 = vld [vmem:[%s182 + $0x40] sm:$0xff]
  %v192 = vld [vmem:[%s182 + $0x48] sm:$0xff]
  %v193 = vld [vmem:[%s182 + $0x50] sm:$0xff]
  %v194 = vld [vmem:[%s182 + $0x58] sm:$0xff]
  %v195 = vld [vmem:[%s182 + $0x60] sm:$0xff]
  %v196 = vld [vmem:[%s182 + $0x68] sm:$0xff]
  %v198 = vsel %vm53, %v184, 0
  %v201 = vsel %vm53, %v186, 0
  %v204 = vsel %vm53, %v188, 0
  %v207 = vsel %vm53, %v190, 0
  %v210 = vsel %vm53, %v192, 0
  %v213 = vsel %vm53, %v194, 0
  %v216 = vsel %vm53, %v196, 0
  %218 = vmatprep.subr.mxu0 0.0
  %219 = vmatpush1.msra.mxu0 %v29
  %220 = vmatprep.subr.mxu0 0.0
  %221 = vmatpush1.msra.mxu0 %v28
  %222 = vmatprep.subr.mxu0 0.0
  %223 = vmatpush1.msra.mxu0 %v27
  %224 = vmatprep.subr.mxu0 0.0
  %225 = vmatpush1.msra.mxu0 %v26
  %226 = vmatprep.subr.mxu0 0.0
  %227 = vmatpush1.msra.mxu0 %v25
  %228 = vmatprep.subr.mxu0 0.0
  %229 = vmatpush1.msra.mxu0 %v24
  %230 = vmatprep.subr.mxu0 0.0
  %231 = vmatpush1.msra.mxu0 %v23
  %232 = vmatprep.subr.mxu0 0.0
  %233 = vmatpush1.msra.mxu0 %v22
  %234 = vmatprep.subr.mxu0 0.0
  %235 = vmatpush1.msra.mxu0 %v21
  %236 = vmatprep.subr.mxu0 0.0
  %237 = vmatpush1.msra.mxu0 %v20
  %238 = vmatprep.subr.mxu0 0.0
  %239 = vmatpush1.msra.mxu0 %v19
  %240 = vmatprep.subr.mxu0 0.0
  %241 = vmatpush1.msra.mxu0 %v18
  %242 = vmatprep.subr.mxu0 0.0
  %243 = vmatpush1.msra.mxu0 %v17
  %244 = vmatprep.subr.mxu0 0.0
  %245 = vmatpush1.msra.mxu0 %v16
  %246 = vmatprep.subr.mxu0 0.0
  %247 = vmatpush1.msra.mxu0 %v15
  %248 = vmatprep.subr.mxu0 0.0
  %249 = vmatpush1.msra.mxu0 %v14
  %250 = vmatprep.subr.mxu0 0.0
  %251 = vmatpush2.msra.mxu0 0.0
  %252 = vmatprep.subr.mxu0 0.0
  %253 = vmatpush2.msra.mxu0 0.0
  %254 = vmatprep.subr.mxu0 0.0
  %255 = vmatpush2.msra.mxu0 0.0
  %256 = vmatprep.subr.mxu0 0.0
  %257 = vmatpush2.msra.mxu0 0.0
  %258 = vmatprep.subr.mxu0 0.0
  %259 = vmatpush2.msra.mxu0 0.0
  %260 = vmatprep.subr.mxu0 0.0
  %261 = vmatpush2.msra.mxu0 0.0
  %262 = vmatprep.subr.mxu0 0.0
  %263 = vmatpush2.msra.mxu0 0.0
  %264 = vmatprep.subr.mxu0 0.0
  %265 = vmatpush2.msra.mxu0 0.0
  %266 = vmatprep.subr.mxu0 0.0
  %267 = vmatpush2.msra.mxu0 0.0
  %268 = vmatprep.subr.mxu0 0.0
  %269 = vmatpush2.msra.mxu0 0.0
  %270 = vmatprep.subr.mxu0 0.0
  %271 = vmatpush2.msra.mxu0 0.0
  %272 = vmatprep.subr.mxu0 0.0
  %273 = vmatpush2.msra.mxu0 0.0
  %274 = vmatprep.subr.mxu0 0.0
  %275 = vmatpush2.msra.mxu0 0.0
  %276 = vmatprep.subr.mxu0 0.0
  %277 = vmatpush2.msra.mxu0 0.0
  %278 = vmatprep.subr.mxu0 0.0
  %279 = vmatpush2.msra.mxu0 %v31
  %280 = vmatprep.subr.mxu0 0.0
  %281 = vmatpush2.msra.mxu0 %v30
  %282 = vmatprep.mubr.f32.mxu0 %v198
  %283 = vmatmul.mubr.f32.gmra.mxu0 %v183
  %v284 = vpop.f32.mrf.mxu0
  %v285 = vadd.f32 %v51, %v284
  %v286 = vpop.f32.mrf.mxu0
  %287 = vmatprep.mubr.f32.mxu0 %v201
  %288 = vmatmul.mubr.f32.gmra.mxu0 %v185
  %v289 = vpop.f32.mrf.mxu0
  %v290 = vadd.f32 %v51, %v289
  %v291 = vpop.f32.mrf.mxu0
  %292 = vmatprep.mubr.f32.mxu0 %v204
  %293 = vmatmul.mubr.f32.gmra.mxu0 %v187
  %v294 = vpop.f32.mrf.mxu0
  %v295 = vadd.f32 %v51, %v294
  %v296 = vpop.f32.mrf.mxu0
  %297 = vmatprep.mubr.f32.mxu0 %v207
  %298 = vmatmul.mubr.f32.gmra.mxu0 %v189
  %v299 = vpop.f32.mrf.mxu0
  %v300 = vadd.f32 %v51, %v299
  %v301 = vpop.f32.mrf.mxu0
  %302 = vmatprep.mubr.f32.mxu0 %v210
  %303 = vmatmul.mubr.f32.gmra.mxu0 %v191
  %v304 = vpop.f32.mrf.mxu0
  %v305 = vadd.f32 %v51, %v304
  %v306 = vpop.f32.mrf.mxu0
  %307 = vmatprep.mubr.f32.mxu0 %v213
  %308 = vmatmul.mubr.f32.gmra.mxu0 %v193
  %v309 = vpop.f32.mrf.mxu0
  %v310 = vadd.f32 %v51, %v309
  %v311 = vpop.f32.mrf.mxu0
  %312 = vmatprep.mubr.f32.mxu0 %v216
  %313 = vmatmul.mubr.f32.gmra.mxu0 %v195
  %v314 = vpop.f32.mrf.mxu0
  %v315 = vadd.f32 %v51, %v314
  %v316 = vpop.f32.mrf.mxu0
  %317 = vdwg.mxu0
  %v318 = vmax.f32 %v285, 0.0
  %v319 = vmax.f32 %v290, 0.0
  %v320 = vmax.f32 %v295, 0.0
  %v321 = vmax.f32 %v300, 0.0
  %v322 = vmax.f32 %v305, 0.0
  %v323 = vmax.f32 %v310, 0.0
  %v324 = vmax.f32 %v315, 0.0
  %v325 = vmax.f32 %v175, %v318
  %v326 = vmax.f32 %v176, %v319
  %v327 = vmax.f32 %v177, %v320
  %v328 = vmax.f32 %v178, %v321
  %v329 = vmax.f32 %v179, %v322
  %v330 = vmax.f32 %v180, %v323
  %v331 = vmax.f32 %v181, %v324
  %s332 = scalar_lea.vmem %s0, 224
  %v333 = vld [vmem:[%s332] sm:$0xff]
  %v334 = vld [vmem:[%s332 + $0x8] sm:$0xff]
  %v335 = vld [vmem:[%s332 + $0x10] sm:$0xff]
  %v336 = vld [vmem:[%s332 + $0x18] sm:$0xff]
  %v337 = vld [vmem:[%s332 + $0x20] sm:$0xff]
  %v338 = vld [vmem:[%s332 + $0x28] sm:$0xff]
  %v339 = vld [vmem:[%s332 + $0x30] sm:$0xff]
  %v340 = vld [vmem:[%s332 + $0x38] sm:$0xff]
  %v341 = vld [vmem:[%s332 + $0x40] sm:$0xff]
  %v342 = vld [vmem:[%s332 + $0x48] sm:$0xff]
  %v343 = vld [vmem:[%s332 + $0x50] sm:$0xff]
  %v344 = vld [vmem:[%s332 + $0x58] sm:$0xff]
  %v345 = vld [vmem:[%s332 + $0x60] sm:$0xff]
  %v346 = vld [vmem:[%s332 + $0x68] sm:$0xff]
  %v348 = vsel %vm53, %v334, 0
  %v351 = vsel %vm53, %v336, 0
  %v354 = vsel %vm53, %v338, 0
  %v357 = vsel %vm53, %v340, 0
  %v360 = vsel %vm53, %v342, 0
  %v363 = vsel %vm53, %v344, 0
  %v366 = vsel %vm53, %v346, 0
  %368 = vmatprep.subr.mxu0 0.0
  %369 = vmatpush1.msra.mxu0 %v29
  %370 = vmatprep.subr.mxu0 0.0
  %371 = vmatpush1.msra.mxu0 %v28
  %372 = vmatprep.subr.mxu0 0.0
  %373 = vmatpush1.msra.mxu0 %v27
  %374 = vmatprep.subr.mxu0 0.0
  %375 = vmatpush1.msra.mxu0 %v26
  %376 = vmatprep.subr.mxu0 0.0
  %377 = vmatpush1.msra.mxu0 %v25
  %378 = vmatprep.subr.mxu0 0.0
  %379 = vmatpush1.msra.mxu0 %v24
  %380 = vmatprep.subr.mxu0 0.0
  %381 = vmatpush1.msra.mxu0 %v23
  %382 = vmatprep.subr.mxu0 0.0
  %383 = vmatpush1.msra.mxu0 %v22
  %384 = vmatprep.subr.mxu0 0.0
  %385 = vmatpush1.msra.mxu0 %v21
  %386 = vmatprep.subr.mxu0 0.0
  %387 = vmatpush1.msra.mxu0 %v20
  %388 = vmatprep.subr.mxu0 0.0
  %389 = vmatpush1.msra.mxu0 %v19
  %390 = vmatprep.subr.mxu0 0.0
  %391 = vmatpush1.msra.mxu0 %v18
  %392 = vmatprep.subr.mxu0 0.0
  %393 = vmatpush1.msra.mxu0 %v17
  %394 = vmatprep.subr.mxu0 0.0
  %395 = vmatpush1.msra.mxu0 %v16
  %396 = vmatprep.subr.mxu0 0.0
  %397 = vmatpush1.msra.mxu0 %v15
  %398 = vmatprep.subr.mxu0 0.0
  %399 = vmatpush1.msra.mxu0 %v14
  %400 = vmatprep.subr.mxu0 0.0
  %401 = vmatpush2.msra.mxu0 0.0
  %402 = vmatprep.subr.mxu0 0.0
  %403 = vmatpush2.msra.mxu0 0.0
  %404 = vmatprep.subr.mxu0 0.0
  %405 = vmatpush2.msra.mxu0 0.0
  %406 = vmatprep.subr.mxu0 0.0
  %407 = vmatpush2.msra.mxu0 0.0
  %408 = vmatprep.subr.mxu0 0.0
  %409 = vmatpush2.msra.mxu0 0.0
  %410 = vmatprep.subr.mxu0 0.0
  %411 = vmatpush2.msra.mxu0 0.0
  %412 = vmatprep.subr.mxu0 0.0
  %413 = vmatpush2.msra.mxu0 0.0
  %414 = vmatprep.subr.mxu0 0.0
  %415 = vmatpush2.msra.mxu0 0.0
  %416 = vmatprep.subr.mxu0 0.0
  %417 = vmatpush2.msra.mxu0 0.0
  %418 = vmatprep.subr.mxu0 0.0
  %419 = vmatpush2.msra.mxu0 0.0
  %420 = vmatprep.subr.mxu0 0.0
  %421 = vmatpush2.msra.mxu0 0.0
  %422 = vmatprep.subr.mxu0 0.0
  %423 = vmatpush2.msra.mxu0 0.0
  %424 = vmatprep.subr.mxu0 0.0
  %425 = vmatpush2.msra.mxu0 0.0
  %426 = vmatprep.subr.mxu0 0.0
  %427 = vmatpush2.msra.mxu0 0.0
  %428 = vmatprep.subr.mxu0 0.0
  %429 = vmatpush2.msra.mxu0 %v31
  %430 = vmatprep.subr.mxu0 0.0
  %431 = vmatpush2.msra.mxu0 %v30
  %432 = vmatprep.mubr.f32.mxu0 %v348
  %433 = vmatmul.mubr.f32.gmra.mxu0 %v333
  %v434 = vpop.f32.mrf.mxu0
  %v435 = vadd.f32 %v51, %v434
  %v436 = vpop.f32.mrf.mxu0
  %437 = vmatprep.mubr.f32.mxu0 %v351
  %438 = vmatmul.mubr.f32.gmra.mxu0 %v335
  %v439 = vpop.f32.mrf.mxu0
  %v440 = vadd.f32 %v51, %v439
  %v441 = vpop.f32.mrf.mxu0
  %442 = vmatprep.mubr.f32.mxu0 %v354
  %443 = vmatmul.mubr.f32.gmra.mxu0 %v337
  %v444 = vpop.f32.mrf.mxu0
  %v445 = vadd.f32 %v51, %v444
  %v446 = vpop.f32.mrf.mxu0
  %447 = vmatprep.mubr.f32.mxu0 %v357
  %448 = vmatmul.mubr.f32.gmra.mxu0 %v339
  %v449 = vpop.f32.mrf.mxu0
  %v450 = vadd.f32 %v51, %v449
  %v451 = vpop.f32.mrf.mxu0
  %452 = vmatprep.mubr.f32.mxu0 %v360
  %453 = vmatmul.mubr.f32.gmra.mxu0 %v341
  %v454 = vpop.f32.mrf.mxu0
  %v455 = vadd.f32 %v51, %v454
  %v456 = vpop.f32.mrf.mxu0
  %457 = vmatprep.mubr.f32.mxu0 %v363
  %458 = vmatmul.mubr.f32.gmra.mxu0 %v343
  %v459 = vpop.f32.mrf.mxu0
  %v460 = vadd.f32 %v51, %v459
  %v461 = vpop.f32.mrf.mxu0
  %462 = vmatprep.mubr.f32.mxu0 %v366
  %463 = vmatmul.mubr.f32.gmra.mxu0 %v345
  %v464 = vpop.f32.mrf.mxu0
  %v465 = vadd.f32 %v51, %v464
  %v466 = vpop.f32.mrf.mxu0
  %467 = vdwg.mxu0
  %v468 = vmax.f32 %v435, 0.0
  %v469 = vmax.f32 %v440, 0.0
  %v470 = vmax.f32 %v445, 0.0
  %v471 = vmax.f32 %v450, 0.0
  %v472 = vmax.f32 %v455, 0.0
  %v473 = vmax.f32 %v460, 0.0
  %v474 = vmax.f32 %v465, 0.0
  %v475 = vmax.f32 %v325, %v468
  %v476 = vmax.f32 %v326, %v469
  %v477 = vmax.f32 %v327, %v470
  %v478 = vmax.f32 %v328, %v471
  %v479 = vmax.f32 %v329, %v472
  %v480 = vmax.f32 %v330, %v473
  %v481 = vmax.f32 %v331, %v474
  %s482 = scalar_lea.vmem %s0, 336
  %v483 = vld [vmem:[%s482] sm:$0xff]
  %v484 = vld [vmem:[%s482 + $0x8] sm:$0xff]
  %v485 = vld [vmem:[%s482 + $0x10] sm:$0xff]
  %v486 = vld [vmem:[%s482 + $0x18] sm:$0xff]
  %v487 = vld [vmem:[%s482 + $0x20] sm:$0xff]
  %v488 = vld [vmem:[%s482 + $0x28] sm:$0xff]
  %v489 = vld [vmem:[%s482 + $0x30] sm:$0xff]
  %v490 = vld [vmem:[%s482 + $0x38] sm:$0xff]
  %v491 = vld [vmem:[%s482 + $0x40] sm:$0xff]
  %v492 = vld [vmem:[%s482 + $0x48] sm:$0xff]
  %v493 = vld [vmem:[%s482 + $0x50] sm:$0xff]
  %v494 = vld [vmem:[%s482 + $0x58] sm:$0xff]
  %v495 = vld [vmem:[%s482 + $0x60] sm:$0xff]
  %v496 = vld [vmem:[%s482 + $0x68] sm:$0xff]
  %v498 = vsel %vm53, %v484, 0
  %v501 = vsel %vm53, %v486, 0
  %v504 = vsel %vm53, %v488, 0
  %v507 = vsel %vm53, %v490, 0
  %v510 = vsel %vm53, %v492, 0
  %v513 = vsel %vm53, %v494, 0
  %v516 = vsel %vm53, %v496, 0
  %518 = vmatprep.subr.mxu0 0.0
  %519 = vmatpush1.msra.mxu0 %v29
  %520 = vmatprep.subr.mxu0 0.0
  %521 = vmatpush1.msra.mxu0 %v28
  %522 = vmatprep.subr.mxu0 0.0
  %523 = vmatpush1.msra.mxu0 %v27
  %524 = vmatprep.subr.mxu0 0.0
  %525 = vmatpush1.msra.mxu0 %v26
  %526 = vmatprep.subr.mxu0 0.0
  %527 = vmatpush1.msra.mxu0 %v25
  %528 = vmatprep.subr.mxu0 0.0
  %529 = vmatpush1.msra.mxu0 %v24
  %530 = vmatprep.subr.mxu0 0.0
  %531 = vmatpush1.msra.mxu0 %v23
  %532 = vmatprep.subr.mxu0 0.0
  %533 = vmatpush1.msra.mxu0 %v22
  %534 = vmatprep.subr.mxu0 0.0
  %535 = vmatpush1.msra.mxu0 %v21
  %536 = vmatprep.subr.mxu0 0.0
  %537 = vmatpush1.msra.mxu0 %v20
  %538 = vmatprep.subr.mxu0 0.0
  %539 = vmatpush1.msra.mxu0 %v19
  %540 = vmatprep.subr.mxu0 0.0
  %541 = vmatpush1.msra.mxu0 %v18
  %542 = vmatprep.subr.mxu0 0.0
  %543 = vmatpush1.msra.mxu0 %v17
  %544 = vmatprep.subr.mxu0 0.0
  %545 = vmatpush1.msra.mxu0 %v16
  %546 = vmatprep.subr.mxu0 0.0
  %547 = vmatpush1.msra.mxu0 %v15
  %548 = vmatprep.subr.mxu0 0.0
  %549 = vmatpush1.msra.mxu0 %v14
  %550 = vmatprep.subr.mxu0 0.0
  %551 = vmatpush2.msra.mxu0 0.0
  %552 = vmatprep.subr.mxu0 0.0
  %553 = vmatpush2.msra.mxu0 0.0
  %554 = vmatprep.subr.mxu0 0.0
  %555 = vmatpush2.msra.mxu0 0.0
  %556 = vmatprep.subr.mxu0 0.0
  %557 = vmatpush2.msra.mxu0 0.0
  %558 = vmatprep.subr.mxu0 0.0
  %559 = vmatpush2.msra.mxu0 0.0
  %560 = vmatprep.subr.mxu0 0.0
  %561 = vmatpush2.msra.mxu0 0.0
  %562 = vmatprep.subr.mxu0 0.0
  %563 = vmatpush2.msra.mxu0 0.0
  %564 = vmatprep.subr.mxu0 0.0
  %565 = vmatpush2.msra.mxu0 0.0
  %566 = vmatprep.subr.mxu0 0.0
  %567 = vmatpush2.msra.mxu0 0.0
  %568 = vmatprep.subr.mxu0 0.0
  %569 = vmatpush2.msra.mxu0 0.0
  %570 = vmatprep.subr.mxu0 0.0
  %571 = vmatpush2.msra.mxu0 0.0
  %572 = vmatprep.subr.mxu0 0.0
  %573 = vmatpush2.msra.mxu0 0.0
  %574 = vmatprep.subr.mxu0 0.0
  %575 = vmatpush2.msra.mxu0 0.0
  %576 = vmatprep.subr.mxu0 0.0
  %577 = vmatpush2.msra.mxu0 0.0
  %578 = vmatprep.subr.mxu0 0.0
  %579 = vmatpush2.msra.mxu0 %v31
  %580 = vmatprep.subr.mxu0 0.0
  %581 = vmatpush2.msra.mxu0 %v30
  %582 = vmatprep.mubr.f32.mxu0 %v498
  %583 = vmatmul.mubr.f32.gmra.mxu0 %v483
  %v584 = vpop.f32.mrf.mxu0
  %v585 = vadd.f32 %v51, %v584
  %v586 = vpop.f32.mrf.mxu0
  %587 = vmatprep.mubr.f32.mxu0 %v501
  %588 = vmatmul.mubr.f32.gmra.mxu0 %v485
  %v589 = vpop.f32.mrf.mxu0
  %v590 = vadd.f32 %v51, %v589
  %v591 = vpop.f32.mrf.mxu0
  %592 = vmatprep.mubr.f32.mxu0 %v504
  %593 = vmatmul.mubr.f32.gmra.mxu0 %v487
  %v594 = vpop.f32.mrf.mxu0
  %v595 = vadd.f32 %v51, %v594
  %v596 = vpop.f32.mrf.mxu0
  %597 = vmatprep.mubr.f32.mxu0 %v507
  %598 = vmatmul.mubr.f32.gmra.mxu0 %v489
  %v599 = vpop.f32.mrf.mxu0
  %v600 = vadd.f32 %v51, %v599
  %v601 = vpop.f32.mrf.mxu0
  %602 = vmatprep.mubr.f32.mxu0 %v510
  %603 = vmatmul.mubr.f32.gmra.mxu0 %v491
  %v604 = vpop.f32.mrf.mxu0
  %v605 = vadd.f32 %v51, %v604
  %v606 = vpop.f32.mrf.mxu0
  %607 = vmatprep.mubr.f32.mxu0 %v513
  %608 = vmatmul.mubr.f32.gmra.mxu0 %v493
  %v609 = vpop.f32.mrf.mxu0
  %v610 = vadd.f32 %v51, %v609
  %v611 = vpop.f32.mrf.mxu0
  %612 = vmatprep.mubr.f32.mxu0 %v516
  %613 = vmatmul.mubr.f32.gmra.mxu0 %v495
  %v614 = vpop.f32.mrf.mxu0
  %v615 = vadd.f32 %v51, %v614
  %v616 = vpop.f32.mrf.mxu0
  %617 = vdwg.mxu0
  %v618 = vmax.f32 %v585, 0.0
  %v619 = vmax.f32 %v590, 0.0
  %v620 = vmax.f32 %v595, 0.0
  %v621 = vmax.f32 %v600, 0.0
  %v622 = vmax.f32 %v605, 0.0
  %v623 = vmax.f32 %v610, 0.0
  %v624 = vmax.f32 %v615, 0.0
  %v625 = vmax.f32 %v475, %v618
  %v626 = vmax.f32 %v476, %v619
  %v627 = vmax.f32 %v477, %v620
  %v628 = vmax.f32 %v478, %v621
  %v629 = vmax.f32 %v479, %v622
  %v630 = vmax.f32 %v480, %v623
  %v631 = vmax.f32 %v481, %v624
  %632 = vst [vmem:[%s3] sm:$0xff] %v625
  %633 = vst [vmem:[%s3 + $0x8] sm:$0xff] %v626
  %634 = vst [vmem:[%s3 + $0x10] sm:$0xff] %v627
  %635 = vst [vmem:[%s3 + $0x18] sm:$0xff] %v628
  %636 = vst [vmem:[%s3 + $0x20] sm:$0xff] %v629
  %637 = vst [vmem:[%s3 + $0x28] sm:$0xff] %v630
  %638 = vst [vmem:[%s3 + $0x30] sm:$0xff] %v631
  // Predicated region
  $region14: #{net5_forward.10} parent=0 // pred_check
    _
  $region15: #{net5_forward.10} parent=0 // pred_check_branch
    %640 = sbr.rel (0) target = $region17
  $region16: #{net5_forward.10} parent=0 // pred_region
    _
  $region17: #{net5_forward.10} parent=0 // pred_fallthru
    _
  // Predicated region
  $region18: #{net5_forward.10} parent=0 // pred_check
    _
  $region19: #{net5_forward.10} parent=0 // pred_check_branch
    %642 = sbr.rel (0) target = $region21
  $region20: #{net5_forward.10} parent=0 // pred_region
    _
  $region21: #{net5_forward.10} parent=0 // pred_fallthru
    _

// kernel: net5_forward.11
$region0: #{net5_forward.11}
  #allocation0 [shape = 'u32[]', space=smem, size = 0x4, offset = 0x4, fixed_abs, tag = 'smem constant byte address 0x4 - core index']
  #allocation1 [shape = 'u32[144,128]{1,0:T(1,128)}', space=vmem, size = 0x12000, scoped, tag = 'internal scratch']
  %s0 = inlined_call_operand.vmem [shape: f32[56,72], index: 0, kind: input, shape index: {}]
  %s1 = inlined_call_operand.vmem [shape: f32[72,128], index: 1, kind: input, shape index: {}]
  %s2 = inlined_call_operand.vmem [shape: f32[1,128], index: 2, kind: input, shape index: {}]
  %s3 = inlined_call_operand.vmem [shape: f32[56,128], index: 3, kind: output, shape index: {}]
  %s4 = sld [smem:[#allocation0]]
  $region22: #{net5_forward.11} parent=0
    _
  %s6 = ssub.s32 1, %s4
  %s7 = scalar_select 0, %s6, %s4
  // Predicated region
  $region2: #{net5_forward.11} parent=0 // pred_check
    _
  $region3: #{net5_forward.11} parent=0 // pred_check_branch
    %9 = sbr.rel (0) target = $region5
  $region4: #{net5_forward.11} parent=0 // pred_region
    _
  $region5: #{net5_forward.11} parent=0 // pred_fallthru
    _
  // Predicated region
  $region6: #{net5_forward.11} parent=0 // pred_check
    _
  $region7: #{net5_forward.11} parent=0 // pred_check_branch
    %11 = sbr.rel (0) target = $region9
  $region8: #{net5_forward.11} parent=0 // pred_region
    _
  $region9: #{net5_forward.11} parent=0 // pred_fallthru
    _
  // Predicated region
  $region10: #{net5_forward.11} parent=0 // pred_check
    _
  $region11: #{net5_forward.11} parent=0 // pred_check_branch
    %13 = sbr.rel (0) target = $region13
  $region12: #{net5_forward.11} parent=0 // pred_region
    _
  $region13: #{net5_forward.11} parent=0 // pred_fallthru
    _
  %v14 = vld [vmem:[%s0] sm:$0xff]
  %v15 = vld [vmem:[%s0 + $0x8] sm:$0xff]
  %v16 = vld [vmem:[%s0 + $0x10] sm:$0xff]
  %v17 = vld [vmem:[%s0 + $0x18] sm:$0xff]
  %v18 = vld [vmem:[%s0 + $0x20] sm:$0xff]
  %v19 = vld [vmem:[%s0 + $0x28] sm:$0xff]
  %v20 = vld [vmem:[%s0 + $0x30] sm:$0xff]
  %v21 = vld [vmem:[%s1] sm:$0xff]
  %v22 = vld [vmem:[%s1 + $0x8] sm:$0xff]
  %v23 = vld [vmem:[%s1 + $0x10] sm:$0xff]
  %v24 = vld [vmem:[%s1 + $0x18] sm:$0xff]
  %v25 = vld [vmem:[%s1 + $0x20] sm:$0xff]
  %v26 = vld [vmem:[%s1 + $0x28] sm:$0xff]
  %v27 = vld [vmem:[%s1 + $0x30] sm:$0xff]
  %v28 = vld [vmem:[%s1 + $0x38] sm:$0xff]
  %v29 = vld [vmem:[%s1 + $0x40] sm:$0xff]
  %v30 = vld [vmem:[%s2] sm:$0x1]
  %v32 = vlaneseq
  %v33 = vshrl.u32 %v32, 7
  %v34 = vsub.s32 0, %v33
  %v35 = vrot.slane %v30, %v34
  %vm37 = vcmask 588800
  %v39 = vsel %vm37, %v14, 0
  %v42 = vsel %vm37, %v15, 0
  %v45 = vsel %vm37, %v16, 0
  %v48 = vsel %vm37, %v17, 0
  %v51 = vsel %vm37, %v18, 0
  %v54 = vsel %vm37, %v19, 0
  %v57 = vsel %vm37, %v20, 0
  %59 = vmatprep.subr.mxu0 0.0
  %60 = vmatpush1.msra.mxu0 0.0
  %61 = vmatprep.subr.mxu0 0.0
  %62 = vmatpush1.msra.mxu0 0.0
  %63 = vmatprep.subr.mxu0 0.0
  %64 = vmatpush1.msra.mxu0 0.0
  %65 = vmatprep.subr.mxu0 0.0
  %66 = vmatpush1.msra.mxu0 0.0
  %67 = vmatprep.subr.mxu0 0.0
  %68 = vmatpush1.msra.mxu0 0.0
  %69 = vmatprep.subr.mxu0 0.0
  %70 = vmatpush1.msra.mxu0 0.0
  %71 = vmatprep.subr.mxu0 0.0
  %72 = vmatpush1.msra.mxu0 0.0
  %73 = vmatprep.subr.mxu0 0.0
  %74 = vmatpush1.msra.mxu0 %v29
  %75 = vmatprep.subr.mxu0 0.0
  %76 = vmatpush1.msra.mxu0 %v28
  %77 = vmatprep.subr.mxu0 0.0
  %78 = vmatpush1.msra.mxu0 %v27
  %79 = vmatprep.subr.mxu0 0.0
  %80 = vmatpush1.msra.mxu0 %v26
  %81 = vmatprep.subr.mxu0 0.0
  %82 = vmatpush1.msra.mxu0 %v25
  %83 = vmatprep.subr.mxu0 0.0
  %84 = vmatpush1.msra.mxu0 %v24
  %85 = vmatprep.subr.mxu0 0.0
  %86 = vmatpush1.msra.mxu0 %v23
  %87 = vmatprep.subr.mxu0 0.0
  %88 = vmatpush1.msra.mxu0 %v22
  %89 = vmatprep.subr.mxu0 0.0
  %90 = vmatpush1.msra.mxu0 %v21
  %91 = vmatprep.subr.mxu0 0.0
  %92 = vmatpush2.msra.mxu0 0.0
  %93 = vmatprep.subr.mxu0 0.0
  %94 = vmatpush2.msra.mxu0 0.0
  %95 = vmatprep.subr.mxu0 0.0
  %96 = vmatpush2.msra.mxu0 0.0
  %97 = vmatprep.subr.mxu0 0.0
  %98 = vmatpush2.msra.mxu0 0.0
  %99 = vmatprep.subr.mxu0 0.0
  %100 = vmatpush2.msra.mxu0 0.0
  %101 = vmatprep.subr.mxu0 0.0
  %102 = vmatpush2.msra.mxu0 0.0
  %103 = vmatprep.subr.mxu0 0.0
  %104 = vmatpush2.msra.mxu0 0.0
  %105 = vmatprep.subr.mxu0 0.0
  %106 = vmatpush2.msra.mxu0 0.0
  %107 = vmatprep.subr.mxu0 0.0
  %108 = vmatpush2.msra.mxu0 0.0
  %109 = vmatprep.subr.mxu0 0.0
  %110 = vmatpush2.msra.mxu0 0.0
  %111 = vmatprep.subr.mxu0 0.0
  %112 = vmatpush2.msra.mxu0 0.0
  %113 = vmatprep.subr.mxu0 0.0
  %114 = vmatpush2.msra.mxu0 0.0
  %115 = vmatprep.subr.mxu0 0.0
  %116 = vmatpush2.msra.mxu0 0.0
  %117 = vmatprep.subr.mxu0 0.0
  %118 = vmatpush2.msra.mxu0 0.0
  %119 = vmatprep.subr.mxu0 0.0
  %120 = vmatpush2.msra.mxu0 0.0
  %121 = vmatprep.subr.mxu0 0.0
  %122 = vmatpush2.msra.mxu0 0.0
  %123 = vmatprep.mubr.f32.mxu0 0.0
  %124 = vmatmul.mubr.f32.gmra.mxu0 %v39
  %v125 = vpop.f32.mrf.mxu0
  %v126 = vadd.f32 %v35, %v125
  %v127 = vpop.f32.mrf.mxu0
  %128 = vmatprep.mubr.f32.mxu0 0.0
  %129 = vmatmul.mubr.f32.gmra.mxu0 %v42
  %v130 = vpop.f32.mrf.mxu0
  %v131 = vadd.f32 %v35, %v130
  %v132 = vpop.f32.mrf.mxu0
  %133 = vmatprep.mubr.f32.mxu0 0.0
  %134 = vmatmul.mubr.f32.gmra.mxu0 %v45
  %v135 = vpop.f32.mrf.mxu0
  %v136 = vadd.f32 %v35, %v135
  %v137 = vpop.f32.mrf.mxu0
  %138 = vmatprep.mubr.f32.mxu0 0.0
  %139 = vmatmul.mubr.f32.gmra.mxu0 %v48
  %v140 = vpop.f32.mrf.mxu0
  %v141 = vadd.f32 %v35, %v140
  %v142 = vpop.f32.mrf.mxu0
  %143 = vmatprep.mubr.f32.mxu0 0.0
  %144 = vmatmul.mubr.f32.gmra.mxu0 %v51
  %v145 = vpop.f32.mrf.mxu0
  %v146 = vadd.f32 %v35, %v145
  %v147 = vpop.f32.mrf.mxu0
  %148 = vmatprep.mubr.f32.mxu0 0.0
  %149 = vmatmul.mubr.f32.gmra.mxu0 %v54
  %v150 = vpop.f32.mrf.mxu0
  %v151 = vadd.f32 %v35, %v150
  %v152 = vpop.f32.mrf.mxu0
  %153 = vmatprep.mubr.f32.mxu0 0.0
  %154 = vmatmul.mubr.f32.gmra.mxu0 %v57
  %v155 = vpop.f32.mrf.mxu0
  %v156 = vadd.f32 %v35, %v155
  %v157 = vpop.f32.mrf.mxu0
  %158 = vdwg.mxu0
  %v159 = vmax.f32 %v126, 0.0
  %v160 = vmax.f32 %v131, 0.0
  %v161 = vmax.f32 %v136, 0.0
  %v162 = vmax.f32 %v141, 0.0
  %v163 = vmax.f32 %v146, 0.0
  %v164 = vmax.f32 %v151, 0.0
  %v165 = vmax.f32 %v156, 0.0
  %166 = vst [vmem:[%s3] sm:$0xff] %v159
  %167 = vst [vmem:[%s3 + $0x8] sm:$0xff] %v160
  %168 = vst [vmem:[%s3 + $0x10] sm:$0xff] %v161
  %169 = vst [vmem:[%s3 + $0x18] sm:$0xff] %v162
  %170 = vst [vmem:[%s3 + $0x20] sm:$0xff] %v163
  %171 = vst [vmem:[%s3 + $0x28] sm:$0xff] %v164
  %172 = vst [vmem:[%s3 + $0x30] sm:$0xff] %v165
  // Predicated region
  $region14: #{net5_forward.11} parent=0 // pred_check
    _
  $region15: #{net5_forward.11} parent=0 // pred_check_branch
    %174 = sbr.rel (0) target = $region17
  $region16: #{net5_forward.11} parent=0 // pred_region
    _
  $region17: #{net5_forward.11} parent=0 // pred_fallthru
    _
  // Predicated region
  $region18: #{net5_forward.11} parent=0 // pred_check
    _
  $region19: #{net5_forward.11} parent=0 // pred_check_branch
    %176 = sbr.rel (0) target = $region21
  $region20: #{net5_forward.11} parent=0 // pred_region
    _
  $region21: #{net5_forward.11} parent=0 // pred_fallthru
    _

// kernel: net5_forward.13
$region0: #{net5_forward.13}
  #allocation0 [shape = 'u32[]', space=smem, size = 0x4, offset = 0x4, fixed_abs, tag = 'smem constant byte address 0x4 - core index']
  #allocation1 [shape = 'u32[144,128]{1,0:T(1,128)}', space=vmem, size = 0x12000, scoped, tag = 'internal scratch']
  %s0 = inlined_call_operand.vmem [shape: f32[2,72], index: 0, kind: input, shape index: {}]
  %s1 = inlined_call_operand.vmem [shape: f32[72,128], index: 1, kind: input, shape index: {}]
  %s2 = inlined_call_operand.hbm [shape: f32[2,128], index: 2, kind: output, shape index: {}]
  %s3 = sld [smem:[#allocation0]]
  $region18: #{net5_forward.13} parent=0
    _
  %s5 = ssub.s32 1, %s3
  %s6 = scalar_select 0, %s5, %s3
  $region1: #{net5_forward.13} parent=0
    #allocation2 [shape = 'u8[1024]{0}', space=vmem, size = 0x400, scoped, tag = 'output window, operand 0, single buffered']
    #allocation3 [shape = 's32[1]{0}', space=sflag, size = 0x4, scoped, tag = 'scoped memory for net5_forward.13']
    %7 = vsyncpa [#allocation3], 0
    // Predicated region
    $region2: #{net5_forward.13} parent=1 // pred_check
      _
    $region3: #{net5_forward.13} parent=1 // pred_check_branch
      %9 = sbr.rel (0) target = $region5
    $region4: #{net5_forward.13} parent=1 // pred_region
      _
    $region5: #{net5_forward.13} parent=1 // pred_fallthru
      _
    // Predicated region
    $region6: #{net5_forward.13} parent=1 // pred_check
      _
    $region7: #{net5_forward.13} parent=1 // pred_check_branch
      %11 = sbr.rel (0) target = $region9
    $region8: #{net5_forward.13} parent=1 // pred_region
      _
    $region9: #{net5_forward.13} parent=1 // pred_fallthru
      _
    %v12 = vld [vmem:[%s0] sm:$0x3]
    %v13 = vld [vmem:[%s1] sm:$0xff]
    %v14 = vld [vmem:[%s1 + $0x8] sm:$0xff]
    %v15 = vld [vmem:[%s1 + $0x10] sm:$0xff]
    %v16 = vld [vmem:[%s1 + $0x18] sm:$0xff]
    %v17 = vld [vmem:[%s1 + $0x20] sm:$0xff]
    %v18 = vld [vmem:[%s1 + $0x28] sm:$0xff]
    %v19 = vld [vmem:[%s1 + $0x30] sm:$0xff]
    %v20 = vld [vmem:[%s1 + $0x38] sm:$0xff]
    %v21 = vld [vmem:[%s1 + $0x40] sm:$0xff]
    %vm22 = vcmask 588800
    %v24 = vsel %vm22, %v12, 0
    %26 = vmatprep.subr.mxu0 0.0
    %27 = vmatpush1.msra.mxu0 0.0
    %28 = vmatprep.subr.mxu0 0.0
    %29 = vmatpush1.msra.mxu0 0.0
    %30 = vmatprep.subr.mxu0 0.0
    %31 = vmatpush1.msra.mxu0 0.0
    %32 = vmatprep.subr.mxu0 0.0
    %33 = vmatpush1.msra.mxu0 0.0
    %34 = vmatprep.subr.mxu0 0.0
    %35 = vmatpush1.msra.mxu0 0.0
    %36 = vmatprep.subr.mxu0 0.0
    %37 = vmatpush1.msra.mxu0 0.0
    %38 = vmatprep.subr.mxu0 0.0
    %39 = vmatpush1.msra.mxu0 0.0
    %40 = vmatprep.subr.mxu0 0.0
    %41 = vmatpush1.msra.mxu0 %v21
    %42 = vmatprep.subr.mxu0 0.0
    %43 = vmatpush1.msra.mxu0 %v20
    %44 = vmatprep.subr.mxu0 0.0
    %45 = vmatpush1.msra.mxu0 %v19
    %46 = vmatprep.subr.mxu0 0.0
    %47 = vmatpush1.msra.mxu0 %v18
    %48 = vmatprep.subr.mxu0 0.0
    %49 = vmatpush1.msra.mxu0 %v17
    %50 = vmatprep.subr.mxu0 0.0
    %51 = vmatpush1.msra.mxu0 %v16
    %52 = vmatprep.subr.mxu0 0.0
    %53 = vmatpush1.msra.mxu0 %v15
    %54 = vmatprep.subr.mxu0 0.0
    %55 = vmatpush1.msra.mxu0 %v14
    %56 = vmatprep.subr.mxu0 0.0
    %57 = vmatpush1.msra.mxu0 %v13
    %58 = vmatprep.subr.mxu0 0.0
    %59 = vmatpush2.msra.mxu0 0.0
    %60 = vmatprep.subr.mxu0 0.0
    %61 = vmatpush2.msra.mxu0 0.0
    %62 = vmatprep.subr.mxu0 0.0
    %63 = vmatpush2.msra.mxu0 0.0
    %64 = vmatprep.subr.mxu0 0.0
    %65 = vmatpush2.msra.mxu0 0.0
    %66 = vmatprep.subr.mxu0 0.0
    %67 = vmatpush2.msra.mxu0 0.0
    %68 = vmatprep.subr.mxu0 0.0
    %69 = vmatpush2.msra.mxu0 0.0
    %70 = vmatprep.subr.mxu0 0.0
    %71 = vmatpush2.msra.mxu0 0.0
    %72 = vmatprep.subr.mxu0 0.0
    %73 = vmatpush2.msra.mxu0 0.0
    %74 = vmatprep.subr.mxu0 0.0
    %75 = vmatpush2.msra.mxu0 0.0
    %76 = vmatprep.subr.mxu0 0.0
    %77 = vmatpush2.msra.mxu0 0.0
    %78 = vmatprep.subr.mxu0 0.0
    %79 = vmatpush2.msra.mxu0 0.0
    %80 = vmatprep.subr.mxu0 0.0
    %81 = vmatpush2.msra.mxu0 0.0
    %82 = vmatprep.subr.mxu0 0.0
    %83 = vmatpush2.msra.mxu0 0.0
    %84 = vmatprep.subr.mxu0 0.0
    %85 = vmatpush2.msra.mxu0 0.0
    %86 = vmatprep.subr.mxu0 0.0
    %87 = vmatpush2.msra.mxu0 0.0
    %88 = vmatprep.subr.mxu0 0.0
    %89 = vmatpush2.msra.mxu0 0.0
    %90 = vmatprep.mubr.f32.mxu0 0.0
    %91 = vmatmul.mubr.f32.gmra.mxu0 %v24
    %v92 = vpop.f32.mrf.mxu0
    %v93 = vadd.f32 0.0, %v92
    %v94 = vpop.f32.mrf.mxu0
    %95 = vdwg.mxu0
    %v96 = vlaneseq
    %v97 = vand.u32 %v96, 127
    %vm98 = vcmp.lt.s32.totalorder %v97, 10
    %v99 = vsel %vm98, %v93, -1e+30
    %vm100 = vcmask 1041408
    %v101 = vsel %vm100, %v99, -inf
    %102 = vmax.xlane.f32.xlu0 %v101
    %v103 = vpop.xlane.xlu0 %102
    %v104 = vsub.f32 %v99, %v103
    %v105 = vmul.f32 %v104, 1.442695
    %v106 = vpow.pop %v105
    %v107 = vsel %vm100, %v106, 0.0
    %108 = vadd.xlane.f32.xlu0 %v107
    %v109 = vpop.xlane.xlu0 %108
    %v110 = vlog2.pop %v109
    %v111 = vmul.f32 %v110, 0.6931472
    %v112 = vsub.f32 %v104, %v111
    %113 = vst [vmem:[#allocation2] sm:$0x3] %v112
    // Predicated region
    $region10: #{net5_forward.13} parent=1 // pred_check
      _
    $region11: #{net5_forward.13} parent=1 // pred_check_branch
      %115 = sbr.rel (0) target = $region13
    $region12: #{net5_forward.13} parent=1 // pred_region
      %s117 = ssub.s32 32, 32
      %118 = vsyncadd [#allocation3], %s117
      %s120 = sshll.u32 [#allocation2], 4
      %s121 = int_to_ptr.vmem [resolvable:$true] %s120
      %123 = dma.vmem_to_hbm [thread:$0]  %s121, 32, %s2, [#allocation3]
    $region13: #{net5_forward.13} parent=1 // pred_fallthru
      _
    // Predicated region
    $region14: #{net5_forward.13} parent=1 // pred_check
      _
    $region15: #{net5_forward.13} parent=1 // pred_check_branch
      %125 = sbr.rel (0) target = $region17
    $region16: #{net5_forward.13} parent=1 // pred_region
      %126 = dma.done [#allocation3], 32
    $region17: #{net5_forward.13} parent=1 // pred_fallthru
      _
    %127 = vsyncpa [#allocation3], 1

// kernel: net5_forward.12
$region0: #{net5_forward.12}
  #allocation0 [shape = 'u32[]', space=smem, size = 0x4, offset = 0x4, fixed_abs, tag = 'smem constant byte address 0x4 - core index']
  #allocation1 [shape = 'u32[144,128]{1,0:T(1,128)}', space=vmem, size = 0x12000, scoped, tag = 'internal scratch']
  %s0 = inlined_call_operand.vmem [shape: f32[24,144], index: 0, kind: input, shape index: {}]
  %s1 = inlined_call_operand.vmem [shape: f32[144,128], index: 1, kind: input, shape index: {}]
  %s2 = inlined_call_operand.vmem [shape: f32[1,128], index: 2, kind: input, shape index: {}]
  %s3 = inlined_call_operand.vmem [shape: f32[24,128], index: 3, kind: output, shape index: {}]
  %s4 = sld [smem:[#allocation0]]
  $region22: #{net5_forward.12} parent=0
    _
  %s6 = ssub.s32 1, %s4
  %s7 = scalar_select 0, %s6, %s4
  // Predicated region
  $region2: #{net5_forward.12} parent=0 // pred_check
    _
  $region3: #{net5_forward.12} parent=0 // pred_check_branch
    %9 = sbr.rel (0) target = $region5
  $region4: #{net5_forward.12} parent=0 // pred_region
    _
  $region5: #{net5_forward.12} parent=0 // pred_fallthru
    _
  // Predicated region
  $region6: #{net5_forward.12} parent=0 // pred_check
    _
  $region7: #{net5_forward.12} parent=0 // pred_check_branch
    %11 = sbr.rel (0) target = $region9
  $region8: #{net5_forward.12} parent=0 // pred_region
    _
  $region9: #{net5_forward.12} parent=0 // pred_fallthru
    _
  // Predicated region
  $region10: #{net5_forward.12} parent=0 // pred_check
    _
  $region11: #{net5_forward.12} parent=0 // pred_check_branch
    %13 = sbr.rel (0) target = $region13
  $region12: #{net5_forward.12} parent=0 // pred_region
    _
  $region13: #{net5_forward.12} parent=0 // pred_fallthru
    _
  %v14 = vld [vmem:[%s0] sm:$0xff]
  %v15 = vld [vmem:[%s0 + $0x8] sm:$0xff]
  %v16 = vld [vmem:[%s0 + $0x10] sm:$0xff]
  %v17 = vld [vmem:[%s0 + $0x18] sm:$0xff]
  %v18 = vld [vmem:[%s0 + $0x20] sm:$0xff]
  %v19 = vld [vmem:[%s0 + $0x28] sm:$0xff]
  %v20 = vld [vmem:[%s1] sm:$0xff]
  %v21 = vld [vmem:[%s1 + $0x8] sm:$0xff]
  %v22 = vld [vmem:[%s1 + $0x10] sm:$0xff]
  %v23 = vld [vmem:[%s1 + $0x18] sm:$0xff]
  %v24 = vld [vmem:[%s1 + $0x20] sm:$0xff]
  %v25 = vld [vmem:[%s1 + $0x28] sm:$0xff]
  %v26 = vld [vmem:[%s1 + $0x30] sm:$0xff]
  %v27 = vld [vmem:[%s1 + $0x38] sm:$0xff]
  %v28 = vld [vmem:[%s1 + $0x40] sm:$0xff]
  %v29 = vld [vmem:[%s1 + $0x48] sm:$0xff]
  %v30 = vld [vmem:[%s1 + $0x50] sm:$0xff]
  %v31 = vld [vmem:[%s1 + $0x58] sm:$0xff]
  %v32 = vld [vmem:[%s1 + $0x60] sm:$0xff]
  %v33 = vld [vmem:[%s1 + $0x68] sm:$0xff]
  %v34 = vld [vmem:[%s1 + $0x70] sm:$0xff]
  %v35 = vld [vmem:[%s1 + $0x78] sm:$0xff]
  %v36 = vld [vmem:[%s1 + $0x80] sm:$0xff]
  %v37 = vld [vmem:[%s1 + $0x88] sm:$0xff]
  %v38 = vld [vmem:[%s2] sm:$0x1]
  %v40 = vlaneseq
  %v41 = vshrl.u32 %v40, 7
  %v42 = vsub.s32 0, %v41
  %v43 = vrot.slane %v38, %v42
  %vm45 = vcmask 130048
  %v47 = vsel %vm45, %v15, 0
  %v50 = vsel %vm45, %v17, 0
  %v53 = vsel %vm45, %v19, 0
  %55 = vmatprep.subr.mxu0 0.0
  %56 = vmatpush1.msra.mxu0 %v35
  %57 = vmatprep.subr.mxu0 0.0
  %58 = vmatpush1.msra.mxu0 %v34
  %59 = vmatprep.subr.mxu0 0.0
  %60 = vmatpush1.msra.mxu0 %v33
  %61 = vmatprep.subr.mxu0 0.0
  %62 = vmatpush1.msra.mxu0 %v32
  %63 = vmatprep.subr.mxu0 0.0
  %64 = vmatpush1.msra.mxu0 %v31
  %65 = vmatprep.subr.mxu0 0.0
  %66 = vmatpush1.msra.mxu0 %v30
  %67 = vmatprep.subr.mxu0 0.0
  %68 = vmatpush1.msra.mxu0 %v29
  %69 = vmatprep.subr.mxu0 0.0
  %70 = vmatpush1.msra.mxu0 %v28
  %71 = vmatprep.subr.mxu0 0.0
  %72 = vmatpush1.msra.mxu0 %v27
  %73 = vmatprep.subr.mxu0 0.0
  %74 = vmatpush1.msra.mxu0 %v26
  %75 = vmatprep.subr.mxu0 0.0
  %76 = vmatpush1.msra.mxu0 %v25
  %77 = vmatprep.subr.mxu0 0.0
  %78 = vmatpush1.msra.mxu0 %v24
  %79 = vmatprep.subr.mxu0 0.0
  %80 = vmatpush1.msra.mxu0 %v23
  %81 = vmatprep.subr.mxu0 0.0
  %82 = vmatpush1.msra.mxu0 %v22
  %83 = vmatprep.subr.mxu0 0.0
  %84 = vmatpush1.msra.mxu0 %v21
  %85 = vmatprep.subr.mxu0 0.0
  %86 = vmatpush1.msra.mxu0 %v20
  %87 = vmatprep.subr.mxu0 0.0
  %88 = vmatpush2.msra.mxu0 0.0
  %89 = vmatprep.subr.mxu0 0.0
  %90 = vmatpush2.msra.mxu0 0.0
  %91 = vmatprep.subr.mxu0 0.0
  %92 = vmatpush2.msra.mxu0 0.0
  %93 = vmatprep.subr.mxu0 0.0
  %94 = vmatpush2.msra.mxu0 0.0
  %95 = vmatprep.subr.mxu0 0.0
  %96 = vmatpush2.msra.mxu0 0.0
  %97 = vmatprep.subr.mxu0 0.0
  %98 = vmatpush2.msra.mxu0 0.0
  %99 = vmatprep.subr.mxu0 0.0
  %100 = vmatpush2.msra.mxu0 0.0
  %101 = vmatprep.subr.mxu0 0.0
  %102 = vmatpush2.msra.mxu0 0.0
  %103 = vmatprep.subr.mxu0 0.0
  %104 = vmatpush2.msra.mxu0 0.0
  %105 = vmatprep.subr.mxu0 0.0
  %106 = vmatpush2.msra.mxu0 0.0
  %107 = vmatprep.subr.mxu0 0.0
  %108 = vmatpush2.msra.mxu0 0.0
  %109 = vmatprep.subr.mxu0 0.0
  %110 = vmatpush2.msra.mxu0 0.0
  %111 = vmatprep.subr.mxu0 0.0
  %112 = vmatpush2.msra.mxu0 0.0
  %113 = vmatprep.subr.mxu0 0.0
  %114 = vmatpush2.msra.mxu0 0.0
  %115 = vmatprep.subr.mxu0 0.0
  %116 = vmatpush2.msra.mxu0 %v37
  %117 = vmatprep.subr.mxu0 0.0
  %118 = vmatpush2.msra.mxu0 %v36
  %119 = vmatprep.mubr.f32.mxu0 %v47
  %120 = vmatmul.mubr.f32.gmra.mxu0 %v14
  %v121 = vpop.f32.mrf.mxu0
  %v122 = vadd.f32 %v43, %v121
  %v123 = vpop.f32.mrf.mxu0
  %124 = vmatprep.mubr.f32.mxu0 %v50
  %125 = vmatmul.mubr.f32.gmra.mxu0 %v16
  %v126 = vpop.f32.mrf.mxu0
  %v127 = vadd.f32 %v43, %v126
  %v128 = vpop.f32.mrf.mxu0
  %129 = vmatprep.mubr.f32.mxu0 %v53
  %130 = vmatmul.mubr.f32.gmra.mxu0 %v18
  %v131 = vpop.f32.mrf.mxu0
  %v132 = vadd.f32 %v43, %v131
  %v133 = vpop.f32.mrf.mxu0
  %134 = vdwg.mxu0
  %v135 = vmax.f32 %v122, 0.0
  %v136 = vmax.f32 %v127, 0.0
  %v137 = vmax.f32 %v132, 0.0
  %138 = vst [vmem:[%s3] sm:$0xff] %v135
  %139 = vst [vmem:[%s3 + $0x8] sm:$0xff] %v136
  %140 = vst [vmem:[%s3 + $0x10] sm:$0xff] %v137
  // Predicated region
  $region14: #{net5_forward.12} parent=0 // pred_check
    _
  $region15: #{net5_forward.12} parent=0 // pred_check_branch
    %142 = sbr.rel (0) target = $region17
  $region16: #{net5_forward.12} parent=0 // pred_region
    _
  $region17: #{net5_forward.12} parent=0 // pred_fallthru
    _
  // Predicated region
  $region18: #{net5_forward.12} parent=0 // pred_check
    _
  $region19: #{net5_forward.12} parent=0 // pred_check_branch
    %144 = sbr.rel (0) target = $region21
  $region20: #{net5_forward.12} parent=0 // pred_region
    _
  $region21: #{net5_forward.12} parent=0 // pred_fallthru
    _

</llo_original>
